<compile_context>
chip_gen: v6e
topology: v6e:2x2x1
jax: 0.10.0
libtpu: 0.0.40
codegen_flags: <defaults>
</compile_context>

<pallas_src>
import numpy as np
import jax
import jax.numpy as jnp
from jax import lax
from jax.experimental import pallas as pl
from jax.experimental.pallas import tpu as pltpu

# ----------------------------- configuration -------------------------------
B = 2                    # batch
L = 1024                 # audio samples (small run)
SR = 8000
NFFT = 512               # Model4 default NFFT
HOP = 64                 # Model4 default n_hop
FMIN = 300.0
FMAX = 1600.0
N_FREQ = NFFT // 2 + 1   # 257 (freq_bins=None)
F_PAD = 384              # 257 padded to a lane multiple (3*128)
T_FRAMES = 1 + L // HOP  # 17 frames (center=True)
LP = L + NFFT            # reflect-padded length = 1536 = 24*HOP
NQ = NFFT // HOP         # 8 sub-frames per frame
IMAGE_SIZE = 64          # Model4 image_size, scaled down for a small run
HIDDEN = 64              # backbone-proxy hidden width

# PCENTransform(eps=1e-6, s=0.025, alpha=0.6, delta=0.1, r=0.2, trainable=True):
# trainable params are exp(log(v)) == v at init.
PCEN_EPS = 1e-6
PCEN_S = float(np.exp(np.log(0.025)))
PCEN_ALPHA = float(np.exp(np.log(0.6)))
PCEN_DELTA = float(np.exp(np.log(0.1)))
PCEN_R = float(np.exp(np.log(0.2)))
PCEN_DELTA_R = PCEN_DELTA ** PCEN_R


# --------------------------- parameter builders -----------------------------
def hann_window(n):
    # periodic hann (fftbins=True), as used by nnAudio
    k = np.arange(n)
    return 0.5 - 0.5 * np.cos(2.0 * np.pi * k / n)


def stft_basis_merged():
    """(NFFT, 2*F_PAD) merged [cos | sin] basis, Hann window folded in.

    Matches nnAudio features.STFT(freq_scale='linear', fmin=300, fmax=1600):
    bin k sits at (k*scaling + start_bin) cycles per NFFT samples."""
    n = np.arange(NFFT, dtype=np.float64)
    start_bin = FMIN * NFFT / SR
    scaling = (FMAX - FMIN) * (NFFT / SR) / N_FREQ
    freqs = np.arange(N_FREQ, dtype=np.float64) * scaling + start_bin
    ang = 2.0 * np.pi * np.outer(n, freqs) / NFFT                  # (NFFT, F)
    win = hann_window(NFFT)[:, None]
    basis = np.zeros((NFFT, 2 * F_PAD), np.float64)
    basis[:, :N_FREQ] = np.cos(ang) * win
    basis[:, F_PAD:F_PAD + N_FREQ] = np.sin(ang) * win
    return basis.astype(np.float32)


def pcen_ema_matrix():
    """(F_PAD, F_PAD) transposed EMA matrix, built in float64 then cast.

    msm = spec @ EMA_T reproduces M[0]=s*x[0], M[m]=(1-s)*M[m-1]+s*x[m]
    (the pcen() recurrence along dim -2, i.e. the 257 freq bins)."""
    idx = np.arange(N_FREQ)
    diff = idx[:, None] - idx[None, :]                             # m - k
    w = np.where(diff >= 0, PCEN_S * (1.0 - PCEN_S) ** np.maximum(diff, 0), 0.0)
    wp = np.zeros((F_PAD, F_PAD), np.float64)
    wp[:N_FREQ, :N_FREQ] = w
    return wp.T.astype(np.float32)                                 # EMA_T[k, m] = W[m, k]


def bilinear_matrix(in_size, out_size):
    # bilinear resize weights, align_corners=False (half-pixel centers)
    # TODO(synk): torchvision Resize antialias pre-filtering not replicated.
    W = np.zeros((out_size, in_size), np.float64)
    scale = in_size / out_size
    for i in range(out_size):
        src = (i + 0.5) * scale - 0.5
        src = min(max(src, 0.0), in_size - 1.0)
        lo = int(np.floor(src))
        hi = min(lo + 1, in_size - 1)
        frac = src - lo
        W[i, lo] += 1.0 - frac
        W[i, hi] += frac
    return W


# ------------------------------ fused kernel --------------------------------
def model4_kernel(frames_ref, basis_ref, ema_t_ref, rrow_t_ref, rcol_ref,
                  w1_ref, b1_ref, w2_ref, b2_ref, spec_t_ref, pred_ref):
    # ---- STFT magnitude: ONE (T, NFFT) @ (NFFT, 2*F_PAD) bf16 matmul --------
    frames = frames_ref[...].astype(jnp.bfloat16)                   # (T, NFFT)
    res = jnp.dot(frames, basis_ref[...],
                  preferred_element_type=jnp.float32)               # (T, 2*F_PAD)
    re = res[:, :F_PAD]
    im = res[:, F_PAD:]
    # trainable STFT path in nnAudio adds 1e-8 inside the sqrt (trainable=True)
    mag = jnp.sqrt(re * re + im * im + 1e-8)                        # (T, F_PAD), >= 0

    # ---- PCEN: smoother recurrence as one triangular matmul -----------------
    msm = jnp.dot(mag.astype(jnp.bfloat16), ema_t_ref[...],
                  preferred_element_type=jnp.float32)               # (T, F_PAD)
    # mag / (M + eps)^alpha, reciprocal folded into the exponent (one less EUP pass)
    ratio = mag * jnp.exp(-PCEN_ALPHA * jnp.log(msm + PCEN_EPS))
    pc = jnp.exp(PCEN_R * jnp.log(ratio + PCEN_DELTA)) - PCEN_DELTA_R

    # ---- framewise min-max normalization (masked reduce over freq lanes) ----
    lane = lax.broadcasted_iota(jnp.int32, (T_FRAMES, F_PAD), 1)
    valid = lane < N_FREQ
    x_max = jnp.max(jnp.where(valid, pc, -jnp.inf), axis=1, keepdims=True)
    x_min = jnp.min(jnp.where(valid, pc, jnp.inf), axis=1, keepdims=True)
    den = x_max - x_min
    safe_den = jnp.where(den > 0.0, den, 1.0)                       # exact division, NaN-free
    normed = jnp.where(jnp.logical_and(valid, den > 0.0),
                       (pc - x_min) / safe_den, 0.0)                # (T, F_PAD)

    # ---- bilinear resize as two plain (M,K)@(K,N) matmuls --------------------
    # tmp   = N @ R_f^T           : (T, S)        freq 257 -> S
    # img_t = R_t @ tmp           : (S_time, S_freq)  time 17 -> S (transposed spec)
    tmp = jnp.dot(normed.astype(jnp.bfloat16), rrow_t_ref[...],
                  preferred_element_type=jnp.float32)               # (T, S)
    img_t = jnp.dot(rcol_ref[...], tmp.astype(jnp.bfloat16),
                    preferred_element_type=jnp.float32)             # (S, S), (time, freq)
    spec_t_ref[...] = img_t      # transposed orientation; wrapper swaps back (tiny XLA op)

    # ---- backbone stand-in head ---------------------------------------------
    # TODO(synk): the timm backbone (arbitrary pretrained CNN/ViT with
    # drop_path/dropout) has no clean Pallas equivalent; a deterministic
    # dense -> relu -> global-average-pool -> dense(2) head stands in for it.
    h = jnp.maximum(jnp.dot(img_t.astype(jnp.bfloat16), w1_ref[...],
                            preferred_element_type=jnp.float32) + b1_ref[...], 0.0)
    pool = jnp.mean(h, axis=0, keepdims=True)                       # (1, H) XLU sublane reduce
    pred_ref[...] = jnp.dot(pool.astype(jnp.bfloat16), w2_ref[...],
                            preferred_element_type=jnp.float32) + b2_ref[...]


# ------------------------------ wrapper --------------------------------------
def model4_forward(audio, params):
    # center=True reflect padding + framing kept as tiny XLA ops (the framed
    # (B, 17, 512) array is ~34 KiB/batch); everything else (STFT, PCEN, norm,
    # resize, head) runs inside the fused kernel.
    pad = NFFT // 2
    xp = jnp.pad(audio, ((0, 0), (pad, pad)), mode="reflect")       # (B, LP)
    xv = xp.reshape(B, LP // HOP, HOP)                              # (B, 24, HOP)
    # frame t = padded audio [t*HOP, t*HOP+NFFT) = rows t..t+7 of xv concatenated
    frames = jnp.concatenate([xv[:, q:q + T_FRAMES, :] for q in range(NQ)],
                             axis=-1)                               # (B, T, NFFT) f32

    spec_t, pred = pl.pallas_call(
        model4_kernel,
        out_shape=(
            jax.ShapeDtypeStruct((B, IMAGE_SIZE, IMAGE_SIZE), jnp.float32),
            jax.ShapeDtypeStruct((B, 1, 2), jnp.float32),
        ),
        grid=(B,),
        in_specs=[
            pl.BlockSpec((None, T_FRAMES, NFFT), lambda b: (b, 0, 0)),   # framed audio
            pl.BlockSpec((NFFT, 2 * F_PAD), lambda b: (0, 0)),           # merged cos|sin basis (bf16)
            pl.BlockSpec((F_PAD, F_PAD), lambda b: (0, 0)),              # PCEN EMA^T (bf16)
            pl.BlockSpec((F_PAD, IMAGE_SIZE), lambda b: (0, 0)),         # freq-resize matrix^T (bf16)
            pl.BlockSpec((IMAGE_SIZE, T_FRAMES), lambda b: (0, 0)),      # time-resize matrix (bf16)
            pl.BlockSpec((IMAGE_SIZE, HIDDEN), lambda b: (0, 0)),        # head w1 (bf16)
            pl.BlockSpec((1, HIDDEN), lambda b: (0, 0)),                 # head b1 (f32)
            pl.BlockSpec((HIDDEN, 2), lambda b: (0, 0)),                 # head w2 (bf16)
            pl.BlockSpec((1, 2), lambda b: (0, 0)),                      # head b2 (f32)
        ],
        out_specs=(
            pl.BlockSpec((None, IMAGE_SIZE, IMAGE_SIZE), lambda b: (b, 0, 0)),
            pl.BlockSpec((None, 1, 2), lambda b: (b, 0, 0)),
        ),
        compiler_params=pltpu.CompilerParams(dimension_semantics=("parallel",)),
    )(frames, params["basis"], params["ema_t"], params["rrow_t"], params["r_cols"],
      params["w1"], params["b1"], params["w2"], params["b2"])

    # kernel produces (time, freq); PyTorch spectrogram is (freq, time)
    spec = jnp.swapaxes(spec_t, 1, 2)
    return {"prediction": pred.reshape(B, 2), "spectrogram": spec}


# --------------------------------- main --------------------------------------
if __name__ == "__main__":
    key = jax.random.PRNGKey(0)
    k_audio, k_w1, k_w2 = jax.random.split(key, 3)

    audio = jax.random.normal(k_audio, (B, L), dtype=jnp.float32)

    # freq-resize matrix, pre-transposed on the host: (F_PAD, IMAGE_SIZE)
    rrow_t = np.zeros((F_PAD, IMAGE_SIZE), np.float64)
    rrow_t[:N_FREQ, :] = bilinear_matrix(N_FREQ, IMAGE_SIZE).T

    params = {
        "basis": jnp.asarray(stft_basis_merged(), dtype=jnp.bfloat16),           # (512, 768)
        "ema_t": jnp.asarray(pcen_ema_matrix(), dtype=jnp.bfloat16),              # (384, 384)
        "rrow_t": jnp.asarray(rrow_t.astype(np.float32), dtype=jnp.bfloat16),     # (384, S)
        "r_cols": jnp.asarray(bilinear_matrix(T_FRAMES, IMAGE_SIZE).astype(np.float32),
                              dtype=jnp.bfloat16),                                # (S, T)
        "w1": (0.02 * jax.random.normal(k_w1, (IMAGE_SIZE, HIDDEN), jnp.float32)
               ).astype(jnp.bfloat16),
        "b1": jnp.zeros((1, HIDDEN), jnp.float32),
        "w2": (0.02 * jax.random.normal(k_w2, (HIDDEN, 2), jnp.float32)
               ).astype(jnp.bfloat16),
        "b2": jnp.zeros((1, 2), jnp.float32),
    }

    out = jax.jit(model4_forward)(audio, params)
    jax.block_until_ready(out)

    assert out["prediction"].shape == (B, 2)
    assert out["spectrogram"].shape == (B, IMAGE_SIZE, IMAGE_SIZE)
    assert bool(jnp.all(jnp.isfinite(out["prediction"])))
    assert bool(jnp.all(jnp.isfinite(out["spectrogram"])))
    print("KERNEL_OK")
</pallas_src>

<mosaic_0001>
module attributes {stable_mosaic.version = 11 : i64} {
  func.func @model4_kernel(%arg0: i32, %arg1: memref<1x17x512xf32, #tpu.memory_space<vmem>>, %arg2: memref<512x768xbf16, #tpu.memory_space<vmem>>, %arg3: memref<384x384xbf16, #tpu.memory_space<vmem>>, %arg4: memref<384x64xbf16, #tpu.memory_space<vmem>>, %arg5: memref<64x17xbf16, #tpu.memory_space<vmem>>, %arg6: memref<64x64xbf16, #tpu.memory_space<vmem>>, %arg7: memref<1x64xf32, #tpu.memory_space<vmem>>, %arg8: memref<64x2xbf16, #tpu.memory_space<vmem>>, %arg9: memref<1x2xf32, #tpu.memory_space<vmem>>, %arg10: memref<1x64x64xf32, #tpu.memory_space<vmem>>, %arg11: memref<1x1x2xf32, #tpu.memory_space<vmem>>) attributes {dimension_semantics = [#tpu.dimension_semantics<parallel>], iteration_bounds = array<i64: 2>, scalar_prefetch = 0 : i64, scratch_operands = 0 : i64, tpu.core_type = #tpu.core_type<tc>, window_params = [{transform_indices = @transform_0, window_bounds = array<i64: 1, 17, 512>}, {pipeline_mode = #tpu.pipeline_mode<synchronous>, transform_indices = @transform_1, window_bounds = array<i64: 512, 768>}, {pipeline_mode = #tpu.pipeline_mode<synchronous>, transform_indices = @transform_2, window_bounds = array<i64: 384, 384>}, {pipeline_mode = #tpu.pipeline_mode<synchronous>, transform_indices = @transform_3, window_bounds = array<i64: 384, 64>}, {pipeline_mode = #tpu.pipeline_mode<synchronous>, transform_indices = @transform_4, window_bounds = array<i64: 64, 17>}, {pipeline_mode = #tpu.pipeline_mode<synchronous>, transform_indices = @transform_5, window_bounds = array<i64: 64, 64>}, {pipeline_mode = #tpu.pipeline_mode<synchronous>, transform_indices = @transform_6, window_bounds = array<i64: 1, 64>}, {pipeline_mode = #tpu.pipeline_mode<synchronous>, transform_indices = @transform_7, window_bounds = array<i64: 64, 2>}, {pipeline_mode = #tpu.pipeline_mode<synchronous>, transform_indices = @transform_8, window_bounds = array<i64: 1, 2>}, {transform_indices = @transform_9, window_bounds = array<i64: 1, 64, 64>}, {transform_indices = @transform_10, window_bounds = array<i64: 1, 1, 2>}]} {
    %c0 = arith.constant 0 : index
    %c0_0 = arith.constant 0 : index
    %c0_1 = arith.constant 0 : index
    %0 = vector.load %arg1[%c0, %c0_0, %c0_1] : memref<1x17x512xf32, #tpu.memory_space<vmem>>, vector<1x17x512xf32>
    %1 = vector.shape_cast %0 : vector<1x17x512xf32> to vector<17x512xf32>
    %2 = arith.truncf %1 : vector<17x512xf32> to vector<17x512xbf16>
    %c0_2 = arith.constant 0 : index
    %c0_3 = arith.constant 0 : index
    %3 = vector.load %arg2[%c0_2, %c0_3] : memref<512x768xbf16, #tpu.memory_space<vmem>>, vector<512x768xbf16>
    %cst = arith.constant dense<0.000000e+00> : vector<17x768xf32>
    %4 = tpu.matmul %2, %3, %cst {dimension_numbers = #tpu.dot_dimension_numbers<[1], [0], [0], [1], [0, 0, 1, 1], [], []>} : vector<17x512xbf16>, vector<512x768xbf16>, vector<17x768xf32> -> vector<17x768xf32>
    %5 = vector.extract_strided_slice %4 {offsets = [0, 0], sizes = [17, 384], strides = [1, 1]} : vector<17x768xf32> to vector<17x384xf32>
    %6 = vector.extract_strided_slice %4 {offsets = [0, 384], sizes = [17, 384], strides = [1, 1]} : vector<17x768xf32> to vector<17x384xf32>
    %7 = arith.mulf %5, %5 : vector<17x384xf32>
    %8 = arith.mulf %6, %6 : vector<17x384xf32>
    %9 = arith.addf %7, %8 : vector<17x384xf32>
    %cst_4 = arith.constant 9.99999993E-9 : f32
    %10 = vector.broadcast %cst_4 : f32 to vector<17x384xf32>
    %11 = arith.addf %9, %10 : vector<17x384xf32>
    %12 = math.sqrt %11 : vector<17x384xf32>
    %13 = arith.truncf %12 : vector<17x384xf32> to vector<17x384xbf16>
    %c0_5 = arith.constant 0 : index
    %c0_6 = arith.constant 0 : index
    %14 = vector.load %arg3[%c0_5, %c0_6] : memref<384x384xbf16, #tpu.memory_space<vmem>>, vector<384x384xbf16>
    %cst_7 = arith.constant dense<0.000000e+00> : vector<17x384xf32>
    %15 = tpu.matmul %13, %14, %cst_7 {dimension_numbers = #tpu.dot_dimension_numbers<[1], [0], [0], [1], [0, 0, 1, 1], [], []>} : vector<17x384xbf16>, vector<384x384xbf16>, vector<17x384xf32> -> vector<17x384xf32>
    %cst_8 = arith.constant 9.99999997E-7 : f32
    %16 = vector.broadcast %cst_8 : f32 to vector<17x384xf32>
    %17 = arith.addf %15, %16 : vector<17x384xf32>
    %18 = math.log %17 : vector<17x384xf32>
    %cst_9 = arith.constant -6.000000e-01 : f32
    %19 = vector.broadcast %cst_9 : f32 to vector<17x384xf32>
    %20 = arith.mulf %19, %18 : vector<17x384xf32>
    %21 = math.exp %20 : vector<17x384xf32>
    %22 = arith.mulf %12, %21 : vector<17x384xf32>
    %cst_10 = arith.constant 1.000000e-01 : f32
    %23 = vector.broadcast %cst_10 : f32 to vector<17x384xf32>
    %24 = arith.addf %22, %23 : vector<17x384xf32>
    %25 = math.log %24 : vector<17x384xf32>
    %cst_11 = arith.constant 2.000000e-01 : f32
    %26 = vector.broadcast %cst_11 : f32 to vector<17x384xf32>
    %27 = arith.mulf %26, %25 : vector<17x384xf32>
    %28 = math.exp %27 : vector<17x384xf32>
    %cst_12 = arith.constant 0.630957365 : f32
    %29 = vector.broadcast %cst_12 : f32 to vector<17x384xf32>
    %30 = arith.subf %28, %29 : vector<17x384xf32>
    %31 = tpu.iota {dimensions = array<i32: 1>} : vector<17x384xi32>
    %c257_i32 = arith.constant 257 : i32
    %32 = vector.broadcast %c257_i32 : i32 to vector<17x384xi32>
    %33 = arith.cmpi slt, %31, %32 : vector<17x384xi32>
    %cst_13 = arith.constant 0xFF800000 : f32
    %34 = vector.broadcast %cst_13 : f32 to vector<17x384xf32>
    %35 = arith.select %33, %30, %34 : vector<17x384xi1>, vector<17x384xf32>
    %cst_14 = arith.constant dense<0xFF800000> : vector<17xf32>
    %36 = vector.multi_reduction <maximumf>, %35, %cst_14 [1] : vector<17x384xf32> to vector<17xf32>
    %37 = vector.shape_cast %36 : vector<17xf32> to vector<17x1xf32>
    %cst_15 = arith.constant 0x7F800000 : f32
    %38 = vector.broadcast %cst_15 : f32 to vector<17x384xf32>
    %39 = arith.select %33, %30, %38 : vector<17x384xi1>, vector<17x384xf32>
    %cst_16 = arith.constant dense<0x7F800000> : vector<17xf32>
    %40 = vector.multi_reduction <minimumf>, %39, %cst_16 [1] : vector<17x384xf32> to vector<17xf32>
    %41 = vector.shape_cast %40 : vector<17xf32> to vector<17x1xf32>
    %42 = arith.subf %37, %41 : vector<17x1xf32>
    %cst_17 = arith.constant 0.000000e+00 : f32
    %43 = vector.broadcast %cst_17 : f32 to vector<17x1xf32>
    %44 = arith.cmpf ogt, %42, %43 : vector<17x1xf32>
    %cst_18 = arith.constant 1.000000e+00 : f32
    %45 = vector.broadcast %cst_18 : f32 to vector<17x1xf32>
    %46 = arith.select %44, %42, %45 : vector<17x1xi1>, vector<17x1xf32>
    %cst_19 = arith.constant 0.000000e+00 : f32
    %47 = vector.broadcast %cst_19 : f32 to vector<17x1xf32>
    %48 = arith.cmpf ogt, %42, %47 : vector<17x1xf32>
    %49 = vector.broadcast %48 : vector<17x1xi1> to vector<17x384xi1>
    %50 = arith.andi %33, %49 : vector<17x384xi1>
    %51 = vector.broadcast %41 : vector<17x1xf32> to vector<17x384xf32>
    %52 = arith.subf %30, %51 : vector<17x384xf32>
    %53 = vector.broadcast %46 : vector<17x1xf32> to vector<17x384xf32>
    %54 = arith.divf %52, %53 : vector<17x384xf32>
    %cst_20 = arith.constant 0.000000e+00 : f32
    %55 = vector.broadcast %cst_20 : f32 to vector<17x384xf32>
    %56 = arith.select %50, %54, %55 : vector<17x384xi1>, vector<17x384xf32>
    %57 = arith.truncf %56 : vector<17x384xf32> to vector<17x384xbf16>
    %c0_21 = arith.constant 0 : index
    %c0_22 = arith.constant 0 : index
    %58 = vector.load %arg4[%c0_21, %c0_22] : memref<384x64xbf16, #tpu.memory_space<vmem>>, vector<384x64xbf16>
    %cst_23 = arith.constant dense<0.000000e+00> : vector<17x64xf32>
    %59 = tpu.matmul %57, %58, %cst_23 {dimension_numbers = #tpu.dot_dimension_numbers<[1], [0], [0], [1], [0, 0, 1, 1], [], []>} : vector<17x384xbf16>, vector<384x64xbf16>, vector<17x64xf32> -> vector<17x64xf32>
    %c0_24 = arith.constant 0 : index
    %c0_25 = arith.constant 0 : index
    %60 = vector.load %arg5[%c0_24, %c0_25] : memref<64x17xbf16, #tpu.memory_space<vmem>>, vector<64x17xbf16>
    %61 = arith.truncf %59 : vector<17x64xf32> to vector<17x64xbf16>
    %cst_26 = arith.constant dense<0.000000e+00> : vector<64x64xf32>
    %62 = tpu.matmul %60, %61, %cst_26 {dimension_numbers = #tpu.dot_dimension_numbers<[1], [0], [0], [1], [0, 0, 1, 1], [], []>} : vector<64x17xbf16>, vector<17x64xbf16>, vector<64x64xf32> -> vector<64x64xf32>
    %c0_27 = arith.constant 0 : index
    %c0_28 = arith.constant 0 : index
    %c0_29 = arith.constant 0 : index
    %63 = vector.load %arg10[%c0_27, %c0_28, %c0_29] : memref<1x64x64xf32, #tpu.memory_space<vmem>>, vector<1x64x64xf32>
    %64 = vector.shape_cast %63 : vector<1x64x64xf32> to vector<64x64xf32>
    %65 = vector.shape_cast %62 : vector<64x64xf32> to vector<1x64x64xf32>
    tpu.vector_store %arg10[%c0_27, %c0_28, %c0_29], %65 {strides = array<i32>} : memref<1x64x64xf32, #tpu.memory_space<vmem>>, vector<1x64x64xf32>,
    %66 = arith.truncf %62 : vector<64x64xf32> to vector<64x64xbf16>
    %c0_30 = arith.constant 0 : index
    %c0_31 = arith.constant 0 : index
    %67 = vector.load %arg6[%c0_30, %c0_31] : memref<64x64xbf16, #tpu.memory_space<vmem>>, vector<64x64xbf16>
    %cst_32 = arith.constant dense<0.000000e+00> : vector<64x64xf32>
    %68 = tpu.matmul %66, %67, %cst_32 {dimension_numbers = #tpu.dot_dimension_numbers<[1], [0], [0], [1], [0, 0, 1, 1], [], []>} : vector<64x64xbf16>, vector<64x64xbf16>, vector<64x64xf32> -> vector<64x64xf32>
    %c0_33 = arith.constant 0 : index
    %c0_34 = arith.constant 0 : index
    %69 = vector.load %arg7[%c0_33, %c0_34] : memref<1x64xf32, #tpu.memory_space<vmem>>, vector<1x64xf32>
    %70 = vector.broadcast %69 : vector<1x64xf32> to vector<64x64xf32>
    %71 = arith.addf %68, %70 : vector<64x64xf32>
    %cst_35 = arith.constant 0.000000e+00 : f32
    %72 = vector.broadcast %cst_35 : f32 to vector<64x64xf32>
    %73 = arith.maximumf %71, %72 : vector<64x64xf32>
    %cst_36 = arith.constant dense<0.000000e+00> : vector<64xf32>
    %74 = vector.multi_reduction <add>, %73, %cst_36 [0] : vector<64x64xf32> to vector<64xf32>
    %75 = vector.shape_cast %74 : vector<64xf32> to vector<1x64xf32>
    %cst_37 = arith.constant 6.400000e+01 : f32
    %76 = vector.broadcast %cst_37 : f32 to vector<1x64xf32>
    %77 = arith.divf %75, %76 : vector<1x64xf32>
    %78 = arith.truncf %77 : vector<1x64xf32> to vector<1x64xbf16>
    %c0_38 = arith.constant 0 : index
    %c0_39 = arith.constant 0 : index
    %79 = vector.load %arg8[%c0_38, %c0_39] : memref<64x2xbf16, #tpu.memory_space<vmem>>, vector<64x2xbf16>
    %cst_40 = arith.constant dense<0.000000e+00> : vector<1x2xf32>
    %80 = tpu.matmul %78, %79, %cst_40 {dimension_numbers = #tpu.dot_dimension_numbers<[1], [0], [0], [1], [0, 0, 1, 1], [], []>} : vector<1x64xbf16>, vector<64x2xbf16>, vector<1x2xf32> -> vector<1x2xf32>
    %c0_41 = arith.constant 0 : index
    %c0_42 = arith.constant 0 : index
    %81 = vector.load %arg9[%c0_41, %c0_42] : memref<1x2xf32, #tpu.memory_space<vmem>>, vector<1x2xf32>
    %82 = arith.addf %80, %81 : vector<1x2xf32>
    %c0_43 = arith.constant 0 : index
    %c0_44 = arith.constant 0 : index
    %c0_45 = arith.constant 0 : index
    %83 = vector.load %arg11[%c0_43, %c0_44, %c0_45] : memref<1x1x2xf32, #tpu.memory_space<vmem>>, vector<1x1x2xf32>
    %84 = vector.shape_cast %83 : vector<1x1x2xf32> to vector<1x2xf32>
    %85 = vector.shape_cast %82 : vector<1x2xf32> to vector<1x1x2xf32>
    tpu.vector_store %arg11[%c0_43, %c0_44, %c0_45], %85 {strides = array<i32>} : memref<1x1x2xf32, #tpu.memory_space<vmem>>, vector<1x1x2xf32>,
    return
  }
  func.func @transform_0(%arg0: i32) -> (i32, i32, i32) {
    %c0_i32 = arith.constant 0 : i32
    %c0_i32_0 = arith.constant 0 : i32
    %c0_i32_1 = arith.constant 0 : i32
    return %arg0, %c0_i32, %c0_i32_0 : i32, i32, i32
  }
  func.func @transform_1(%arg0: i32) -> (i32, i32) {
    %c0_i32 = arith.constant 0 : i32
    %c0_i32_0 = arith.constant 0 : i32
    %c0_i32_1 = arith.constant 0 : i32
    return %c0_i32, %c0_i32_0 : i32, i32
  }
  func.func @transform_2(%arg0: i32) -> (i32, i32) {
    %c0_i32 = arith.constant 0 : i32
    %c0_i32_0 = arith.constant 0 : i32
    %c0_i32_1 = arith.constant 0 : i32
    return %c0_i32, %c0_i32_0 : i32, i32
  }
  func.func @transform_3(%arg0: i32) -> (i32, i32) {
    %c0_i32 = arith.constant 0 : i32
    %c0_i32_0 = arith.constant 0 : i32
    %c0_i32_1 = arith.constant 0 : i32
    return %c0_i32, %c0_i32_0 : i32, i32
  }
  func.func @transform_4(%arg0: i32) -> (i32, i32) {
    %c0_i32 = arith.constant 0 : i32
    %c0_i32_0 = arith.constant 0 : i32
    %c0_i32_1 = arith.constant 0 : i32
    return %c0_i32, %c0_i32_0 : i32, i32
  }
  func.func @transform_5(%arg0: i32) -> (i32, i32) {
    %c0_i32 = arith.constant 0 : i32
    %c0_i32_0 = arith.constant 0 : i32
    %c0_i32_1 = arith.constant 0 : i32
    return %c0_i32, %c0_i32_0 : i32, i32
  }
  func.func @transform_6(%arg0: i32) -> (i32, i32) {
    %c0_i32 = arith.constant 0 : i32
    %c0_i32_0 = arith.constant 0 : i32
    %c0_i32_1 = arith.constant 0 : i32
    return %c0_i32, %c0_i32_0 : i32, i32
  }
  func.func @transform_7(%arg0: i32) -> (i32, i32) {
    %c0_i32 = arith.constant 0 : i32
    %c0_i32_0 = arith.constant 0 : i32
    %c0_i32_1 = arith.constant 0 : i32
    return %c0_i32, %c0_i32_0 : i32, i32
  }
  func.func @transform_8(%arg0: i32) -> (i32, i32) {
    %c0_i32 = arith.constant 0 : i32
    %c0_i32_0 = arith.constant 0 : i32
    %c0_i32_1 = arith.constant 0 : i32
    return %c0_i32, %c0_i32_0 : i32, i32
  }
  func.func @transform_9(%arg0: i32) -> (i32, i32, i32) {
    %c0_i32 = arith.constant 0 : i32
    %c0_i32_0 = arith.constant 0 : i32
    %c0_i32_1 = arith.constant 0 : i32
    return %arg0, %c0_i32, %c0_i32_0 : i32, i32, i32
  }
  func.func @transform_10(%arg0: i32) -> (i32, i32, i32) {
    %c0_i32 = arith.constant 0 : i32
    %c0_i32_0 = arith.constant 0 : i32
    %c0_i32_1 = arith.constant 0 : i32
    return %arg0, %c0_i32, %c0_i32_0 : i32, i32, i32
  }
}

</mosaic_0001>

<llo_original>
// kernel: model4_forward.1
$region0: #{model4_forward.1}
  #allocation0 [shape = 'u32[]', space=smem, size = 0x4, offset = 0x4, fixed_abs, tag = 'smem constant byte address 0x4 - core index']
  #allocation1 [shape = 'u32[144,128]{1,0:T(1,128)}', space=vmem, size = 0x12000, scoped, tag = 'internal scratch']
  %s0 = inlined_call_operand.vmem [shape: f32[2,17,512], index: 0, kind: input, shape index: {}]
  %s1 = inlined_call_operand.vmem [shape: bf16[512,768], index: 1, kind: input, shape index: {}]
  %s2 = inlined_call_operand.hbm [shape: bf16[384,384], index: 2, kind: input, shape index: {}]
  %s3 = inlined_call_operand.vmem [shape: bf16[384,64], index: 3, kind: input, shape index: {}]
  %s4 = inlined_call_operand.vmem [shape: bf16[64,17], index: 4, kind: input, shape index: {}]
  %s5 = inlined_call_operand.vmem [shape: bf16[64,64], index: 5, kind: input, shape index: {}]
  %s6 = inlined_call_operand.vmem [shape: f32[1,64], index: 6, kind: input, shape index: {}]
  %s7 = inlined_call_operand.vmem [shape: bf16[64,2], index: 7, kind: input, shape index: {}]
  %s8 = inlined_call_operand.vmem [shape: f32[1,2], index: 8, kind: input, shape index: {}]
  %s9 = inlined_call_operand.vmem [shape: f32[2,64,64], index: 9, kind: output, shape index: {0}]
  %s10 = inlined_call_operand.hbm [shape: f32[2,1,2], index: 10, kind: output, shape index: {1}]
  %11 = xla_tuple %s9, %s10
  %s12 = sld [smem:[#allocation0]]
  $region81: #{model4_forward.1} parent=0
    _
  %s14 = ssub.s32 1, %s12
  %s15 = scalar_select 0, %s14, %s12
  $region1: #{model4_forward.1} parent=0
    #allocation2 [shape = 'u8[294912]{0}', space=vmem, size = 0x48000, scoped, tag = 'input window, operand 2, single buffered']
    #allocation3 [shape = 's32[2]{0}', space=sflag, size = 0x8, scoped, tag = 'scoped memory for model4_forward.1']
    #allocation4 [shape = 's32[2]{0}', space=sflag, size = 0x8, scoped, tag = 'scoped memory for model4_forward.1']
    #allocation5 [shape = 'u8[1024]{0}', space=vmem, size = 0x400, scoped, tag = 'output window, operand 1']
    %16 = vsyncpa [#allocation3], 0
    %17 = vsyncpa [#allocation4], 0
    %s18 = scalar_lea.sflag [#allocation4], 1
    %19 = vsyncpa %s18, 0
    loop: start=0, step=1, limit=4
    $region2: #{model4_forward.1} parent=1 // loop_pre_header
      _
    $region3: #{model4_forward.1} parent=1 // loop_header
      %s21 = sphi 0, %s25
      %p22 = scmp.ge.s32.totalorder %s21, 4
      %s31 = sphi 0, %s33
      %s34 = sphi 0, %s31
      %s35 = sphi 0, %s34
      %s51 = sphi 0, %s35
      %s55 = sphi 0, %s55
      %s57 = sphi 0, %s55
      %s58 = sphi 0, %s57
      %s72 = sphi 0, %s58
      %s76 = sphi 0, %s76
      %s78 = sphi 0, %s76
      %s79 = sphi 0, %s78
      %s93 = sphi 0, %s79
      %s97 = sphi 0, %s97
      %s99 = sphi 0, %s97
      %s100 = sphi 0, %s99
      %s114 = sphi 0, %s100
      %s118 = sphi 0, %s118
      %s120 = sphi 0, %s118
      %s121 = sphi 0, %s120
      %s135 = sphi 0, %s121
      %s139 = sphi 0, %s139
      %s141 = sphi 0, %s139
      %s142 = sphi 0, %s141
      %s156 = sphi 0, %s142
      %s160 = sphi 0, %s160
      %s162 = sphi 0, %s160
      %s163 = sphi 0, %s162
      %s177 = sphi 0, %s163
      %s181 = sphi 0, %s181
      %s183 = sphi 0, %s181
      %s184 = sphi 0, %s183
      %s198 = sphi 0, %s184
      %s202 = sphi 0, %s202
      %s204 = sphi 0, %s202
      %s205 = sphi 0, %s204
      %s219 = sphi 0, %s205
      %s225 = sphi 0, %s227
      %s228 = sphi 0, %s225
      %s229 = sphi 0, %s228
      %s245 = sphi 0, %s229
      %s251 = sphi 0, %s253
      %s254 = sphi 0, %s251
      %s255 = sphi 0, %s254
      %s271 = sphi 0, %s255
    $region4: #{model4_forward.1} parent=1 // loop_header_branch
      %24 = sbr.rel (%p22) target = $region8
    $region5: #{model4_forward.1} parent=1 // loop_body
      %s26 = ssub.s32 %s21, 1
      %s27 = ssub.s32 %s21, 2
      %s28 = sadd.s32 %s21, 1
      %s29 = ssub.s32 %s21, %s28
      %p30 = scmp.eq.s32.totalorder %s29, 0
      %s32 = sadd.s32 %s31, 1
      %s33 = scalar_select %p30, %s31, %s32
      %p36 = pneg %p30
      %p37 = scmp.eq.s32.totalorder %s21, 1
      %p38 = por %p36, %p37
      %p39 = scmp.ne.s32.totalorder %s31, %s34
      %p40 = scmp.eq.s32.totalorder %s21, 0
      %p41 = por %p39, %p40
      %p42 = scmp.ne.s32.totalorder %s31, %s34
      %p43 = scmp.eq.s32.totalorder %s26, 1
      %p44 = por %p42, %p43
      %p45 = scmp.ne.s32.totalorder %s34, %s35
      %p46 = scmp.eq.s32.totalorder %s26, 0
      %p47 = por %p45, %p46
      %p48 = scmp.ne.s32.totalorder %s34, %s35
      %p49 = scmp.eq.s32.totalorder %s27, 1
      %p50 = por %p48, %p49
      %p52 = scmp.ne.s32.totalorder %s35, %s51
      %p53 = scmp.eq.s32.totalorder %s27, 0
      %p54 = por %p52, %p53
      %s56 = sadd.s32 %s55, 1
      %p59 = scmp.eq.s32.totalorder %s21, 1
      %p60 = scmp.ne.s32.totalorder %s55, %s57
      %p61 = scmp.eq.s32.totalorder %s21, 0
      %p62 = por %p60, %p61
      %p63 = scmp.ne.s32.totalorder %s55, %s57
      %p64 = scmp.eq.s32.totalorder %s26, 1
      %p65 = por %p63, %p64
      %p66 = scmp.ne.s32.totalorder %s57, %s58
      %p67 = scmp.eq.s32.totalorder %s26, 0
      %p68 = por %p66, %p67
      %p69 = scmp.ne.s32.totalorder %s57, %s58
      %p70 = scmp.eq.s32.totalorder %s27, 1
      %p71 = por %p69, %p70
      %p73 = scmp.ne.s32.totalorder %s58, %s72
      %p74 = scmp.eq.s32.totalorder %s27, 0
      %p75 = por %p73, %p74
      %s77 = sadd.s32 %s76, 1
      %p80 = scmp.eq.s32.totalorder %s21, 1
      %p81 = scmp.ne.s32.totalorder %s76, %s78
      %p82 = scmp.eq.s32.totalorder %s21, 0
      %p83 = por %p81, %p82
      %p84 = scmp.ne.s32.totalorder %s76, %s78
      %p85 = scmp.eq.s32.totalorder %s26, 1
      %p86 = por %p84, %p85
      %p87 = scmp.ne.s32.totalorder %s78, %s79
      %p88 = scmp.eq.s32.totalorder %s26, 0
      %p89 = por %p87, %p88
      %p90 = scmp.ne.s32.totalorder %s78, %s79
      %p91 = scmp.eq.s32.totalorder %s27, 1
      %p92 = por %p90, %p91
      %p94 = scmp.ne.s32.totalorder %s79, %s93
      %p95 = scmp.eq.s32.totalorder %s27, 0
      %p96 = por %p94, %p95
      %s98 = sadd.s32 %s97, 1
      %p101 = scmp.eq.s32.totalorder %s21, 1
      %p102 = scmp.ne.s32.totalorder %s97, %s99
      %p103 = scmp.eq.s32.totalorder %s21, 0
      %p104 = por %p102, %p103
      %p105 = scmp.ne.s32.totalorder %s97, %s99
      %p106 = scmp.eq.s32.totalorder %s26, 1
      %p107 = por %p105, %p106
      %p108 = scmp.ne.s32.totalorder %s99, %s100
      %p109 = scmp.eq.s32.totalorder %s26, 0
      %p110 = por %p108, %p109
      %p111 = scmp.ne.s32.totalorder %s99, %s100
      %p112 = scmp.eq.s32.totalorder %s27, 1
      %p113 = por %p111, %p112
      %p115 = scmp.ne.s32.totalorder %s100, %s114
      %p116 = scmp.eq.s32.totalorder %s27, 0
      %p117 = por %p115, %p116
      %s119 = sadd.s32 %s118, 1
      %p122 = scmp.eq.s32.totalorder %s21, 1
      %p123 = scmp.ne.s32.totalorder %s118, %s120
      %p124 = scmp.eq.s32.totalorder %s21, 0
      %p125 = por %p123, %p124
      %p126 = scmp.ne.s32.totalorder %s118, %s120
      %p127 = scmp.eq.s32.totalorder %s26, 1
      %p128 = por %p126, %p127
      %p129 = scmp.ne.s32.totalorder %s120, %s121
      %p130 = scmp.eq.s32.totalorder %s26, 0
      %p131 = por %p129, %p130
      %p132 = scmp.ne.s32.totalorder %s120, %s121
      %p133 = scmp.eq.s32.totalorder %s27, 1
      %p134 = por %p132, %p133
      %p136 = scmp.ne.s32.totalorder %s121, %s135
      %p137 = scmp.eq.s32.totalorder %s27, 0
      %p138 = por %p136, %p137
      %s140 = sadd.s32 %s139, 1
      %p143 = scmp.eq.s32.totalorder %s21, 1
      %p144 = scmp.ne.s32.totalorder %s139, %s141
      %p145 = scmp.eq.s32.totalorder %s21, 0
      %p146 = por %p144, %p145
      %p147 = scmp.ne.s32.totalorder %s139, %s141
      %p148 = scmp.eq.s32.totalorder %s26, 1
      %p149 = por %p147, %p148
      %p150 = scmp.ne.s32.totalorder %s141, %s142
      %p151 = scmp.eq.s32.totalorder %s26, 0
      %p152 = por %p150, %p151
      %p153 = scmp.ne.s32.totalorder %s141, %s142
      %p154 = scmp.eq.s32.totalorder %s27, 1
      %p155 = por %p153, %p154
      %p157 = scmp.ne.s32.totalorder %s142, %s156
      %p158 = scmp.eq.s32.totalorder %s27, 0
      %p159 = por %p157, %p158
      %s161 = sadd.s32 %s160, 1
      %p164 = scmp.eq.s32.totalorder %s21, 1
      %p165 = scmp.ne.s32.totalorder %s160, %s162
      %p166 = scmp.eq.s32.totalorder %s21, 0
      %p167 = por %p165, %p166
      %p168 = scmp.ne.s32.totalorder %s160, %s162
      %p169 = scmp.eq.s32.totalorder %s26, 1
      %p170 = por %p168, %p169
      %p171 = scmp.ne.s32.totalorder %s162, %s163
      %p172 = scmp.eq.s32.totalorder %s26, 0
      %p173 = por %p171, %p172
      %p174 = scmp.ne.s32.totalorder %s162, %s163
      %p175 = scmp.eq.s32.totalorder %s27, 1
      %p176 = por %p174, %p175
      %p178 = scmp.ne.s32.totalorder %s163, %s177
      %p179 = scmp.eq.s32.totalorder %s27, 0
      %p180 = por %p178, %p179
      %s182 = sadd.s32 %s181, 1
      %p185 = scmp.eq.s32.totalorder %s21, 1
      %p186 = scmp.ne.s32.totalorder %s181, %s183
      %p187 = scmp.eq.s32.totalorder %s21, 0
      %p188 = por %p186, %p187
      %p189 = scmp.ne.s32.totalorder %s181, %s183
      %p190 = scmp.eq.s32.totalorder %s26, 1
      %p191 = por %p189, %p190
      %p192 = scmp.ne.s32.totalorder %s183, %s184
      %p193 = scmp.eq.s32.totalorder %s26, 0
      %p194 = por %p192, %p193
      %p195 = scmp.ne.s32.totalorder %s183, %s184
      %p196 = scmp.eq.s32.totalorder %s27, 1
      %p197 = por %p195, %p196
      %p199 = scmp.ne.s32.totalorder %s184, %s198
      %p200 = scmp.eq.s32.totalorder %s27, 0
      %p201 = por %p199, %p200
      %s203 = sadd.s32 %s202, 1
      %p206 = scmp.eq.s32.totalorder %s21, 1
      %p207 = scmp.ne.s32.totalorder %s202, %s204
      %p208 = scmp.eq.s32.totalorder %s21, 0
      %p209 = por %p207, %p208
      %p210 = scmp.ne.s32.totalorder %s202, %s204
      %p211 = scmp.eq.s32.totalorder %s26, 1
      %p212 = por %p210, %p211
      %p213 = scmp.ne.s32.totalorder %s204, %s205
      %p214 = scmp.eq.s32.totalorder %s26, 0
      %p215 = por %p213, %p214
      %p216 = scmp.ne.s32.totalorder %s204, %s205
      %p217 = scmp.eq.s32.totalorder %s27, 1
      %p218 = por %p216, %p217
      %p220 = scmp.ne.s32.totalorder %s205, %s219
      %p221 = scmp.eq.s32.totalorder %s27, 0
      %p222 = por %p220, %p221
      %s223 = ssub.s32 %s21, %s28
      %p224 = scmp.eq.s32.totalorder %s223, 0
      %s226 = sadd.s32 %s225, 1
      %s227 = scalar_select %p224, %s225, %s226
      %p230 = pneg %p224
      %p231 = scmp.eq.s32.totalorder %s21, 1
      %p232 = por %p230, %p231
      %p233 = scmp.ne.s32.totalorder %s225, %s228
      %p234 = scmp.eq.s32.totalorder %s21, 0
      %p235 = por %p233, %p234
      %p236 = scmp.ne.s32.totalorder %s225, %s228
      %p237 = scmp.eq.s32.totalorder %s26, 1
      %p238 = por %p236, %p237
      %p239 = scmp.ne.s32.totalorder %s228, %s229
      %p240 = scmp.eq.s32.totalorder %s26, 0
      %p241 = por %p239, %p240
      %p242 = scmp.ne.s32.totalorder %s228, %s229
      %p243 = scmp.eq.s32.totalorder %s27, 1
      %p244 = por %p242, %p243
      %p246 = scmp.ne.s32.totalorder %s229, %s245
      %p247 = scmp.eq.s32.totalorder %s27, 0
      %p248 = por %p246, %p247
      %s249 = ssub.s32 %s21, %s28
      %p250 = scmp.eq.s32.totalorder %s249, 0
      %s252 = sadd.s32 %s251, 1
      %s253 = scalar_select %p250, %s251, %s252
      %p256 = pneg %p250
      %p257 = scmp.eq.s32.totalorder %s21, 1
      %p258 = por %p256, %p257
      %p259 = scmp.ne.s32.totalorder %s251, %s254
      %p260 = scmp.eq.s32.totalorder %s21, 0
      %p261 = por %p259, %p260
      %p262 = scmp.ne.s32.totalorder %s251, %s254
      %p263 = scmp.eq.s32.totalorder %s26, 1
      %p264 = por %p262, %p263
      %p265 = scmp.ne.s32.totalorder %s254, %s255
      %p266 = scmp.eq.s32.totalorder %s26, 0
      %p267 = por %p265, %p266
      %p268 = scmp.ne.s32.totalorder %s254, %s255
      %p269 = scmp.eq.s32.totalorder %s27, 1
      %p270 = por %p268, %p269
      %p272 = scmp.ne.s32.totalorder %s255, %s271
      %p273 = scmp.eq.s32.totalorder %s27, 0
      %p274 = por %p272, %p273
      %p275 = scmp.le.s32.totalorder 1, %s21
      %p276 = scmp.lt.s32.totalorder %s21, 3
      %p277 = pnand %p275, %p276
      %p278 = pneg %p277
      // Predicated region
      $region9: #{model4_forward.1} parent=5 // pred_check
        _
      $region10: #{model4_forward.1} parent=5 // pred_check_branch
        %280 = sbr.rel (%p277) target = $region12
      $region11: #{model4_forward.1} parent=5 // pred_region
        %s281 = ssub.s32 %s21, 1
        // Predicated region
        $region13: #{model4_forward.1} parent=11 // pred_check
          %p282 = pneg %p68
        $region14: #{model4_forward.1} parent=11 // pred_check_branch
          %284 = sbr.rel (%p282) target = $region16
        $region15: #{model4_forward.1} parent=11 // pred_region
          _
        $region16: #{model4_forward.1} parent=11 // pred_fallthru
          _
        // Predicated region
        $region17: #{model4_forward.1} parent=11 // pred_check
          %p285 = pneg %p89
        $region18: #{model4_forward.1} parent=11 // pred_check_branch
          %287 = sbr.rel (%p285) target = $region20
        $region19: #{model4_forward.1} parent=11 // pred_region
          %s289 = ssub.s32 9216, 9216
          %290 = vsyncadd [#allocation3], %s289
          %s291 = sshll.u32 [#allocation2], 4
          %s292 = int_to_ptr.vmem [resolvable:$true] %s291
          %297 = dma.hbm_to_vmem [thread:$0]  %s2, 9216, %s292, [#allocation3], 192, 192, 12
        $region20: #{model4_forward.1} parent=11 // pred_fallthru
          _
        // Predicated region
        $region21: #{model4_forward.1} parent=11 // pred_check
          %p298 = pneg %p110
        $region22: #{model4_forward.1} parent=11 // pred_check_branch
          %300 = sbr.rel (%p298) target = $region24
        $region23: #{model4_forward.1} parent=11 // pred_region
          _
        $region24: #{model4_forward.1} parent=11 // pred_fallthru
          _
        // Predicated region
        $region25: #{model4_forward.1} parent=11 // pred_check
          %p301 = pneg %p131
        $region26: #{model4_forward.1} parent=11 // pred_check_branch
          %303 = sbr.rel (%p301) target = $region28
        $region27: #{model4_forward.1} parent=11 // pred_region
          _
        $region28: #{model4_forward.1} parent=11 // pred_fallthru
          _
        // Predicated region
        $region29: #{model4_forward.1} parent=11 // pred_check
          %p304 = pneg %p152
        $region30: #{model4_forward.1} parent=11 // pred_check_branch
          %306 = sbr.rel (%p304) target = $region32
        $region31: #{model4_forward.1} parent=11 // pred_region
          _
        $region32: #{model4_forward.1} parent=11 // pred_fallthru
          _
        // Predicated region
        $region33: #{model4_forward.1} parent=11 // pred_check
          %p307 = pneg %p173
        $region34: #{model4_forward.1} parent=11 // pred_check_branch
          %309 = sbr.rel (%p307) target = $region36
        $region35: #{model4_forward.1} parent=11 // pred_region
          _
        $region36: #{model4_forward.1} parent=11 // pred_fallthru
          _
        // Predicated region
        $region37: #{model4_forward.1} parent=11 // pred_check
          %p310 = pneg %p194
        $region38: #{model4_forward.1} parent=11 // pred_check_branch
          %312 = sbr.rel (%p310) target = $region40
        $region39: #{model4_forward.1} parent=11 // pred_region
          _
        $region40: #{model4_forward.1} parent=11 // pred_fallthru
          _
        // Predicated region
        $region41: #{model4_forward.1} parent=11 // pred_check
          %p313 = pneg %p215
        $region42: #{model4_forward.1} parent=11 // pred_check_branch
          %315 = sbr.rel (%p313) target = $region44
        $region43: #{model4_forward.1} parent=11 // pred_region
          _
        $region44: #{model4_forward.1} parent=11 // pred_fallthru
          _
      $region12: #{model4_forward.1} parent=5 // pred_fallthru
        _
      %p316 = scmp.lt.s32.totalorder %s21, 2
      // Predicated region
      $region45: #{model4_forward.1} parent=5 // pred_check
        %p317 = pneg %p316
      $region46: #{model4_forward.1} parent=5 // pred_check_branch
        %319 = sbr.rel (%p317) target = $region48
      $region47: #{model4_forward.1} parent=5 // pred_region
        // Predicated region
        $region49: #{model4_forward.1} parent=47 // pred_check
          %p320 = pneg %p41
        $region50: #{model4_forward.1} parent=47 // pred_check_branch
          %322 = sbr.rel (%p320) target = $region52
        $region51: #{model4_forward.1} parent=47 // pred_region
          %p323 = scmp.lt.s32.totalorder %s21, 1
          %s324 = scalar_select %p323, %s21, 1
          %s325 = smul.addr %s324, 12
          %s326 = smul.addr %s325, 8
          %s327 = scalar_lea.vmem %s0, %s326
        $region52: #{model4_forward.1} parent=47 // pred_fallthru
          _
      $region48: #{model4_forward.1} parent=5 // pred_fallthru
        _
      %p328 = scmp.le.s32.totalorder 1, %s21
      %p329 = scmp.lt.s32.totalorder %s21, 3
      %p330 = pnand %p328, %p329
      %p331 = pneg %p330
      // Predicated region
      $region53: #{model4_forward.1} parent=5 // pred_check
        _
      $region54: #{model4_forward.1} parent=5 // pred_check_branch
        %333 = sbr.rel (%p330) target = $region56
      $region55: #{model4_forward.1} parent=5 // pred_region
        %s334 = ssub.s32 %s21, 1
        // Predicated region
        $region57: #{model4_forward.1} parent=55 // pred_check
          %p335 = pneg %p89
        $region58: #{model4_forward.1} parent=55 // pred_check_branch
          %337 = sbr.rel (%p335) target = $region60
        $region59: #{model4_forward.1} parent=55 // pred_region
          %338 = dma.done [#allocation3], 9216
        $region60: #{model4_forward.1} parent=55 // pred_fallthru
          _
        %p339 = scmp.lt.s32.totalorder %s26, 1
        %s340 = scalar_select %p339, %s26, 1
        %s341 = smul.addr %s340, 12
        %s342 = smul.addr %s341, 8
        %s343 = scalar_lea.vmem %s0, %s342
        %p344 = pneg %p47
        %p345 = pneg %p44
        %p346 = pneg %p68
        %p347 = pneg %p65
        %p348 = pneg %p89
        %p349 = pneg %p86
        %p350 = pneg %p110
        %p351 = pneg %p107
        %p352 = pneg %p131
        %p353 = pneg %p128
        %p354 = pneg %p152
        %p355 = pneg %p149
        %p356 = pneg %p173
        %p357 = pneg %p170
        %p358 = pneg %p194
        %p359 = pneg %p191
        %p360 = pneg %p215
        %p361 = pneg %p212
        %p362 = pneg %p241
        %p363 = pneg %p238
        %p364 = scmp.lt.s32.totalorder %s26, 1
        %s365 = scalar_select %p364, %s26, 1
        %s366 = smul.addr %s365, 8
        %s367 = smul.addr %s366, 8
        %s368 = scalar_lea.vmem %s9, %s367
        %p369 = pneg %p267
        %p370 = pneg %p264
        %s371 = sand.u32 %s254, 1
        %s372 = scalar_lea.sflag [#allocation4], %s371
        %s373 = sand.u32 %s254, 1
        %s374 = scalar_lea.vmem [#allocation5], %s373
        %p375 = scmp.lt.s32.totalorder %s26, 1
        %s376 = scalar_select %p375, %s26, 1
        %s377 = smul.addr %s376, 12
        %s378 = smul.addr %s377, 8
        %s379 = scalar_lea.vmem %s0, %s378
        %p380 = scmp.lt.s32.totalorder %s26, 1
        %s381 = scalar_select %p380, %s26, 1
        %s382 = smul.addr %s381, 8
        %s383 = smul.addr %s382, 8
        %s384 = scalar_lea.vmem %s9, %s383
        %v386 = vld [vmem:[%s379] sm:$0xff]
        %v387 = vld [vmem:[%s379 + $0x8] sm:$0xff]
        %v388 = vld [vmem:[%s379 + $0x10] sm:$0xff]
        %v389 = vld [vmem:[%s379 + $0x18] sm:$0xff]
        %v390 = vld [vmem:[%s379 + $0x20] sm:$0xff]
        %v391 = vld [vmem:[%s379 + $0x28] sm:$0xff]
        %v392 = vld [vmem:[%s379 + $0x30] sm:$0xff]
        %v393 = vld [vmem:[%s379 + $0x38] sm:$0xff]
        %v394 = vld [vmem:[%s379 + $0x40] sm:$0x1]
        %v395 = vld [vmem:[%s379 + $0x48] sm:$0x1]
        %v396 = vld [vmem:[%s379 + $0x50] sm:$0x1]
        %v397 = vld [vmem:[%s379 + $0x58] sm:$0x1]
        %v398 = vpack.c.bf16 %v390, %v386
        %v399 = vpack.c.bf16 %v391, %v387
        %v400 = vpack.c.bf16 %v392, %v388
        %v401 = vpack.c.bf16 %v393, %v389
        %v402 = vpack.c.bf16 %v394, %v394
        %v403 = vpack.c.bf16 %v395, %v395
        %v404 = vpack.c.bf16 %v396, %v396
        %v405 = vpack.c.bf16 %v397, %v397
        %v406 = vld [vmem:[%s1] sm:$0xff]
        %v407 = vld [vmem:[%s1 + $0x8] sm:$0xff]
        %v408 = vld [vmem:[%s1 + $0x10] sm:$0xff]
        %v409 = vld [vmem:[%s1 + $0x18] sm:$0xff]
        %v410 = vld [vmem:[%s1 + $0x20] sm:$0xff]
        %v411 = vld [vmem:[%s1 + $0x28] sm:$0xff]
        %v412 = vld [vmem:[%s1 + $0x30] sm:$0xff]
        %v413 = vld [vmem:[%s1 + $0x38] sm:$0xff]
        %v414 = vld [vmem:[%s1 + $0x40] sm:$0xff]
        %v415 = vld [vmem:[%s1 + $0x48] sm:$0xff]
        %v416 = vld [vmem:[%s1 + $0x50] sm:$0xff]
        %v417 = vld [vmem:[%s1 + $0x58] sm:$0xff]
        %v418 = vld [vmem:[%s1 + $0x60] sm:$0xff]
        %v419 = vld [vmem:[%s1 + $0x68] sm:$0xff]
        %v420 = vld [vmem:[%s1 + $0x70] sm:$0xff]
        %v421 = vld [vmem:[%s1 + $0x78] sm:$0xff]
        %v422 = vld [vmem:[%s1 + $0x80] sm:$0xff]
        %v423 = vld [vmem:[%s1 + $0x88] sm:$0xff]
        %v424 = vld [vmem:[%s1 + $0x90] sm:$0xff]
        %v425 = vld [vmem:[%s1 + $0x98] sm:$0xff]
        %v426 = vld [vmem:[%s1 + $0xa0] sm:$0xff]
        %v427 = vld [vmem:[%s1 + $0xa8] sm:$0xff]
        %v428 = vld [vmem:[%s1 + $0xb0] sm:$0xff]
        %v429 = vld [vmem:[%s1 + $0xb8] sm:$0xff]
        %v430 = vld [vmem:[%s1 + $0xc0] sm:$0xff]
        %v431 = vld [vmem:[%s1 + $0xc8] sm:$0xff]
        %v432 = vld [vmem:[%s1 + $0xd0] sm:$0xff]
        %v433 = vld [vmem:[%s1 + $0xd8] sm:$0xff]
        %v434 = vld [vmem:[%s1 + $0xe0] sm:$0xff]
        %v435 = vld [vmem:[%s1 + $0xe8] sm:$0xff]
        %v436 = vld [vmem:[%s1 + $0xf0] sm:$0xff]
        %v437 = vld [vmem:[%s1 + $0xf8] sm:$0xff]
        %v438 = vld [vmem:[%s1 + $0x100] sm:$0xff]
        %v439 = vld [vmem:[%s1 + $0x108] sm:$0xff]
        %v440 = vld [vmem:[%s1 + $0x110] sm:$0xff]
        %v441 = vld [vmem:[%s1 + $0x118] sm:$0xff]
        %v442 = vld [vmem:[%s1 + $0x120] sm:$0xff]
        %v443 = vld [vmem:[%s1 + $0x128] sm:$0xff]
        %v444 = vld [vmem:[%s1 + $0x130] sm:$0xff]
        %v445 = vld [vmem:[%s1 + $0x138] sm:$0xff]
        %v446 = vld [vmem:[%s1 + $0x140] sm:$0xff]
        %v447 = vld [vmem:[%s1 + $0x148] sm:$0xff]
        %v448 = vld [vmem:[%s1 + $0x150] sm:$0xff]
        %v449 = vld [vmem:[%s1 + $0x158] sm:$0xff]
        %v450 = vld [vmem:[%s1 + $0x160] sm:$0xff]
        %v451 = vld [vmem:[%s1 + $0x168] sm:$0xff]
        %v452 = vld [vmem:[%s1 + $0x170] sm:$0xff]
        %v453 = vld [vmem:[%s1 + $0x178] sm:$0xff]
        %v454 = vld [vmem:[%s1 + $0x180] sm:$0xff]
        %v455 = vld [vmem:[%s1 + $0x188] sm:$0xff]
        %v456 = vld [vmem:[%s1 + $0x190] sm:$0xff]
        %v457 = vld [vmem:[%s1 + $0x198] sm:$0xff]
        %v458 = vld [vmem:[%s1 + $0x1a0] sm:$0xff]
        %v459 = vld [vmem:[%s1 + $0x1a8] sm:$0xff]
        %v460 = vld [vmem:[%s1 + $0x1b0] sm:$0xff]
        %v461 = vld [vmem:[%s1 + $0x1b8] sm:$0xff]
        %v462 = vld [vmem:[%s1 + $0x1c0] sm:$0xff]
        %v463 = vld [vmem:[%s1 + $0x1c8] sm:$0xff]
        %v464 = vld [vmem:[%s1 + $0x1d0] sm:$0xff]
        %v465 = vld [vmem:[%s1 + $0x1d8] sm:$0xff]
        %v466 = vld [vmem:[%s1 + $0x1e0] sm:$0xff]
        %v467 = vld [vmem:[%s1 + $0x1e8] sm:$0xff]
        %v468 = vld [vmem:[%s1 + $0x1f0] sm:$0xff]
        %v469 = vld [vmem:[%s1 + $0x1f8] sm:$0xff]
        %v470 = vld [vmem:[%s1 + $0x200] sm:$0xff]
        %v471 = vld [vmem:[%s1 + $0x208] sm:$0xff]
        %v472 = vld [vmem:[%s1 + $0x210] sm:$0xff]
        %v473 = vld [vmem:[%s1 + $0x218] sm:$0xff]
        %v474 = vld [vmem:[%s1 + $0x220] sm:$0xff]
        %v475 = vld [vmem:[%s1 + $0x228] sm:$0xff]
        %v476 = vld [vmem:[%s1 + $0x230] sm:$0xff]
        %v477 = vld [vmem:[%s1 + $0x238] sm:$0xff]
        %v478 = vld [vmem:[%s1 + $0x240] sm:$0xff]
        %v479 = vld [vmem:[%s1 + $0x248] sm:$0xff]
        %v480 = vld [vmem:[%s1 + $0x250] sm:$0xff]
        %v481 = vld [vmem:[%s1 + $0x258] sm:$0xff]
        %v482 = vld [vmem:[%s1 + $0x260] sm:$0xff]
        %v483 = vld [vmem:[%s1 + $0x268] sm:$0xff]
        %v484 = vld [vmem:[%s1 + $0x270] sm:$0xff]
        %v485 = vld [vmem:[%s1 + $0x278] sm:$0xff]
        %v486 = vld [vmem:[%s1 + $0x280] sm:$0xff]
        %v487 = vld [vmem:[%s1 + $0x288] sm:$0xff]
        %v488 = vld [vmem:[%s1 + $0x290] sm:$0xff]
        %v489 = vld [vmem:[%s1 + $0x298] sm:$0xff]
        %v490 = vld [vmem:[%s1 + $0x2a0] sm:$0xff]
        %v491 = vld [vmem:[%s1 + $0x2a8] sm:$0xff]
        %v492 = vld [vmem:[%s1 + $0x2b0] sm:$0xff]
        %v493 = vld [vmem:[%s1 + $0x2b8] sm:$0xff]
        %v494 = vld [vmem:[%s1 + $0x2c0] sm:$0xff]
        %v495 = vld [vmem:[%s1 + $0x2c8] sm:$0xff]
        %v496 = vld [vmem:[%s1 + $0x2d0] sm:$0xff]
        %v497 = vld [vmem:[%s1 + $0x2d8] sm:$0xff]
        %v498 = vld [vmem:[%s1 + $0x2e0] sm:$0xff]
        %v499 = vld [vmem:[%s1 + $0x2e8] sm:$0xff]
        %v500 = vld [vmem:[%s1 + $0x2f0] sm:$0xff]
        %v501 = vld [vmem:[%s1 + $0x2f8] sm:$0xff]
        %v502 = vld [vmem:[%s1 + $0x300] sm:$0xff]
        %v503 = vld [vmem:[%s1 + $0x308] sm:$0xff]
        %v504 = vld [vmem:[%s1 + $0x310] sm:$0xff]
        %v505 = vld [vmem:[%s1 + $0x318] sm:$0xff]
        %v506 = vld [vmem:[%s1 + $0x320] sm:$0xff]
        %v507 = vld [vmem:[%s1 + $0x328] sm:$0xff]
        %v508 = vld [vmem:[%s1 + $0x330] sm:$0xff]
        %v509 = vld [vmem:[%s1 + $0x338] sm:$0xff]
        %v510 = vld [vmem:[%s1 + $0x340] sm:$0xff]
        %v511 = vld [vmem:[%s1 + $0x348] sm:$0xff]
        %v512 = vld [vmem:[%s1 + $0x350] sm:$0xff]
        %v513 = vld [vmem:[%s1 + $0x358] sm:$0xff]
        %v514 = vld [vmem:[%s1 + $0x360] sm:$0xff]
        %v515 = vld [vmem:[%s1 + $0x368] sm:$0xff]
        %v516 = vld [vmem:[%s1 + $0x370] sm:$0xff]
        %v517 = vld [vmem:[%s1 + $0x378] sm:$0xff]
        %v518 = vld [vmem:[%s1 + $0x380] sm:$0xff]
        %v519 = vld [vmem:[%s1 + $0x388] sm:$0xff]
        %v520 = vld [vmem:[%s1 + $0x390] sm:$0xff]
        %v521 = vld [vmem:[%s1 + $0x398] sm:$0xff]
        %v522 = vld [vmem:[%s1 + $0x3a0] sm:$0xff]
        %v523 = vld [vmem:[%s1 + $0x3a8] sm:$0xff]
        %v524 = vld [vmem:[%s1 + $0x3b0] sm:$0xff]
        %v525 = vld [vmem:[%s1 + $0x3b8] sm:$0xff]
        %v526 = vld [vmem:[%s1 + $0x3c0] sm:$0xff]
        %v527 = vld [vmem:[%s1 + $0x3c8] sm:$0xff]
        %v528 = vld [vmem:[%s1 + $0x3d0] sm:$0xff]
        %v529 = vld [vmem:[%s1 + $0x3d8] sm:$0xff]
        %v530 = vld [vmem:[%s1 + $0x3e0] sm:$0xff]
        %v531 = vld [vmem:[%s1 + $0x3e8] sm:$0xff]
        %v532 = vld [vmem:[%s1 + $0x3f0] sm:$0xff]
        %v533 = vld [vmem:[%s1 + $0x3f8] sm:$0xff]
        %v534 = vld [vmem:[%s1 + $0x400] sm:$0xff]
        %v535 = vld [vmem:[%s1 + $0x408] sm:$0xff]
        %v536 = vld [vmem:[%s1 + $0x410] sm:$0xff]
        %v537 = vld [vmem:[%s1 + $0x418] sm:$0xff]
        %v538 = vld [vmem:[%s1 + $0x420] sm:$0xff]
        %v539 = vld [vmem:[%s1 + $0x428] sm:$0xff]
        %v540 = vld [vmem:[%s1 + $0x430] sm:$0xff]
        %v541 = vld [vmem:[%s1 + $0x438] sm:$0xff]
        %v542 = vld [vmem:[%s1 + $0x440] sm:$0xff]
        %v543 = vld [vmem:[%s1 + $0x448] sm:$0xff]
        %v544 = vld [vmem:[%s1 + $0x450] sm:$0xff]
        %v545 = vld [vmem:[%s1 + $0x458] sm:$0xff]
        %v546 = vld [vmem:[%s1 + $0x460] sm:$0xff]
        %v547 = vld [vmem:[%s1 + $0x468] sm:$0xff]
        %v548 = vld [vmem:[%s1 + $0x470] sm:$0xff]
        %v549 = vld [vmem:[%s1 + $0x478] sm:$0xff]
        %v550 = vld [vmem:[%s1 + $0x480] sm:$0xff]
        %v551 = vld [vmem:[%s1 + $0x488] sm:$0xff]
        %v552 = vld [vmem:[%s1 + $0x490] sm:$0xff]
        %v553 = vld [vmem:[%s1 + $0x498] sm:$0xff]
        %v554 = vld [vmem:[%s1 + $0x4a0] sm:$0xff]
        %v555 = vld [vmem:[%s1 + $0x4a8] sm:$0xff]
        %v556 = vld [vmem:[%s1 + $0x4b0] sm:$0xff]
        %v557 = vld [vmem:[%s1 + $0x4b8] sm:$0xff]
        %v558 = vld [vmem:[%s1 + $0x4c0] sm:$0xff]
        %v559 = vld [vmem:[%s1 + $0x4c8] sm:$0xff]
        %v560 = vld [vmem:[%s1 + $0x4d0] sm:$0xff]
        %v561 = vld [vmem:[%s1 + $0x4d8] sm:$0xff]
        %v562 = vld [vmem:[%s1 + $0x4e0] sm:$0xff]
        %v563 = vld [vmem:[%s1 + $0x4e8] sm:$0xff]
        %v564 = vld [vmem:[%s1 + $0x4f0] sm:$0xff]
        %v565 = vld [vmem:[%s1 + $0x4f8] sm:$0xff]
        %v566 = vld [vmem:[%s1 + $0x500] sm:$0xff]
        %v567 = vld [vmem:[%s1 + $0x508] sm:$0xff]
        %v568 = vld [vmem:[%s1 + $0x510] sm:$0xff]
        %v569 = vld [vmem:[%s1 + $0x518] sm:$0xff]
        %v570 = vld [vmem:[%s1 + $0x520] sm:$0xff]
        %v571 = vld [vmem:[%s1 + $0x528] sm:$0xff]
        %v572 = vld [vmem:[%s1 + $0x530] sm:$0xff]
        %v573 = vld [vmem:[%s1 + $0x538] sm:$0xff]
        %v574 = vld [vmem:[%s1 + $0x540] sm:$0xff]
        %v575 = vld [vmem:[%s1 + $0x548] sm:$0xff]
        %v576 = vld [vmem:[%s1 + $0x550] sm:$0xff]
        %v577 = vld [vmem:[%s1 + $0x558] sm:$0xff]
        %v578 = vld [vmem:[%s1 + $0x560] sm:$0xff]
        %v579 = vld [vmem:[%s1 + $0x568] sm:$0xff]
        %v580 = vld [vmem:[%s1 + $0x570] sm:$0xff]
        %v581 = vld [vmem:[%s1 + $0x578] sm:$0xff]
        %v582 = vld [vmem:[%s1 + $0x580] sm:$0xff]
        %v583 = vld [vmem:[%s1 + $0x588] sm:$0xff]
        %v584 = vld [vmem:[%s1 + $0x590] sm:$0xff]
        %v585 = vld [vmem:[%s1 + $0x598] sm:$0xff]
        %v586 = vld [vmem:[%s1 + $0x5a0] sm:$0xff]
        %v587 = vld [vmem:[%s1 + $0x5a8] sm:$0xff]
        %v588 = vld [vmem:[%s1 + $0x5b0] sm:$0xff]
        %v589 = vld [vmem:[%s1 + $0x5b8] sm:$0xff]
        %v590 = vld [vmem:[%s1 + $0x5c0] sm:$0xff]
        %v591 = vld [vmem:[%s1 + $0x5c8] sm:$0xff]
        %v592 = vld [vmem:[%s1 + $0x5d0] sm:$0xff]
        %v593 = vld [vmem:[%s1 + $0x5d8] sm:$0xff]
        %v594 = vld [vmem:[%s1 + $0x5e0] sm:$0xff]
        %v595 = vld [vmem:[%s1 + $0x5e8] sm:$0xff]
        %v596 = vld [vmem:[%s1 + $0x5f0] sm:$0xff]
        %v597 = vld [vmem:[%s1 + $0x5f8] sm:$0xff]
        %v790 = vunpack.c.l.b16 %v406
        %v791 = vunpack.c.h.b16 %v406
        %v792 = vunpack.c.l.b16 %v407
        %v793 = vunpack.c.h.b16 %v407
        %v794 = vunpack.c.l.b16 %v408
        %v795 = vunpack.c.h.b16 %v408
        %v796 = vunpack.c.l.b16 %v409
        %v797 = vunpack.c.h.b16 %v409
        %v798 = vunpack.c.l.b16 %v410
        %v799 = vunpack.c.h.b16 %v410
        %v800 = vunpack.c.l.b16 %v411
        %v801 = vunpack.c.h.b16 %v411
        %v802 = vunpack.c.l.b16 %v412
        %v803 = vunpack.c.h.b16 %v412
        %v804 = vunpack.c.l.b16 %v413
        %v805 = vunpack.c.h.b16 %v413
        %v806 = vunpack.c.l.b16 %v414
        %v807 = vunpack.c.h.b16 %v414
        %v808 = vunpack.c.l.b16 %v415
        %v809 = vunpack.c.h.b16 %v415
        %v810 = vunpack.c.l.b16 %v416
        %v811 = vunpack.c.h.b16 %v416
        %v812 = vunpack.c.l.b16 %v417
        %v813 = vunpack.c.h.b16 %v417
        %v814 = vunpack.c.l.b16 %v418
        %v815 = vunpack.c.h.b16 %v418
        %v816 = vunpack.c.l.b16 %v419
        %v817 = vunpack.c.h.b16 %v419
        %v818 = vunpack.c.l.b16 %v420
        %v819 = vunpack.c.h.b16 %v420
        %v820 = vunpack.c.l.b16 %v421
        %v821 = vunpack.c.h.b16 %v421
        %v822 = vunpack.c.l.b16 %v422
        %v823 = vunpack.c.h.b16 %v422
        %v824 = vunpack.c.l.b16 %v423
        %v825 = vunpack.c.h.b16 %v423
        %v826 = vunpack.c.l.b16 %v424
        %v827 = vunpack.c.h.b16 %v424
        %v828 = vunpack.c.l.b16 %v425
        %v829 = vunpack.c.h.b16 %v425
        %v830 = vunpack.c.l.b16 %v426
        %v831 = vunpack.c.h.b16 %v426
        %v832 = vunpack.c.l.b16 %v427
        %v833 = vunpack.c.h.b16 %v427
        %v834 = vunpack.c.l.b16 %v428
        %v835 = vunpack.c.h.b16 %v428
        %v836 = vunpack.c.l.b16 %v429
        %v837 = vunpack.c.h.b16 %v429
        %v838 = vunpack.c.l.b16 %v430
        %v839 = vunpack.c.h.b16 %v430
        %v840 = vunpack.c.l.b16 %v431
        %v841 = vunpack.c.h.b16 %v431
        %v842 = vunpack.c.l.b16 %v432
        %v843 = vunpack.c.h.b16 %v432
        %v844 = vunpack.c.l.b16 %v433
        %v845 = vunpack.c.h.b16 %v433
        %v846 = vunpack.c.l.b16 %v434
        %v847 = vunpack.c.h.b16 %v434
        %v848 = vunpack.c.l.b16 %v435
        %v849 = vunpack.c.h.b16 %v435
        %v850 = vunpack.c.l.b16 %v436
        %v851 = vunpack.c.h.b16 %v436
        %v852 = vunpack.c.l.b16 %v437
        %v853 = vunpack.c.h.b16 %v437
        %v854 = vunpack.c.l.b16 %v438
        %v855 = vunpack.c.h.b16 %v438
        %v856 = vunpack.c.l.b16 %v439
        %v857 = vunpack.c.h.b16 %v439
        %v858 = vunpack.c.l.b16 %v440
        %v859 = vunpack.c.h.b16 %v440
        %v860 = vunpack.c.l.b16 %v441
        %v861 = vunpack.c.h.b16 %v441
        %v862 = vunpack.c.l.b16 %v442
        %v863 = vunpack.c.h.b16 %v442
        %v864 = vunpack.c.l.b16 %v443
        %v865 = vunpack.c.h.b16 %v443
        %v866 = vunpack.c.l.b16 %v444
        %v867 = vunpack.c.h.b16 %v444
        %v868 = vunpack.c.l.b16 %v445
        %v869 = vunpack.c.h.b16 %v445
        %v870 = vunpack.c.l.b16 %v446
        %v871 = vunpack.c.h.b16 %v446
        %v872 = vunpack.c.l.b16 %v447
        %v873 = vunpack.c.h.b16 %v447
        %v874 = vunpack.c.l.b16 %v448
        %v875 = vunpack.c.h.b16 %v448
        %v876 = vunpack.c.l.b16 %v449
        %v877 = vunpack.c.h.b16 %v449
        %v878 = vunpack.c.l.b16 %v450
        %v879 = vunpack.c.h.b16 %v450
        %v880 = vunpack.c.l.b16 %v451
        %v881 = vunpack.c.h.b16 %v451
        %v882 = vunpack.c.l.b16 %v452
        %v883 = vunpack.c.h.b16 %v452
        %v884 = vunpack.c.l.b16 %v453
        %v885 = vunpack.c.h.b16 %v453
        %v886 = vunpack.c.l.b16 %v454
        %v887 = vunpack.c.h.b16 %v454
        %v888 = vunpack.c.l.b16 %v455
        %v889 = vunpack.c.h.b16 %v455
        %v890 = vunpack.c.l.b16 %v456
        %v891 = vunpack.c.h.b16 %v456
        %v892 = vunpack.c.l.b16 %v457
        %v893 = vunpack.c.h.b16 %v457
        %v894 = vunpack.c.l.b16 %v458
        %v895 = vunpack.c.h.b16 %v458
        %v896 = vunpack.c.l.b16 %v459
        %v897 = vunpack.c.h.b16 %v459
        %v898 = vunpack.c.l.b16 %v460
        %v899 = vunpack.c.h.b16 %v460
        %v900 = vunpack.c.l.b16 %v461
        %v901 = vunpack.c.h.b16 %v461
        %v902 = vunpack.c.l.b16 %v462
        %v903 = vunpack.c.h.b16 %v462
        %v904 = vunpack.c.l.b16 %v463
        %v905 = vunpack.c.h.b16 %v463
        %v906 = vunpack.c.l.b16 %v464
        %v907 = vunpack.c.h.b16 %v464
        %v908 = vunpack.c.l.b16 %v465
        %v909 = vunpack.c.h.b16 %v465
        %v910 = vunpack.c.l.b16 %v466
        %v911 = vunpack.c.h.b16 %v466
        %v912 = vunpack.c.l.b16 %v467
        %v913 = vunpack.c.h.b16 %v467
        %v914 = vunpack.c.l.b16 %v468
        %v915 = vunpack.c.h.b16 %v468
        %v916 = vunpack.c.l.b16 %v469
        %v917 = vunpack.c.h.b16 %v469
        %v918 = vunpack.c.l.b16 %v470
        %v919 = vunpack.c.h.b16 %v470
        %v920 = vunpack.c.l.b16 %v471
        %v921 = vunpack.c.h.b16 %v471
        %v922 = vunpack.c.l.b16 %v472
        %v923 = vunpack.c.h.b16 %v472
        %v924 = vunpack.c.l.b16 %v473
        %v925 = vunpack.c.h.b16 %v473
        %v926 = vunpack.c.l.b16 %v474
        %v927 = vunpack.c.h.b16 %v474
        %v928 = vunpack.c.l.b16 %v475
        %v929 = vunpack.c.h.b16 %v475
        %v930 = vunpack.c.l.b16 %v476
        %v931 = vunpack.c.h.b16 %v476
        %v932 = vunpack.c.l.b16 %v477
        %v933 = vunpack.c.h.b16 %v477
        %v934 = vunpack.c.l.b16 %v478
        %v935 = vunpack.c.h.b16 %v478
        %v936 = vunpack.c.l.b16 %v479
        %v937 = vunpack.c.h.b16 %v479
        %v938 = vunpack.c.l.b16 %v480
        %v939 = vunpack.c.h.b16 %v480
        %v940 = vunpack.c.l.b16 %v481
        %v941 = vunpack.c.h.b16 %v481
        %v942 = vunpack.c.l.b16 %v482
        %v943 = vunpack.c.h.b16 %v482
        %v944 = vunpack.c.l.b16 %v483
        %v945 = vunpack.c.h.b16 %v483
        %v946 = vunpack.c.l.b16 %v484
        %v947 = vunpack.c.h.b16 %v484
        %v948 = vunpack.c.l.b16 %v485
        %v949 = vunpack.c.h.b16 %v485
        %v950 = vunpack.c.l.b16 %v486
        %v951 = vunpack.c.h.b16 %v486
        %v952 = vunpack.c.l.b16 %v487
        %v953 = vunpack.c.h.b16 %v487
        %v954 = vunpack.c.l.b16 %v488
        %v955 = vunpack.c.h.b16 %v488
        %v956 = vunpack.c.l.b16 %v489
        %v957 = vunpack.c.h.b16 %v489
        %v958 = vunpack.c.l.b16 %v490
        %v959 = vunpack.c.h.b16 %v490
        %v960 = vunpack.c.l.b16 %v491
        %v961 = vunpack.c.h.b16 %v491
        %v962 = vunpack.c.l.b16 %v492
        %v963 = vunpack.c.h.b16 %v492
        %v964 = vunpack.c.l.b16 %v493
        %v965 = vunpack.c.h.b16 %v493
        %v966 = vunpack.c.l.b16 %v494
        %v967 = vunpack.c.h.b16 %v494
        %v968 = vunpack.c.l.b16 %v495
        %v969 = vunpack.c.h.b16 %v495
        %v970 = vunpack.c.l.b16 %v496
        %v971 = vunpack.c.h.b16 %v496
        %v972 = vunpack.c.l.b16 %v497
        %v973 = vunpack.c.h.b16 %v497
        %v974 = vunpack.c.l.b16 %v498
        %v975 = vunpack.c.h.b16 %v498
        %v976 = vunpack.c.l.b16 %v499
        %v977 = vunpack.c.h.b16 %v499
        %v978 = vunpack.c.l.b16 %v500
        %v979 = vunpack.c.h.b16 %v500
        %v980 = vunpack.c.l.b16 %v501
        %v981 = vunpack.c.h.b16 %v501
        %v982 = vunpack.c.l.b16 %v502
        %v983 = vunpack.c.h.b16 %v502
        %v984 = vunpack.c.l.b16 %v503
        %v985 = vunpack.c.h.b16 %v503
        %v986 = vunpack.c.l.b16 %v504
        %v987 = vunpack.c.h.b16 %v504
        %v988 = vunpack.c.l.b16 %v505
        %v989 = vunpack.c.h.b16 %v505
        %v990 = vunpack.c.l.b16 %v506
        %v991 = vunpack.c.h.b16 %v506
        %v992 = vunpack.c.l.b16 %v507
        %v993 = vunpack.c.h.b16 %v507
        %v994 = vunpack.c.l.b16 %v508
        %v995 = vunpack.c.h.b16 %v508
        %v996 = vunpack.c.l.b16 %v509
        %v997 = vunpack.c.h.b16 %v509
        %v998 = vunpack.c.l.b16 %v510
        %v999 = vunpack.c.h.b16 %v510
        %v1000 = vunpack.c.l.b16 %v511
        %v1001 = vunpack.c.h.b16 %v511
        %v1002 = vunpack.c.l.b16 %v512
        %v1003 = vunpack.c.h.b16 %v512
        %v1004 = vunpack.c.l.b16 %v513
        %v1005 = vunpack.c.h.b16 %v513
        %v1006 = vunpack.c.l.b16 %v514
        %v1007 = vunpack.c.h.b16 %v514
        %v1008 = vunpack.c.l.b16 %v515
        %v1009 = vunpack.c.h.b16 %v515
        %v1010 = vunpack.c.l.b16 %v516
        %v1011 = vunpack.c.h.b16 %v516
        %v1012 = vunpack.c.l.b16 %v517
        %v1013 = vunpack.c.h.b16 %v517
        %v1014 = vunpack.c.l.b16 %v518
        %v1015 = vunpack.c.h.b16 %v518
        %v1016 = vunpack.c.l.b16 %v519
        %v1017 = vunpack.c.h.b16 %v519
        %v1018 = vunpack.c.l.b16 %v520
        %v1019 = vunpack.c.h.b16 %v520
        %v1020 = vunpack.c.l.b16 %v521
        %v1021 = vunpack.c.h.b16 %v521
        %v1022 = vunpack.c.l.b16 %v522
        %v1023 = vunpack.c.h.b16 %v522
        %v1024 = vunpack.c.l.b16 %v523
        %v1025 = vunpack.c.h.b16 %v523
        %v1026 = vunpack.c.l.b16 %v524
        %v1027 = vunpack.c.h.b16 %v524
        %v1028 = vunpack.c.l.b16 %v525
        %v1029 = vunpack.c.h.b16 %v525
        %v1030 = vunpack.c.l.b16 %v526
        %v1031 = vunpack.c.h.b16 %v526
        %v1032 = vunpack.c.l.b16 %v527
        %v1033 = vunpack.c.h.b16 %v527
        %v1034 = vunpack.c.l.b16 %v528
        %v1035 = vunpack.c.h.b16 %v528
        %v1036 = vunpack.c.l.b16 %v529
        %v1037 = vunpack.c.h.b16 %v529
        %v1038 = vunpack.c.l.b16 %v530
        %v1039 = vunpack.c.h.b16 %v530
        %v1040 = vunpack.c.l.b16 %v531
        %v1041 = vunpack.c.h.b16 %v531
        %v1042 = vunpack.c.l.b16 %v532
        %v1043 = vunpack.c.h.b16 %v532
        %v1044 = vunpack.c.l.b16 %v533
        %v1045 = vunpack.c.h.b16 %v533
        %v1046 = vunpack.c.l.b16 %v534
        %v1047 = vunpack.c.h.b16 %v534
        %v1048 = vunpack.c.l.b16 %v535
        %v1049 = vunpack.c.h.b16 %v535
        %v1050 = vunpack.c.l.b16 %v536
        %v1051 = vunpack.c.h.b16 %v536
        %v1052 = vunpack.c.l.b16 %v537
        %v1053 = vunpack.c.h.b16 %v537
        %v1054 = vunpack.c.l.b16 %v538
        %v1055 = vunpack.c.h.b16 %v538
        %v1056 = vunpack.c.l.b16 %v539
        %v1057 = vunpack.c.h.b16 %v539
        %v1058 = vunpack.c.l.b16 %v540
        %v1059 = vunpack.c.h.b16 %v540
        %v1060 = vunpack.c.l.b16 %v541
        %v1061 = vunpack.c.h.b16 %v541
        %v1062 = vunpack.c.l.b16 %v542
        %v1063 = vunpack.c.h.b16 %v542
        %v1064 = vunpack.c.l.b16 %v543
        %v1065 = vunpack.c.h.b16 %v543
        %v1066 = vunpack.c.l.b16 %v544
        %v1067 = vunpack.c.h.b16 %v544
        %v1068 = vunpack.c.l.b16 %v545
        %v1069 = vunpack.c.h.b16 %v545
        %v1070 = vunpack.c.l.b16 %v546
        %v1071 = vunpack.c.h.b16 %v546
        %v1072 = vunpack.c.l.b16 %v547
        %v1073 = vunpack.c.h.b16 %v547
        %v1074 = vunpack.c.l.b16 %v548
        %v1075 = vunpack.c.h.b16 %v548
        %v1076 = vunpack.c.l.b16 %v549
        %v1077 = vunpack.c.h.b16 %v549
        %v1078 = vunpack.c.l.b16 %v550
        %v1079 = vunpack.c.h.b16 %v550
        %v1080 = vunpack.c.l.b16 %v551
        %v1081 = vunpack.c.h.b16 %v551
        %v1082 = vunpack.c.l.b16 %v552
        %v1083 = vunpack.c.h.b16 %v552
        %v1084 = vunpack.c.l.b16 %v553
        %v1085 = vunpack.c.h.b16 %v553
        %v1086 = vunpack.c.l.b16 %v554
        %v1087 = vunpack.c.h.b16 %v554
        %v1088 = vunpack.c.l.b16 %v555
        %v1089 = vunpack.c.h.b16 %v555
        %v1090 = vunpack.c.l.b16 %v556
        %v1091 = vunpack.c.h.b16 %v556
        %v1092 = vunpack.c.l.b16 %v557
        %v1093 = vunpack.c.h.b16 %v557
        %v1094 = vunpack.c.l.b16 %v558
        %v1095 = vunpack.c.h.b16 %v558
        %v1096 = vunpack.c.l.b16 %v559
        %v1097 = vunpack.c.h.b16 %v559
        %v1098 = vunpack.c.l.b16 %v560
        %v1099 = vunpack.c.h.b16 %v560
        %v1100 = vunpack.c.l.b16 %v561
        %v1101 = vunpack.c.h.b16 %v561
        %v1102 = vunpack.c.l.b16 %v562
        %v1103 = vunpack.c.h.b16 %v562
        %v1104 = vunpack.c.l.b16 %v563
        %v1105 = vunpack.c.h.b16 %v563
        %v1106 = vunpack.c.l.b16 %v564
        %v1107 = vunpack.c.h.b16 %v564
        %v1108 = vunpack.c.l.b16 %v565
        %v1109 = vunpack.c.h.b16 %v565
        %v1110 = vunpack.c.l.b16 %v566
        %v1111 = vunpack.c.h.b16 %v566
        %v1112 = vunpack.c.l.b16 %v567
        %v1113 = vunpack.c.h.b16 %v567
        %v1114 = vunpack.c.l.b16 %v568
        %v1115 = vunpack.c.h.b16 %v568
        %v1116 = vunpack.c.l.b16 %v569
        %v1117 = vunpack.c.h.b16 %v569
        %v1118 = vunpack.c.l.b16 %v570
        %v1119 = vunpack.c.h.b16 %v570
        %v1120 = vunpack.c.l.b16 %v571
        %v1121 = vunpack.c.h.b16 %v571
        %v1122 = vunpack.c.l.b16 %v572
        %v1123 = vunpack.c.h.b16 %v572
        %v1124 = vunpack.c.l.b16 %v573
        %v1125 = vunpack.c.h.b16 %v573
        %v1126 = vunpack.c.l.b16 %v574
        %v1127 = vunpack.c.h.b16 %v574
        %v1128 = vunpack.c.l.b16 %v575
        %v1129 = vunpack.c.h.b16 %v575
        %v1130 = vunpack.c.l.b16 %v576
        %v1131 = vunpack.c.h.b16 %v576
        %v1132 = vunpack.c.l.b16 %v577
        %v1133 = vunpack.c.h.b16 %v577
        %v1134 = vunpack.c.l.b16 %v578
        %v1135 = vunpack.c.h.b16 %v578
        %v1136 = vunpack.c.l.b16 %v579
        %v1137 = vunpack.c.h.b16 %v579
        %v1138 = vunpack.c.l.b16 %v580
        %v1139 = vunpack.c.h.b16 %v580
        %v1140 = vunpack.c.l.b16 %v581
        %v1141 = vunpack.c.h.b16 %v581
        %v1142 = vunpack.c.l.b16 %v582
        %v1143 = vunpack.c.h.b16 %v582
        %v1144 = vunpack.c.l.b16 %v583
        %v1145 = vunpack.c.h.b16 %v583
        %v1146 = vunpack.c.l.b16 %v584
        %v1147 = vunpack.c.h.b16 %v584
        %v1148 = vunpack.c.l.b16 %v585
        %v1149 = vunpack.c.h.b16 %v585
        %v1150 = vunpack.c.l.b16 %v586
        %v1151 = vunpack.c.h.b16 %v586
        %v1152 = vunpack.c.l.b16 %v587
        %v1153 = vunpack.c.h.b16 %v587
        %v1154 = vunpack.c.l.b16 %v588
        %v1155 = vunpack.c.h.b16 %v588
        %v1156 = vunpack.c.l.b16 %v589
        %v1157 = vunpack.c.h.b16 %v589
        %v1158 = vunpack.c.l.b16 %v590
        %v1159 = vunpack.c.h.b16 %v590
        %v1160 = vunpack.c.l.b16 %v591
        %v1161 = vunpack.c.h.b16 %v591
        %v1162 = vunpack.c.l.b16 %v592
        %v1163 = vunpack.c.h.b16 %v592
        %v1164 = vunpack.c.l.b16 %v593
        %v1165 = vunpack.c.h.b16 %v593
        %v1166 = vunpack.c.l.b16 %v594
        %v1167 = vunpack.c.h.b16 %v594
        %v1168 = vunpack.c.l.b16 %v595
        %v1169 = vunpack.c.h.b16 %v595
        %v1170 = vunpack.c.l.b16 %v596
        %v1171 = vunpack.c.h.b16 %v596
        %v1172 = vunpack.c.l.b16 %v597
        %v1173 = vunpack.c.h.b16 %v597
        %v1174 = vpack.c.b16 %v796, %v790
        %v1175 = vpack.c.b16 %v797, %v791
        %v1176 = vpack.c.b16 %v798, %v792
        %v1177 = vpack.c.b16 %v799, %v793
        %v1178 = vpack.c.b16 %v800, %v794
        %v1179 = vpack.c.b16 %v801, %v795
        %v1180 = vpack.c.b16 %v808, %v802
        %v1181 = vpack.c.b16 %v809, %v803
        %v1182 = vpack.c.b16 %v810, %v804
        %v1183 = vpack.c.b16 %v811, %v805
        %v1184 = vpack.c.b16 %v812, %v806
        %v1185 = vpack.c.b16 %v813, %v807
        %v1186 = vpack.c.b16 %v820, %v814
        %v1187 = vpack.c.b16 %v821, %v815
        %v1188 = vpack.c.b16 %v822, %v816
        %v1189 = vpack.c.b16 %v823, %v817
        %v1190 = vpack.c.b16 %v824, %v818
        %v1191 = vpack.c.b16 %v825, %v819
        %v1192 = vpack.c.b16 %v832, %v826
        %v1193 = vpack.c.b16 %v833, %v827
        %v1194 = vpack.c.b16 %v834, %v828
        %v1195 = vpack.c.b16 %v835, %v829
        %v1196 = vpack.c.b16 %v836, %v830
        %v1197 = vpack.c.b16 %v837, %v831
        %v1198 = vpack.c.b16 %v844, %v838
        %v1199 = vpack.c.b16 %v845, %v839
        %v1200 = vpack.c.b16 %v846, %v840
        %v1201 = vpack.c.b16 %v847, %v841
        %v1202 = vpack.c.b16 %v848, %v842
        %v1203 = vpack.c.b16 %v849, %v843
        %v1204 = vpack.c.b16 %v856, %v850
        %v1205 = vpack.c.b16 %v857, %v851
        %v1206 = vpack.c.b16 %v858, %v852
        %v1207 = vpack.c.b16 %v859, %v853
        %v1208 = vpack.c.b16 %v860, %v854
        %v1209 = vpack.c.b16 %v861, %v855
        %v1210 = vpack.c.b16 %v868, %v862
        %v1211 = vpack.c.b16 %v869, %v863
        %v1212 = vpack.c.b16 %v870, %v864
        %v1213 = vpack.c.b16 %v871, %v865
        %v1214 = vpack.c.b16 %v872, %v866
        %v1215 = vpack.c.b16 %v873, %v867
        %v1216 = vpack.c.b16 %v880, %v874
        %v1217 = vpack.c.b16 %v881, %v875
        %v1218 = vpack.c.b16 %v882, %v876
        %v1219 = vpack.c.b16 %v883, %v877
        %v1220 = vpack.c.b16 %v884, %v878
        %v1221 = vpack.c.b16 %v885, %v879
        %v1222 = vpack.c.b16 %v892, %v886
        %v1223 = vpack.c.b16 %v893, %v887
        %v1224 = vpack.c.b16 %v894, %v888
        %v1225 = vpack.c.b16 %v895, %v889
        %v1226 = vpack.c.b16 %v896, %v890
        %v1227 = vpack.c.b16 %v897, %v891
        %v1228 = vpack.c.b16 %v904, %v898
        %v1229 = vpack.c.b16 %v905, %v899
        %v1230 = vpack.c.b16 %v906, %v900
        %v1231 = vpack.c.b16 %v907, %v901
        %v1232 = vpack.c.b16 %v908, %v902
        %v1233 = vpack.c.b16 %v909, %v903
        %v1234 = vpack.c.b16 %v916, %v910
        %v1235 = vpack.c.b16 %v917, %v911
        %v1236 = vpack.c.b16 %v918, %v912
        %v1237 = vpack.c.b16 %v919, %v913
        %v1238 = vpack.c.b16 %v920, %v914
        %v1239 = vpack.c.b16 %v921, %v915
        %v1240 = vpack.c.b16 %v928, %v922
        %v1241 = vpack.c.b16 %v929, %v923
        %v1242 = vpack.c.b16 %v930, %v924
        %v1243 = vpack.c.b16 %v931, %v925
        %v1244 = vpack.c.b16 %v932, %v926
        %v1245 = vpack.c.b16 %v933, %v927
        %v1246 = vpack.c.b16 %v940, %v934
        %v1247 = vpack.c.b16 %v941, %v935
        %v1248 = vpack.c.b16 %v942, %v936
        %v1249 = vpack.c.b16 %v943, %v937
        %v1250 = vpack.c.b16 %v944, %v938
        %v1251 = vpack.c.b16 %v945, %v939
        %v1252 = vpack.c.b16 %v952, %v946
        %v1253 = vpack.c.b16 %v953, %v947
        %v1254 = vpack.c.b16 %v954, %v948
        %v1255 = vpack.c.b16 %v955, %v949
        %v1256 = vpack.c.b16 %v956, %v950
        %v1257 = vpack.c.b16 %v957, %v951
        %v1258 = vpack.c.b16 %v964, %v958
        %v1259 = vpack.c.b16 %v965, %v959
        %v1260 = vpack.c.b16 %v966, %v960
        %v1261 = vpack.c.b16 %v967, %v961
        %v1262 = vpack.c.b16 %v968, %v962
        %v1263 = vpack.c.b16 %v969, %v963
        %v1264 = vpack.c.b16 %v976, %v970
        %v1265 = vpack.c.b16 %v977, %v971
        %v1266 = vpack.c.b16 %v978, %v972
        %v1267 = vpack.c.b16 %v979, %v973
        %v1268 = vpack.c.b16 %v980, %v974
        %v1269 = vpack.c.b16 %v981, %v975
        %v1270 = vpack.c.b16 %v988, %v982
        %v1271 = vpack.c.b16 %v989, %v983
        %v1272 = vpack.c.b16 %v990, %v984
        %v1273 = vpack.c.b16 %v991, %v985
        %v1274 = vpack.c.b16 %v992, %v986
        %v1275 = vpack.c.b16 %v993, %v987
        %v1276 = vpack.c.b16 %v1000, %v994
        %v1277 = vpack.c.b16 %v1001, %v995
        %v1278 = vpack.c.b16 %v1002, %v996
        %v1279 = vpack.c.b16 %v1003, %v997
        %v1280 = vpack.c.b16 %v1004, %v998
        %v1281 = vpack.c.b16 %v1005, %v999
        %v1282 = vpack.c.b16 %v1012, %v1006
        %v1283 = vpack.c.b16 %v1013, %v1007
        %v1284 = vpack.c.b16 %v1014, %v1008
        %v1285 = vpack.c.b16 %v1015, %v1009
        %v1286 = vpack.c.b16 %v1016, %v1010
        %v1287 = vpack.c.b16 %v1017, %v1011
        %v1288 = vpack.c.b16 %v1024, %v1018
        %v1289 = vpack.c.b16 %v1025, %v1019
        %v1290 = vpack.c.b16 %v1026, %v1020
        %v1291 = vpack.c.b16 %v1027, %v1021
        %v1292 = vpack.c.b16 %v1028, %v1022
        %v1293 = vpack.c.b16 %v1029, %v1023
        %v1294 = vpack.c.b16 %v1036, %v1030
        %v1295 = vpack.c.b16 %v1037, %v1031
        %v1296 = vpack.c.b16 %v1038, %v1032
        %v1297 = vpack.c.b16 %v1039, %v1033
        %v1298 = vpack.c.b16 %v1040, %v1034
        %v1299 = vpack.c.b16 %v1041, %v1035
        %v1300 = vpack.c.b16 %v1048, %v1042
        %v1301 = vpack.c.b16 %v1049, %v1043
        %v1302 = vpack.c.b16 %v1050, %v1044
        %v1303 = vpack.c.b16 %v1051, %v1045
        %v1304 = vpack.c.b16 %v1052, %v1046
        %v1305 = vpack.c.b16 %v1053, %v1047
        %v1306 = vpack.c.b16 %v1060, %v1054
        %v1307 = vpack.c.b16 %v1061, %v1055
        %v1308 = vpack.c.b16 %v1062, %v1056
        %v1309 = vpack.c.b16 %v1063, %v1057
        %v1310 = vpack.c.b16 %v1064, %v1058
        %v1311 = vpack.c.b16 %v1065, %v1059
        %v1312 = vpack.c.b16 %v1072, %v1066
        %v1313 = vpack.c.b16 %v1073, %v1067
        %v1314 = vpack.c.b16 %v1074, %v1068
        %v1315 = vpack.c.b16 %v1075, %v1069
        %v1316 = vpack.c.b16 %v1076, %v1070
        %v1317 = vpack.c.b16 %v1077, %v1071
        %v1318 = vpack.c.b16 %v1084, %v1078
        %v1319 = vpack.c.b16 %v1085, %v1079
        %v1320 = vpack.c.b16 %v1086, %v1080
        %v1321 = vpack.c.b16 %v1087, %v1081
        %v1322 = vpack.c.b16 %v1088, %v1082
        %v1323 = vpack.c.b16 %v1089, %v1083
        %v1324 = vpack.c.b16 %v1096, %v1090
        %v1325 = vpack.c.b16 %v1097, %v1091
        %v1326 = vpack.c.b16 %v1098, %v1092
        %v1327 = vpack.c.b16 %v1099, %v1093
        %v1328 = vpack.c.b16 %v1100, %v1094
        %v1329 = vpack.c.b16 %v1101, %v1095
        %v1330 = vpack.c.b16 %v1108, %v1102
        %v1331 = vpack.c.b16 %v1109, %v1103
        %v1332 = vpack.c.b16 %v1110, %v1104
        %v1333 = vpack.c.b16 %v1111, %v1105
        %v1334 = vpack.c.b16 %v1112, %v1106
        %v1335 = vpack.c.b16 %v1113, %v1107
        %v1336 = vpack.c.b16 %v1120, %v1114
        %v1337 = vpack.c.b16 %v1121, %v1115
        %v1338 = vpack.c.b16 %v1122, %v1116
        %v1339 = vpack.c.b16 %v1123, %v1117
        %v1340 = vpack.c.b16 %v1124, %v1118
        %v1341 = vpack.c.b16 %v1125, %v1119
        %v1342 = vpack.c.b16 %v1132, %v1126
        %v1343 = vpack.c.b16 %v1133, %v1127
        %v1344 = vpack.c.b16 %v1134, %v1128
        %v1345 = vpack.c.b16 %v1135, %v1129
        %v1346 = vpack.c.b16 %v1136, %v1130
        %v1347 = vpack.c.b16 %v1137, %v1131
        %v1348 = vpack.c.b16 %v1144, %v1138
        %v1349 = vpack.c.b16 %v1145, %v1139
        %v1350 = vpack.c.b16 %v1146, %v1140
        %v1351 = vpack.c.b16 %v1147, %v1141
        %v1352 = vpack.c.b16 %v1148, %v1142
        %v1353 = vpack.c.b16 %v1149, %v1143
        %v1354 = vpack.c.b16 %v1156, %v1150
        %v1355 = vpack.c.b16 %v1157, %v1151
        %v1356 = vpack.c.b16 %v1158, %v1152
        %v1357 = vpack.c.b16 %v1159, %v1153
        %v1358 = vpack.c.b16 %v1160, %v1154
        %v1359 = vpack.c.b16 %v1161, %v1155
        %v1360 = vpack.c.b16 %v1168, %v1162
        %v1361 = vpack.c.b16 %v1169, %v1163
        %v1362 = vpack.c.b16 %v1170, %v1164
        %v1363 = vpack.c.b16 %v1171, %v1165
        %v1364 = vpack.c.b16 %v1172, %v1166
        %v1365 = vpack.c.b16 %v1173, %v1167
        %1558 = vmatprep.subr.bf16.mxu0 %v1217
        %1559 = vmatpush1.bf16.msra.mxu0 %v1216
        %1560 = vmatprep.subr.bf16.mxu0 %v1211
        %1561 = vmatpush1.bf16.msra.mxu0 %v1210
        %1562 = vmatprep.subr.bf16.mxu0 %v1205
        %1563 = vmatpush1.bf16.msra.mxu0 %v1204
        %1564 = vmatprep.subr.bf16.mxu0 %v1199
        %1565 = vmatpush1.bf16.msra.mxu0 %v1198
        %1566 = vmatprep.subr.bf16.mxu0 %v1193
        %1567 = vmatpush1.bf16.msra.mxu0 %v1192
        %1568 = vmatprep.subr.bf16.mxu0 %v1187
        %1569 = vmatpush1.bf16.msra.mxu0 %v1186
        %1570 = vmatprep.subr.bf16.mxu0 %v1181
        %1571 = vmatpush1.bf16.msra.mxu0 %v1180
        %1572 = vmatprep.subr.bf16.mxu0 %v1175
        %1573 = vmatpush1.bf16.msra.mxu0 %v1174
        %1574 = vmatprep.subr.bf16.mxu0 %v1265
        %1575 = vmatpush2.bf16.msra.mxu0 %v1264
        %1576 = vmatprep.subr.bf16.mxu0 %v1259
        %1577 = vmatpush2.bf16.msra.mxu0 %v1258
        %1578 = vmatprep.subr.bf16.mxu0 %v1253
        %1579 = vmatpush2.bf16.msra.mxu0 %v1252
        %1580 = vmatprep.subr.bf16.mxu0 %v1247
        %1581 = vmatpush2.bf16.msra.mxu0 %v1246
        %1582 = vmatprep.subr.bf16.mxu0 %v1241
        %1583 = vmatpush2.bf16.msra.mxu0 %v1240
        %1584 = vmatprep.subr.bf16.mxu0 %v1235
        %1585 = vmatpush2.bf16.msra.mxu0 %v1234
        %1586 = vmatprep.subr.bf16.mxu0 %v1229
        %1587 = vmatpush2.bf16.msra.mxu0 %v1228
        %1588 = vmatprep.subr.bf16.mxu0 %v1223
        %1589 = vmatpush2.bf16.msra.mxu0 %v1222
        %1590 = vmatprep.mubr.bf16.mxu0 %v399
        %1591 = vmatmul.mubr.bf16.gmra.mxu0 %v398
        %v1592 = vpop.f32.mrf.mxu0
        %v1593 = vadd.f32 0.0, %v1592
        %v1594 = vpop.f32.mrf.mxu0
        %v1595 = vadd.f32 0.0, %v1594
        %v1596 = vpop.f32.mrf.mxu0
        %v1597 = vadd.f32 0.0, %v1596
        %v1598 = vpop.f32.mrf.mxu0
        %v1599 = vadd.f32 0.0, %v1598
        %1600 = vmatprep.mubr.bf16.mxu0 %v403
        %1601 = vmatmul.mubr.bf16.gmra.mxu0 %v402
        %v1602 = vpop.f32.mrf.mxu0
        %v1603 = vadd.f32 0.0, %v1602
        %v1604 = vpop.f32.mrf.mxu0
        %v1605 = vadd.f32 0.0, %v1604
        %v1606 = vpop.f32.mrf.mxu0
        %v1607 = vpop.f32.mrf.mxu0
        %1608 = vdwg.mxu0
        %1609 = vmatprep.subr.bf16.mxu0 %v1313
        %1610 = vmatpush1.bf16.msra.mxu0 %v1312
        %1611 = vmatprep.subr.bf16.mxu0 %v1307
        %1612 = vmatpush1.bf16.msra.mxu0 %v1306
        %1613 = vmatprep.subr.bf16.mxu0 %v1301
        %1614 = vmatpush1.bf16.msra.mxu0 %v1300
        %1615 = vmatprep.subr.bf16.mxu0 %v1295
        %1616 = vmatpush1.bf16.msra.mxu0 %v1294
        %1617 = vmatprep.subr.bf16.mxu0 %v1289
        %1618 = vmatpush1.bf16.msra.mxu0 %v1288
        %1619 = vmatprep.subr.bf16.mxu0 %v1283
        %1620 = vmatpush1.bf16.msra.mxu0 %v1282
        %1621 = vmatprep.subr.bf16.mxu0 %v1277
        %1622 = vmatpush1.bf16.msra.mxu0 %v1276
        %1623 = vmatprep.subr.bf16.mxu0 %v1271
        %1624 = vmatpush1.bf16.msra.mxu0 %v1270
        %1625 = vmatprep.subr.bf16.mxu0 %v1361
        %1626 = vmatpush2.bf16.msra.mxu0 %v1360
        %1627 = vmatprep.subr.bf16.mxu0 %v1355
        %1628 = vmatpush2.bf16.msra.mxu0 %v1354
        %1629 = vmatprep.subr.bf16.mxu0 %v1349
        %1630 = vmatpush2.bf16.msra.mxu0 %v1348
        %1631 = vmatprep.subr.bf16.mxu0 %v1343
        %1632 = vmatpush2.bf16.msra.mxu0 %v1342
        %1633 = vmatprep.subr.bf16.mxu0 %v1337
        %1634 = vmatpush2.bf16.msra.mxu0 %v1336
        %1635 = vmatprep.subr.bf16.mxu0 %v1331
        %1636 = vmatpush2.bf16.msra.mxu0 %v1330
        %1637 = vmatprep.subr.bf16.mxu0 %v1325
        %1638 = vmatpush2.bf16.msra.mxu0 %v1324
        %1639 = vmatprep.subr.bf16.mxu0 %v1319
        %1640 = vmatpush2.bf16.msra.mxu0 %v1318
        %1641 = vmatprep.mubr.bf16.mxu0 %v401
        %1642 = vmatmul.mubr.bf16.gmra.mxu0 %v400
        %v1643 = vpop.f32.mrf.mxu0
        %v1644 = vadd.f32 %v1593, %v1643
        %v1645 = vpop.f32.mrf.mxu0
        %v1646 = vadd.f32 %v1595, %v1645
        %v1647 = vpop.f32.mrf.mxu0
        %v1648 = vadd.f32 %v1597, %v1647
        %v1649 = vpop.f32.mrf.mxu0
        %v1650 = vadd.f32 %v1599, %v1649
        %1651 = vmatprep.mubr.bf16.mxu0 %v405
        %1652 = vmatmul.mubr.bf16.gmra.mxu0 %v404
        %v1653 = vpop.f32.mrf.mxu0
        %v1654 = vadd.f32 %v1603, %v1653
        %v1655 = vpop.f32.mrf.mxu0
        %v1656 = vadd.f32 %v1605, %v1655
        %v1657 = vpop.f32.mrf.mxu0
        %v1658 = vpop.f32.mrf.mxu0
        %1659 = vdwg.mxu0
        %1660 = vmatprep.subr.bf16.mxu0 %v1219
        %1661 = vmatpush1.bf16.msra.mxu0 %v1218
        %1662 = vmatprep.subr.bf16.mxu0 %v1213
        %1663 = vmatpush1.bf16.msra.mxu0 %v1212
        %1664 = vmatprep.subr.bf16.mxu0 %v1207
        %1665 = vmatpush1.bf16.msra.mxu0 %v1206
        %1666 = vmatprep.subr.bf16.mxu0 %v1201
        %1667 = vmatpush1.bf16.msra.mxu0 %v1200
        %1668 = vmatprep.subr.bf16.mxu0 %v1195
        %1669 = vmatpush1.bf16.msra.mxu0 %v1194
        %1670 = vmatprep.subr.bf16.mxu0 %v1189
        %1671 = vmatpush1.bf16.msra.mxu0 %v1188
        %1672 = vmatprep.subr.bf16.mxu0 %v1183
        %1673 = vmatpush1.bf16.msra.mxu0 %v1182
        %1674 = vmatprep.subr.bf16.mxu0 %v1177
        %1675 = vmatpush1.bf16.msra.mxu0 %v1176
        %1676 = vmatprep.subr.bf16.mxu0 %v1267
        %1677 = vmatpush2.bf16.msra.mxu0 %v1266
        %1678 = vmatprep.subr.bf16.mxu0 %v1261
        %1679 = vmatpush2.bf16.msra.mxu0 %v1260
        %1680 = vmatprep.subr.bf16.mxu0 %v1255
        %1681 = vmatpush2.bf16.msra.mxu0 %v1254
        %1682 = vmatprep.subr.bf16.mxu0 %v1249
        %1683 = vmatpush2.bf16.msra.mxu0 %v1248
        %1684 = vmatprep.subr.bf16.mxu0 %v1243
        %1685 = vmatpush2.bf16.msra.mxu0 %v1242
        %1686 = vmatprep.subr.bf16.mxu0 %v1237
        %1687 = vmatpush2.bf16.msra.mxu0 %v1236
        %1688 = vmatprep.subr.bf16.mxu0 %v1231
        %1689 = vmatpush2.bf16.msra.mxu0 %v1230
        %1690 = vmatprep.subr.bf16.mxu0 %v1225
        %1691 = vmatpush2.bf16.msra.mxu0 %v1224
        %1692 = vmatprep.mubr.bf16.mxu0 %v399
        %1693 = vmatmul.mubr.bf16.gmra.mxu0 %v398
        %v1694 = vpop.f32.mrf.mxu0
        %v1695 = vadd.f32 0.0, %v1694
        %v1696 = vpop.f32.mrf.mxu0
        %v1697 = vadd.f32 0.0, %v1696
        %v1698 = vpop.f32.mrf.mxu0
        %v1699 = vadd.f32 0.0, %v1698
        %v1700 = vpop.f32.mrf.mxu0
        %v1701 = vadd.f32 0.0, %v1700
        %1702 = vmatprep.mubr.bf16.mxu0 %v403
        %1703 = vmatmul.mubr.bf16.gmra.mxu0 %v402
        %v1704 = vpop.f32.mrf.mxu0
        %v1705 = vadd.f32 0.0, %v1704
        %v1706 = vpop.f32.mrf.mxu0
        %v1707 = vadd.f32 0.0, %v1706
        %v1708 = vpop.f32.mrf.mxu0
        %v1709 = vpop.f32.mrf.mxu0
        %1710 = vdwg.mxu0
        %1711 = vmatprep.subr.bf16.mxu0 %v1315
        %1712 = vmatpush1.bf16.msra.mxu0 %v1314
        %1713 = vmatprep.subr.bf16.mxu0 %v1309
        %1714 = vmatpush1.bf16.msra.mxu0 %v1308
        %1715 = vmatprep.subr.bf16.mxu0 %v1303
        %1716 = vmatpush1.bf16.msra.mxu0 %v1302
        %1717 = vmatprep.subr.bf16.mxu0 %v1297
        %1718 = vmatpush1.bf16.msra.mxu0 %v1296
        %1719 = vmatprep.subr.bf16.mxu0 %v1291
        %1720 = vmatpush1.bf16.msra.mxu0 %v1290
        %1721 = vmatprep.subr.bf16.mxu0 %v1285
        %1722 = vmatpush1.bf16.msra.mxu0 %v1284
        %1723 = vmatprep.subr.bf16.mxu0 %v1279
        %1724 = vmatpush1.bf16.msra.mxu0 %v1278
        %1725 = vmatprep.subr.bf16.mxu0 %v1273
        %1726 = vmatpush1.bf16.msra.mxu0 %v1272
        %1727 = vmatprep.subr.bf16.mxu0 %v1363
        %1728 = vmatpush2.bf16.msra.mxu0 %v1362
        %1729 = vmatprep.subr.bf16.mxu0 %v1357
        %1730 = vmatpush2.bf16.msra.mxu0 %v1356
        %1731 = vmatprep.subr.bf16.mxu0 %v1351
        %1732 = vmatpush2.bf16.msra.mxu0 %v1350
        %1733 = vmatprep.subr.bf16.mxu0 %v1345
        %1734 = vmatpush2.bf16.msra.mxu0 %v1344
        %1735 = vmatprep.subr.bf16.mxu0 %v1339
        %1736 = vmatpush2.bf16.msra.mxu0 %v1338
        %1737 = vmatprep.subr.bf16.mxu0 %v1333
        %1738 = vmatpush2.bf16.msra.mxu0 %v1332
        %1739 = vmatprep.subr.bf16.mxu0 %v1327
        %1740 = vmatpush2.bf16.msra.mxu0 %v1326
        %1741 = vmatprep.subr.bf16.mxu0 %v1321
        %1742 = vmatpush2.bf16.msra.mxu0 %v1320
        %1743 = vmatprep.mubr.bf16.mxu0 %v401
        %1744 = vmatmul.mubr.bf16.gmra.mxu0 %v400
        %v1745 = vpop.f32.mrf.mxu0
        %v1746 = vadd.f32 %v1695, %v1745
        %v1747 = vpop.f32.mrf.mxu0
        %v1748 = vadd.f32 %v1697, %v1747
        %v1749 = vpop.f32.mrf.mxu0
        %v1750 = vadd.f32 %v1699, %v1749
        %v1751 = vpop.f32.mrf.mxu0
        %v1752 = vadd.f32 %v1701, %v1751
        %1753 = vmatprep.mubr.bf16.mxu0 %v405
        %1754 = vmatmul.mubr.bf16.gmra.mxu0 %v404
        %v1755 = vpop.f32.mrf.mxu0
        %v1756 = vadd.f32 %v1705, %v1755
        %v1757 = vpop.f32.mrf.mxu0
        %v1758 = vadd.f32 %v1707, %v1757
        %v1759 = vpop.f32.mrf.mxu0
        %v1760 = vpop.f32.mrf.mxu0
        %1761 = vdwg.mxu0
        %1762 = vmatprep.subr.bf16.mxu0 %v1221
        %1763 = vmatpush1.bf16.msra.mxu0 %v1220
        %1764 = vmatprep.subr.bf16.mxu0 %v1215
        %1765 = vmatpush1.bf16.msra.mxu0 %v1214
        %1766 = vmatprep.subr.bf16.mxu0 %v1209
        %1767 = vmatpush1.bf16.msra.mxu0 %v1208
        %1768 = vmatprep.subr.bf16.mxu0 %v1203
        %1769 = vmatpush1.bf16.msra.mxu0 %v1202
        %1770 = vmatprep.subr.bf16.mxu0 %v1197
        %1771 = vmatpush1.bf16.msra.mxu0 %v1196
        %1772 = vmatprep.subr.bf16.mxu0 %v1191
        %1773 = vmatpush1.bf16.msra.mxu0 %v1190
        %1774 = vmatprep.subr.bf16.mxu0 %v1185
        %1775 = vmatpush1.bf16.msra.mxu0 %v1184
        %1776 = vmatprep.subr.bf16.mxu0 %v1179
        %1777 = vmatpush1.bf16.msra.mxu0 %v1178
        %1778 = vmatprep.subr.bf16.mxu0 %v1269
        %1779 = vmatpush2.bf16.msra.mxu0 %v1268
        %1780 = vmatprep.subr.bf16.mxu0 %v1263
        %1781 = vmatpush2.bf16.msra.mxu0 %v1262
        %1782 = vmatprep.subr.bf16.mxu0 %v1257
        %1783 = vmatpush2.bf16.msra.mxu0 %v1256
        %1784 = vmatprep.subr.bf16.mxu0 %v1251
        %1785 = vmatpush2.bf16.msra.mxu0 %v1250
        %1786 = vmatprep.subr.bf16.mxu0 %v1245
        %1787 = vmatpush2.bf16.msra.mxu0 %v1244
        %1788 = vmatprep.subr.bf16.mxu0 %v1239
        %1789 = vmatpush2.bf16.msra.mxu0 %v1238
        %1790 = vmatprep.subr.bf16.mxu0 %v1233
        %1791 = vmatpush2.bf16.msra.mxu0 %v1232
        %1792 = vmatprep.subr.bf16.mxu0 %v1227
        %1793 = vmatpush2.bf16.msra.mxu0 %v1226
        %1794 = vmatprep.mubr.bf16.mxu0 %v399
        %1795 = vmatmul.mubr.bf16.gmra.mxu0 %v398
        %v1796 = vpop.f32.mrf.mxu0
        %v1797 = vadd.f32 0.0, %v1796
        %v1798 = vpop.f32.mrf.mxu0
        %v1799 = vadd.f32 0.0, %v1798
        %v1800 = vpop.f32.mrf.mxu0
        %v1801 = vadd.f32 0.0, %v1800
        %v1802 = vpop.f32.mrf.mxu0
        %v1803 = vadd.f32 0.0, %v1802
        %1804 = vmatprep.mubr.bf16.mxu0 %v403
        %1805 = vmatmul.mubr.bf16.gmra.mxu0 %v402
        %v1806 = vpop.f32.mrf.mxu0
        %v1807 = vadd.f32 0.0, %v1806
        %v1808 = vpop.f32.mrf.mxu0
        %v1809 = vadd.f32 0.0, %v1808
        %v1810 = vpop.f32.mrf.mxu0
        %v1811 = vpop.f32.mrf.mxu0
        %1812 = vdwg.mxu0
        %1813 = vmatprep.subr.bf16.mxu0 %v1317
        %1814 = vmatpush1.bf16.msra.mxu0 %v1316
        %1815 = vmatprep.subr.bf16.mxu0 %v1311
        %1816 = vmatpush1.bf16.msra.mxu0 %v1310
        %1817 = vmatprep.subr.bf16.mxu0 %v1305
        %1818 = vmatpush1.bf16.msra.mxu0 %v1304
        %1819 = vmatprep.subr.bf16.mxu0 %v1299
        %1820 = vmatpush1.bf16.msra.mxu0 %v1298
        %1821 = vmatprep.subr.bf16.mxu0 %v1293
        %1822 = vmatpush1.bf16.msra.mxu0 %v1292
        %1823 = vmatprep.subr.bf16.mxu0 %v1287
        %1824 = vmatpush1.bf16.msra.mxu0 %v1286
        %1825 = vmatprep.subr.bf16.mxu0 %v1281
        %1826 = vmatpush1.bf16.msra.mxu0 %v1280
        %1827 = vmatprep.subr.bf16.mxu0 %v1275
        %1828 = vmatpush1.bf16.msra.mxu0 %v1274
        %1829 = vmatprep.subr.bf16.mxu0 %v1365
        %1830 = vmatpush2.bf16.msra.mxu0 %v1364
        %1831 = vmatprep.subr.bf16.mxu0 %v1359
        %1832 = vmatpush2.bf16.msra.mxu0 %v1358
        %1833 = vmatprep.subr.bf16.mxu0 %v1353
        %1834 = vmatpush2.bf16.msra.mxu0 %v1352
        %1835 = vmatprep.subr.bf16.mxu0 %v1347
        %1836 = vmatpush2.bf16.msra.mxu0 %v1346
        %1837 = vmatprep.subr.bf16.mxu0 %v1341
        %1838 = vmatpush2.bf16.msra.mxu0 %v1340
        %1839 = vmatprep.subr.bf16.mxu0 %v1335
        %1840 = vmatpush2.bf16.msra.mxu0 %v1334
        %1841 = vmatprep.subr.bf16.mxu0 %v1329
        %1842 = vmatpush2.bf16.msra.mxu0 %v1328
        %1843 = vmatprep.subr.bf16.mxu0 %v1323
        %1844 = vmatpush2.bf16.msra.mxu0 %v1322
        %1845 = vmatprep.mubr.bf16.mxu0 %v401
        %1846 = vmatmul.mubr.bf16.gmra.mxu0 %v400
        %v1847 = vpop.f32.mrf.mxu0
        %v1848 = vadd.f32 %v1797, %v1847
        %v1849 = vpop.f32.mrf.mxu0
        %v1850 = vadd.f32 %v1799, %v1849
        %v1851 = vpop.f32.mrf.mxu0
        %v1852 = vadd.f32 %v1801, %v1851
        %v1853 = vpop.f32.mrf.mxu0
        %v1854 = vadd.f32 %v1803, %v1853
        %1855 = vmatprep.mubr.bf16.mxu0 %v405
        %1856 = vmatmul.mubr.bf16.gmra.mxu0 %v404
        %v1857 = vpop.f32.mrf.mxu0
        %v1858 = vadd.f32 %v1807, %v1857
        %v1859 = vpop.f32.mrf.mxu0
        %v1860 = vadd.f32 %v1809, %v1859
        %v1861 = vpop.f32.mrf.mxu0
        %v1862 = vpop.f32.mrf.mxu0
        %1863 = vdwg.mxu0
        %v1864 = vmul.f32 %v1644, %v1644
        %v1865 = vmul.f32 %v1646, %v1646
        %v1866 = vmul.f32 %v1746, %v1746
        %v1867 = vmul.f32 %v1648, %v1648
        %v1868 = vmul.f32 %v1650, %v1650
        %v1869 = vmul.f32 %v1750, %v1750
        %v1870 = vmul.f32 %v1654, %v1654
        %v1871 = vmul.f32 %v1656, %v1656
        %v1872 = vmul.f32 %v1756, %v1756
        %v1873 = vmul.f32 %v1748, %v1748
        %v1874 = vmul.f32 %v1848, %v1848
        %v1875 = vmul.f32 %v1850, %v1850
        %v1876 = vmul.f32 %v1752, %v1752
        %v1877 = vmul.f32 %v1852, %v1852
        %v1878 = vmul.f32 %v1854, %v1854
        %v1879 = vmul.f32 %v1758, %v1758
        %v1880 = vmul.f32 %v1858, %v1858
        %v1881 = vmul.f32 %v1860, %v1860
        %v1882 = vadd.f32 %v1864, %v1873
        %v1883 = vadd.f32 %v1865, %v1874
        %v1884 = vadd.f32 %v1866, %v1875
        %v1885 = vadd.f32 %v1867, %v1876
        %v1886 = vadd.f32 %v1868, %v1877
        %v1887 = vadd.f32 %v1869, %v1878
        %v1888 = vadd.f32 %v1870, %v1879
        %v1889 = vadd.f32 %v1871, %v1880
        %v1890 = vadd.f32 %v1872, %v1881
        %v1891 = vadd.f32 %v1882, 1e-08
        %v1892 = vadd.f32 %v1883, 1e-08
        %v1893 = vadd.f32 %v1884, 1e-08
        %v1894 = vadd.f32 %v1885, 1e-08
        %v1895 = vadd.f32 %v1886, 1e-08
        %v1896 = vadd.f32 %v1887, 1e-08
        %v1897 = vadd.f32 %v1888, 1e-08
        %v1898 = vadd.f32 %v1889, 1e-08
        %v1899 = vadd.f32 %v1890, 1e-08
        %v1900 = vrsqrt.pop %v1891
        %v1901 = vmul.f32 %v1891, %v1900
        %vm1902 = vcmp.eq.f32.partialorder %v1891, inf
        %v1903 = vsel %vm1902, %v1891, %v1901
        %vm1904 = vcmp.eq.f32.partialorder %v1891, 0.0
        %v1905 = vand.u32 %v1891, 2147483648
        %v1906 = vsel %vm1904, %v1905, %v1903
        %v1907 = vrsqrt.pop %v1892
        %v1908 = vmul.f32 %v1892, %v1907
        %vm1909 = vcmp.eq.f32.partialorder %v1892, inf
        %v1910 = vsel %vm1909, %v1892, %v1908
        %vm1911 = vcmp.eq.f32.partialorder %v1892, 0.0
        %v1912 = vand.u32 %v1892, 2147483648
        %v1913 = vsel %vm1911, %v1912, %v1910
        %v1914 = vrsqrt.pop %v1893
        %v1915 = vmul.f32 %v1893, %v1914
        %vm1916 = vcmp.eq.f32.partialorder %v1893, inf
        %v1917 = vsel %vm1916, %v1893, %v1915
        %vm1918 = vcmp.eq.f32.partialorder %v1893, 0.0
        %v1919 = vand.u32 %v1893, 2147483648
        %v1920 = vsel %vm1918, %v1919, %v1917
        %v1921 = vrsqrt.pop %v1894
        %v1922 = vmul.f32 %v1894, %v1921
        %vm1923 = vcmp.eq.f32.partialorder %v1894, inf
        %v1924 = vsel %vm1923, %v1894, %v1922
        %vm1925 = vcmp.eq.f32.partialorder %v1894, 0.0
        %v1926 = vand.u32 %v1894, 2147483648
        %v1927 = vsel %vm1925, %v1926, %v1924
        %v1928 = vrsqrt.pop %v1895
        %v1929 = vmul.f32 %v1895, %v1928
        %vm1930 = vcmp.eq.f32.partialorder %v1895, inf
        %v1931 = vsel %vm1930, %v1895, %v1929
        %vm1932 = vcmp.eq.f32.partialorder %v1895, 0.0
        %v1933 = vand.u32 %v1895, 2147483648
        %v1934 = vsel %vm1932, %v1933, %v1931
        %v1935 = vrsqrt.pop %v1896
        %v1936 = vmul.f32 %v1896, %v1935
        %vm1937 = vcmp.eq.f32.partialorder %v1896, inf
        %v1938 = vsel %vm1937, %v1896, %v1936
        %vm1939 = vcmp.eq.f32.partialorder %v1896, 0.0
        %v1940 = vand.u32 %v1896, 2147483648
        %v1941 = vsel %vm1939, %v1940, %v1938
        %v1942 = vrsqrt.pop %v1897
        %v1943 = vmul.f32 %v1897, %v1942
        %vm1944 = vcmp.eq.f32.partialorder %v1897, inf
        %v1945 = vsel %vm1944, %v1897, %v1943
        %vm1946 = vcmp.eq.f32.partialorder %v1897, 0.0
        %v1947 = vand.u32 %v1897, 2147483648
        %v1948 = vsel %vm1946, %v1947, %v1945
        %v1949 = vrsqrt.pop %v1898
        %v1950 = vmul.f32 %v1898, %v1949
        %vm1951 = vcmp.eq.f32.partialorder %v1898, inf
        %v1952 = vsel %vm1951, %v1898, %v1950
        %vm1953 = vcmp.eq.f32.partialorder %v1898, 0.0
        %v1954 = vand.u32 %v1898, 2147483648
        %v1955 = vsel %vm1953, %v1954, %v1952
        %v1956 = vrsqrt.pop %v1899
        %v1957 = vmul.f32 %v1899, %v1956
        %vm1958 = vcmp.eq.f32.partialorder %v1899, inf
        %v1959 = vsel %vm1958, %v1899, %v1957
        %vm1960 = vcmp.eq.f32.partialorder %v1899, 0.0
        %v1961 = vand.u32 %v1899, 2147483648
        %v1962 = vsel %vm1960, %v1961, %v1959
        %v1963 = vpack.c.bf16 %v1927, %v1906
        %v1964 = vpack.c.bf16 %v1934, %v1913
        %v1965 = vpack.c.bf16 %v1941, %v1920
        %v1966 = vpack.c.bf16 %v1948, %v1948
        %v1967 = vpack.c.bf16 %v1955, %v1955
        %v1968 = vpack.c.bf16 %v1962, %v1962
        %v1969 = vld [vmem:[#allocation2] sm:$0xff]
        %v1970 = vld [vmem:[#allocation2 + $0x8] sm:$0xf]
        %v1971 = vld [vmem:[#allocation2 + $0xc] sm:$0xff]
        %v1972 = vld [vmem:[#allocation2 + $0x14] sm:$0xf]
        %v1973 = vld [vmem:[#allocation2 + $0x18] sm:$0xff]
        %v1974 = vld [vmem:[#allocation2 + $0x20] sm:$0xf]
        %v1975 = vld [vmem:[#allocation2 + $0x24] sm:$0xff]
        %v1976 = vld [vmem:[#allocation2 + $0x2c] sm:$0xf]
        %v1977 = vld [vmem:[#allocation2 + $0x30] sm:$0xff]
        %v1978 = vld [vmem:[#allocation2 + $0x38] sm:$0xf]
        %v1979 = vld [vmem:[#allocation2 + $0x3c] sm:$0xff]
        %v1980 = vld [vmem:[#allocation2 + $0x44] sm:$0xf]
        %v1981 = vld [vmem:[#allocation2 + $0x48] sm:$0xff]
        %v1982 = vld [vmem:[#allocation2 + $0x50] sm:$0xf]
        %v1983 = vld [vmem:[#allocation2 + $0x54] sm:$0xff]
        %v1984 = vld [vmem:[#allocation2 + $0x5c] sm:$0xf]
        %v1985 = vld [vmem:[#allocation2 + $0x60] sm:$0xff]
        %v1986 = vld [vmem:[#allocation2 + $0x68] sm:$0xf]
        %v1987 = vld [vmem:[#allocation2 + $0x6c] sm:$0xff]
        %v1988 = vld [vmem:[#allocation2 + $0x74] sm:$0xf]
        %v1989 = vld [vmem:[#allocation2 + $0x78] sm:$0xff]
        %v1990 = vld [vmem:[#allocation2 + $0x80] sm:$0xf]
        %v1991 = vld [vmem:[#allocation2 + $0x84] sm:$0xff]
        %v1992 = vld [vmem:[#allocation2 + $0x8c] sm:$0xf]
        %v1993 = vld [vmem:[#allocation2 + $0x90] sm:$0xff]
        %v1994 = vld [vmem:[#allocation2 + $0x98] sm:$0xf]
        %v1995 = vld [vmem:[#allocation2 + $0x9c] sm:$0xff]
        %v1996 = vld [vmem:[#allocation2 + $0xa4] sm:$0xf]
        %v1997 = vld [vmem:[#allocation2 + $0xa8] sm:$0xff]
        %v1998 = vld [vmem:[#allocation2 + $0xb0] sm:$0xf]
        %v1999 = vld [vmem:[#allocation2 + $0xb4] sm:$0xff]
        %v2000 = vld [vmem:[#allocation2 + $0xbc] sm:$0xf]
        %v2001 = vld [vmem:[#allocation2 + $0xc0] sm:$0xff]
        %v2002 = vld [vmem:[#allocation2 + $0xc8] sm:$0xf]
        %v2003 = vld [vmem:[#allocation2 + $0xcc] sm:$0xff]
        %v2004 = vld [vmem:[#allocation2 + $0xd4] sm:$0xf]
        %v2005 = vld [vmem:[#allocation2 + $0xd8] sm:$0xff]
        %v2006 = vld [vmem:[#allocation2 + $0xe0] sm:$0xf]
        %v2007 = vld [vmem:[#allocation2 + $0xe4] sm:$0xff]
        %v2008 = vld [vmem:[#allocation2 + $0xec] sm:$0xf]
        %v2009 = vld [vmem:[#allocation2 + $0xf0] sm:$0xff]
        %v2010 = vld [vmem:[#allocation2 + $0xf8] sm:$0xf]
        %v2011 = vld [vmem:[#allocation2 + $0xfc] sm:$0xff]
        %v2012 = vld [vmem:[#allocation2 + $0x104] sm:$0xf]
        %v2013 = vld [vmem:[#allocation2 + $0x108] sm:$0xff]
        %v2014 = vld [vmem:[#allocation2 + $0x110] sm:$0xf]
        %v2015 = vld [vmem:[#allocation2 + $0x114] sm:$0xff]
        %v2016 = vld [vmem:[#allocation2 + $0x11c] sm:$0xf]
        %v2017 = vld [vmem:[#allocation2 + $0x120] sm:$0xff]
        %v2018 = vld [vmem:[#allocation2 + $0x128] sm:$0xf]
        %v2019 = vld [vmem:[#allocation2 + $0x12c] sm:$0xff]
        %v2020 = vld [vmem:[#allocation2 + $0x134] sm:$0xf]
        %v2021 = vld [vmem:[#allocation2 + $0x138] sm:$0xff]
        %v2022 = vld [vmem:[#allocation2 + $0x140] sm:$0xf]
        %v2023 = vld [vmem:[#allocation2 + $0x144] sm:$0xff]
        %v2024 = vld [vmem:[#allocation2 + $0x14c] sm:$0xf]
        %v2025 = vld [vmem:[#allocation2 + $0x150] sm:$0xff]
        %v2026 = vld [vmem:[#allocation2 + $0x158] sm:$0xf]
        %v2027 = vld [vmem:[#allocation2 + $0x15c] sm:$0xff]
        %v2028 = vld [vmem:[#allocation2 + $0x164] sm:$0xf]
        %v2029 = vld [vmem:[#allocation2 + $0x168] sm:$0xff]
        %v2030 = vld [vmem:[#allocation2 + $0x170] sm:$0xf]
        %v2031 = vld [vmem:[#allocation2 + $0x174] sm:$0xff]
        %v2032 = vld [vmem:[#allocation2 + $0x17c] sm:$0xf]
        %v2033 = vld [vmem:[#allocation2 + $0x180] sm:$0xff]
        %v2034 = vld [vmem:[#allocation2 + $0x188] sm:$0xf]
        %v2035 = vld [vmem:[#allocation2 + $0x18c] sm:$0xff]
        %v2036 = vld [vmem:[#allocation2 + $0x194] sm:$0xf]
        %v2037 = vld [vmem:[#allocation2 + $0x198] sm:$0xff]
        %v2038 = vld [vmem:[#allocation2 + $0x1a0] sm:$0xf]
        %v2039 = vld [vmem:[#allocation2 + $0x1a4] sm:$0xff]
        %v2040 = vld [vmem:[#allocation2 + $0x1ac] sm:$0xf]
        %v2041 = vld [vmem:[#allocation2 + $0x1b0] sm:$0xff]
        %v2042 = vld [vmem:[#allocation2 + $0x1b8] sm:$0xf]
        %v2043 = vld [vmem:[#allocation2 + $0x1bc] sm:$0xff]
        %v2044 = vld [vmem:[#allocation2 + $0x1c4] sm:$0xf]
        %v2045 = vld [vmem:[#allocation2 + $0x1c8] sm:$0xff]
        %v2046 = vld [vmem:[#allocation2 + $0x1d0] sm:$0xf]
        %v2047 = vld [vmem:[#allocation2 + $0x1d4] sm:$0xff]
        %v2048 = vld [vmem:[#allocation2 + $0x1dc] sm:$0xf]
        %v2049 = vld [vmem:[#allocation2 + $0x1e0] sm:$0xff]
        %v2050 = vld [vmem:[#allocation2 + $0x1e8] sm:$0xf]
        %v2051 = vld [vmem:[#allocation2 + $0x1ec] sm:$0xff]
        %v2052 = vld [vmem:[#allocation2 + $0x1f4] sm:$0xf]
        %v2053 = vld [vmem:[#allocation2 + $0x1f8] sm:$0xff]
        %v2054 = vld [vmem:[#allocation2 + $0x200] sm:$0xf]
        %v2055 = vld [vmem:[#allocation2 + $0x204] sm:$0xff]
        %v2056 = vld [vmem:[#allocation2 + $0x20c] sm:$0xf]
        %v2057 = vld [vmem:[#allocation2 + $0x210] sm:$0xff]
        %v2058 = vld [vmem:[#allocation2 + $0x218] sm:$0xf]
        %v2059 = vld [vmem:[#allocation2 + $0x21c] sm:$0xff]
        %v2060 = vld [vmem:[#allocation2 + $0x224] sm:$0xf]
        %v2061 = vld [vmem:[#allocation2 + $0x228] sm:$0xff]
        %v2062 = vld [vmem:[#allocation2 + $0x230] sm:$0xf]
        %v2063 = vld [vmem:[#allocation2 + $0x234] sm:$0xff]
        %v2064 = vld [vmem:[#allocation2 + $0x23c] sm:$0xf]
        %v2161 = vunpack.c.l.b16 %v1969
        %v2162 = vunpack.c.h.b16 %v1969
        %v2163 = vunpack.c.l.b16 %v1970
        %v2164 = vunpack.c.l.b16 %v1971
        %v2165 = vunpack.c.h.b16 %v1971
        %v2166 = vunpack.c.l.b16 %v1972
        %v2167 = vunpack.c.l.b16 %v1973
        %v2168 = vunpack.c.h.b16 %v1973
        %v2169 = vunpack.c.l.b16 %v1974
        %v2170 = vunpack.c.l.b16 %v1975
        %v2171 = vunpack.c.h.b16 %v1975
        %v2172 = vunpack.c.l.b16 %v1976
        %v2173 = vunpack.c.l.b16 %v1977
        %v2174 = vunpack.c.h.b16 %v1977
        %v2175 = vunpack.c.l.b16 %v1978
        %v2176 = vunpack.c.l.b16 %v1979
        %v2177 = vunpack.c.h.b16 %v1979
        %v2178 = vunpack.c.l.b16 %v1980
        %v2179 = vunpack.c.l.b16 %v1981
        %v2180 = vunpack.c.h.b16 %v1981
        %v2181 = vunpack.c.l.b16 %v1982
        %v2182 = vunpack.c.l.b16 %v1983
        %v2183 = vunpack.c.h.b16 %v1983
        %v2184 = vunpack.c.l.b16 %v1984
        %v2185 = vunpack.c.l.b16 %v1985
        %v2186 = vunpack.c.h.b16 %v1985
        %v2187 = vunpack.c.l.b16 %v1986
        %v2188 = vunpack.c.l.b16 %v1987
        %v2189 = vunpack.c.h.b16 %v1987
        %v2190 = vunpack.c.l.b16 %v1988
        %v2191 = vunpack.c.l.b16 %v1989
        %v2192 = vunpack.c.h.b16 %v1989
        %v2193 = vunpack.c.l.b16 %v1990
        %v2194 = vunpack.c.l.b16 %v1991
        %v2195 = vunpack.c.h.b16 %v1991
        %v2196 = vunpack.c.l.b16 %v1992
        %v2197 = vunpack.c.l.b16 %v1993
        %v2198 = vunpack.c.h.b16 %v1993
        %v2199 = vunpack.c.l.b16 %v1994
        %v2200 = vunpack.c.l.b16 %v1995
        %v2201 = vunpack.c.h.b16 %v1995
        %v2202 = vunpack.c.l.b16 %v1996
        %v2203 = vunpack.c.l.b16 %v1997
        %v2204 = vunpack.c.h.b16 %v1997
        %v2205 = vunpack.c.l.b16 %v1998
        %v2206 = vunpack.c.l.b16 %v1999
        %v2207 = vunpack.c.h.b16 %v1999
        %v2208 = vunpack.c.l.b16 %v2000
        %v2209 = vunpack.c.l.b16 %v2001
        %v2210 = vunpack.c.h.b16 %v2001
        %v2211 = vunpack.c.l.b16 %v2002
        %v2212 = vunpack.c.l.b16 %v2003
        %v2213 = vunpack.c.h.b16 %v2003
        %v2214 = vunpack.c.l.b16 %v2004
        %v2215 = vunpack.c.l.b16 %v2005
        %v2216 = vunpack.c.h.b16 %v2005
        %v2217 = vunpack.c.l.b16 %v2006
        %v2218 = vunpack.c.l.b16 %v2007
        %v2219 = vunpack.c.h.b16 %v2007
        %v2220 = vunpack.c.l.b16 %v2008
        %v2221 = vunpack.c.l.b16 %v2009
        %v2222 = vunpack.c.h.b16 %v2009
        %v2223 = vunpack.c.l.b16 %v2010
        %v2224 = vunpack.c.l.b16 %v2011
        %v2225 = vunpack.c.h.b16 %v2011
        %v2226 = vunpack.c.l.b16 %v2012
        %v2227 = vunpack.c.l.b16 %v2013
        %v2228 = vunpack.c.h.b16 %v2013
        %v2229 = vunpack.c.l.b16 %v2014
        %v2230 = vunpack.c.l.b16 %v2015
        %v2231 = vunpack.c.h.b16 %v2015
        %v2232 = vunpack.c.l.b16 %v2016
        %v2233 = vunpack.c.l.b16 %v2017
        %v2234 = vunpack.c.h.b16 %v2017
        %v2235 = vunpack.c.l.b16 %v2018
        %v2236 = vunpack.c.l.b16 %v2019
        %v2237 = vunpack.c.h.b16 %v2019
        %v2238 = vunpack.c.l.b16 %v2020
        %v2239 = vunpack.c.l.b16 %v2021
        %v2240 = vunpack.c.h.b16 %v2021
        %v2241 = vunpack.c.l.b16 %v2022
        %v2242 = vunpack.c.l.b16 %v2023
        %v2243 = vunpack.c.h.b16 %v2023
        %v2244 = vunpack.c.l.b16 %v2024
        %v2245 = vunpack.c.l.b16 %v2025
        %v2246 = vunpack.c.h.b16 %v2025
        %v2247 = vunpack.c.l.b16 %v2026
        %v2248 = vunpack.c.l.b16 %v2027
        %v2249 = vunpack.c.h.b16 %v2027
        %v2250 = vunpack.c.l.b16 %v2028
        %v2251 = vunpack.c.l.b16 %v2029
        %v2252 = vunpack.c.h.b16 %v2029
        %v2253 = vunpack.c.l.b16 %v2030
        %v2254 = vunpack.c.l.b16 %v2031
        %v2255 = vunpack.c.h.b16 %v2031
        %v2256 = vunpack.c.l.b16 %v2032
        %v2257 = vunpack.c.l.b16 %v2033
        %v2258 = vunpack.c.h.b16 %v2033
        %v2259 = vunpack.c.l.b16 %v2034
        %v2260 = vunpack.c.l.b16 %v2035
        %v2261 = vunpack.c.h.b16 %v2035
        %v2262 = vunpack.c.l.b16 %v2036
        %v2263 = vunpack.c.l.b16 %v2037
        %v2264 = vunpack.c.h.b16 %v2037
        %v2265 = vunpack.c.l.b16 %v2038
        %v2266 = vunpack.c.l.b16 %v2039
        %v2267 = vunpack.c.h.b16 %v2039
        %v2268 = vunpack.c.l.b16 %v2040
        %v2269 = vunpack.c.l.b16 %v2041
        %v2270 = vunpack.c.h.b16 %v2041
        %v2271 = vunpack.c.l.b16 %v2042
        %v2272 = vunpack.c.l.b16 %v2043
        %v2273 = vunpack.c.h.b16 %v2043
        %v2274 = vunpack.c.l.b16 %v2044
        %v2275 = vunpack.c.l.b16 %v2045
        %v2276 = vunpack.c.h.b16 %v2045
        %v2277 = vunpack.c.l.b16 %v2046
        %v2278 = vunpack.c.l.b16 %v2047
        %v2279 = vunpack.c.h.b16 %v2047
        %v2280 = vunpack.c.l.b16 %v2048
        %v2281 = vunpack.c.l.b16 %v2049
        %v2282 = vunpack.c.h.b16 %v2049
        %v2283 = vunpack.c.l.b16 %v2050
        %v2284 = vunpack.c.l.b16 %v2051
        %v2285 = vunpack.c.h.b16 %v2051
        %v2286 = vunpack.c.l.b16 %v2052
        %v2287 = vunpack.c.l.b16 %v2053
        %v2288 = vunpack.c.h.b16 %v2053
        %v2289 = vunpack.c.l.b16 %v2054
        %v2290 = vunpack.c.l.b16 %v2055
        %v2291 = vunpack.c.h.b16 %v2055
        %v2292 = vunpack.c.l.b16 %v2056
        %v2293 = vunpack.c.l.b16 %v2057
        %v2294 = vunpack.c.h.b16 %v2057
        %v2295 = vunpack.c.l.b16 %v2058
        %v2296 = vunpack.c.l.b16 %v2059
        %v2297 = vunpack.c.h.b16 %v2059
        %v2298 = vunpack.c.l.b16 %v2060
        %v2299 = vunpack.c.l.b16 %v2061
        %v2300 = vunpack.c.h.b16 %v2061
        %v2301 = vunpack.c.l.b16 %v2062
        %v2302 = vunpack.c.l.b16 %v2063
        %v2303 = vunpack.c.h.b16 %v2063
        %v2304 = vunpack.c.l.b16 %v2064
        %v2305 = vpack.c.b16 %v2164, %v2161
        %v2306 = vpack.c.b16 %v2165, %v2162
        %v2307 = vpack.c.b16 %v2166, %v2163
        %v2308 = vpack.c.b16 %v2170, %v2167
        %v2309 = vpack.c.b16 %v2171, %v2168
        %v2310 = vpack.c.b16 %v2172, %v2169
        %v2311 = vpack.c.b16 %v2176, %v2173
        %v2312 = vpack.c.b16 %v2177, %v2174
        %v2313 = vpack.c.b16 %v2178, %v2175
        %v2314 = vpack.c.b16 %v2182, %v2179
        %v2315 = vpack.c.b16 %v2183, %v2180
        %v2316 = vpack.c.b16 %v2184, %v2181
        %v2317 = vpack.c.b16 %v2188, %v2185
        %v2318 = vpack.c.b16 %v2189, %v2186
        %v2319 = vpack.c.b16 %v2190, %v2187
        %v2320 = vpack.c.b16 %v2194, %v2191
        %v2321 = vpack.c.b16 %v2195, %v2192
        %v2322 = vpack.c.b16 %v2196, %v2193
        %v2323 = vpack.c.b16 %v2200, %v2197
        %v2324 = vpack.c.b16 %v2201, %v2198
        %v2325 = vpack.c.b16 %v2202, %v2199
        %v2326 = vpack.c.b16 %v2206, %v2203
        %v2327 = vpack.c.b16 %v2207, %v2204
        %v2328 = vpack.c.b16 %v2208, %v2205
        %v2329 = vpack.c.b16 %v2212, %v2209
        %v2330 = vpack.c.b16 %v2213, %v2210
        %v2331 = vpack.c.b16 %v2214, %v2211
        %v2332 = vpack.c.b16 %v2218, %v2215
        %v2333 = vpack.c.b16 %v2219, %v2216
        %v2334 = vpack.c.b16 %v2220, %v2217
        %v2335 = vpack.c.b16 %v2224, %v2221
        %v2336 = vpack.c.b16 %v2225, %v2222
        %v2337 = vpack.c.b16 %v2226, %v2223
        %v2338 = vpack.c.b16 %v2230, %v2227
        %v2339 = vpack.c.b16 %v2231, %v2228
        %v2340 = vpack.c.b16 %v2232, %v2229
        %v2341 = vpack.c.b16 %v2236, %v2233
        %v2342 = vpack.c.b16 %v2237, %v2234
        %v2343 = vpack.c.b16 %v2238, %v2235
        %v2344 = vpack.c.b16 %v2242, %v2239
        %v2345 = vpack.c.b16 %v2243, %v2240
        %v2346 = vpack.c.b16 %v2244, %v2241
        %v2347 = vpack.c.b16 %v2248, %v2245
        %v2348 = vpack.c.b16 %v2249, %v2246
        %v2349 = vpack.c.b16 %v2250, %v2247
        %v2350 = vpack.c.b16 %v2254, %v2251
        %v2351 = vpack.c.b16 %v2255, %v2252
        %v2352 = vpack.c.b16 %v2256, %v2253
        %v2353 = vpack.c.b16 %v2260, %v2257
        %v2354 = vpack.c.b16 %v2261, %v2258
        %v2355 = vpack.c.b16 %v2262, %v2259
        %v2356 = vpack.c.b16 %v2266, %v2263
        %v2357 = vpack.c.b16 %v2267, %v2264
        %v2358 = vpack.c.b16 %v2268, %v2265
        %v2359 = vpack.c.b16 %v2272, %v2269
        %v2360 = vpack.c.b16 %v2273, %v2270
        %v2361 = vpack.c.b16 %v2274, %v2271
        %v2362 = vpack.c.b16 %v2278, %v2275
        %v2363 = vpack.c.b16 %v2279, %v2276
        %v2364 = vpack.c.b16 %v2280, %v2277
        %v2365 = vpack.c.b16 %v2284, %v2281
        %v2366 = vpack.c.b16 %v2285, %v2282
        %v2367 = vpack.c.b16 %v2286, %v2283
        %v2368 = vpack.c.b16 %v2290, %v2287
        %v2369 = vpack.c.b16 %v2291, %v2288
        %v2370 = vpack.c.b16 %v2292, %v2289
        %v2371 = vpack.c.b16 %v2296, %v2293
        %v2372 = vpack.c.b16 %v2297, %v2294
        %v2373 = vpack.c.b16 %v2298, %v2295
        %v2374 = vpack.c.b16 %v2302, %v2299
        %v2375 = vpack.c.b16 %v2303, %v2300
        %v2376 = vpack.c.b16 %v2304, %v2301
        %2449 = vmatprep.subr.bf16.mxu0 %v2327
        %2450 = vmatpush1.bf16.msra.mxu0 %v2326
        %2451 = vmatprep.subr.bf16.mxu0 %v2324
        %2452 = vmatpush1.bf16.msra.mxu0 %v2323
        %2453 = vmatprep.subr.bf16.mxu0 %v2321
        %2454 = vmatpush1.bf16.msra.mxu0 %v2320
        %2455 = vmatprep.subr.bf16.mxu0 %v2318
        %2456 = vmatpush1.bf16.msra.mxu0 %v2317
        %2457 = vmatprep.subr.bf16.mxu0 %v2315
        %2458 = vmatpush1.bf16.msra.mxu0 %v2314
        %2459 = vmatprep.subr.bf16.mxu0 %v2312
        %2460 = vmatpush1.bf16.msra.mxu0 %v2311
        %2461 = vmatprep.subr.bf16.mxu0 %v2309
        %2462 = vmatpush1.bf16.msra.mxu0 %v2308
        %2463 = vmatprep.subr.bf16.mxu0 %v2306
        %2464 = vmatpush1.bf16.msra.mxu0 %v2305
        %2465 = vmatprep.subr.bf16.mxu0 %v2351
        %2466 = vmatpush2.bf16.msra.mxu0 %v2350
        %2467 = vmatprep.subr.bf16.mxu0 %v2348
        %2468 = vmatpush2.bf16.msra.mxu0 %v2347
        %2469 = vmatprep.subr.bf16.mxu0 %v2345
        %2470 = vmatpush2.bf16.msra.mxu0 %v2344
        %2471 = vmatprep.subr.bf16.mxu0 %v2342
        %2472 = vmatpush2.bf16.msra.mxu0 %v2341
        %2473 = vmatprep.subr.bf16.mxu0 %v2339
        %2474 = vmatpush2.bf16.msra.mxu0 %v2338
        %2475 = vmatprep.subr.bf16.mxu0 %v2336
        %2476 = vmatpush2.bf16.msra.mxu0 %v2335
        %2477 = vmatprep.subr.bf16.mxu0 %v2333
        %2478 = vmatpush2.bf16.msra.mxu0 %v2332
        %2479 = vmatprep.subr.bf16.mxu0 %v2330
        %2480 = vmatpush2.bf16.msra.mxu0 %v2329
        %2481 = vmatprep.mubr.bf16.mxu0 %v1964
        %2482 = vmatmul.mubr.bf16.gmra.mxu0 %v1963
        %v2483 = vpop.f32.mrf.mxu0
        %v2484 = vadd.f32 1e-06, %v2483
        %v2485 = vpop.f32.mrf.mxu0
        %v2486 = vadd.f32 1e-06, %v2485
        %v2487 = vpop.f32.mrf.mxu0
        %v2488 = vadd.f32 1e-06, %v2487
        %v2489 = vpop.f32.mrf.mxu0
        %v2490 = vadd.f32 1e-06, %v2489
        %2491 = vmatprep.mubr.bf16.mxu0 %v1967
        %2492 = vmatmul.mubr.bf16.gmra.mxu0 %v1966
        %v2493 = vpop.f32.mrf.mxu0
        %v2494 = vadd.f32 1e-06, %v2493
        %v2495 = vpop.f32.mrf.mxu0
        %v2496 = vadd.f32 1e-06, %v2495
        %v2497 = vpop.f32.mrf.mxu0
        %v2498 = vpop.f32.mrf.mxu0
        %2499 = vdwg.mxu0
        %2500 = vmatprep.subr.bf16.mxu0 %v2375
        %2501 = vmatpush1.bf16.msra.mxu0 %v2374
        %2502 = vmatprep.subr.bf16.mxu0 %v2372
        %2503 = vmatpush1.bf16.msra.mxu0 %v2371
        %2504 = vmatprep.subr.bf16.mxu0 %v2369
        %2505 = vmatpush1.bf16.msra.mxu0 %v2368
        %2506 = vmatprep.subr.bf16.mxu0 %v2366
        %2507 = vmatpush1.bf16.msra.mxu0 %v2365
        %2508 = vmatprep.subr.bf16.mxu0 %v2363
        %2509 = vmatpush1.bf16.msra.mxu0 %v2362
        %2510 = vmatprep.subr.bf16.mxu0 %v2360
        %2511 = vmatpush1.bf16.msra.mxu0 %v2359
        %2512 = vmatprep.subr.bf16.mxu0 %v2357
        %2513 = vmatpush1.bf16.msra.mxu0 %v2356
        %2514 = vmatprep.subr.bf16.mxu0 %v2354
        %2515 = vmatpush1.bf16.msra.mxu0 %v2353
        %2516 = vmatprep.subr.bf16.mxu0 0
        %2517 = vmatpush2.bf16.msra.mxu0 0
        %2518 = vmatprep.subr.bf16.mxu0 0
        %2519 = vmatpush2.bf16.msra.mxu0 0
        %2520 = vmatprep.subr.bf16.mxu0 0
        %2521 = vmatpush2.bf16.msra.mxu0 0
        %2522 = vmatprep.subr.bf16.mxu0 0
        %2523 = vmatpush2.bf16.msra.mxu0 0
        %2524 = vmatprep.subr.bf16.mxu0 0
        %2525 = vmatpush2.bf16.msra.mxu0 0
        %2526 = vmatprep.subr.bf16.mxu0 0
        %2527 = vmatpush2.bf16.msra.mxu0 0
        %2528 = vmatprep.subr.bf16.mxu0 0
        %2529 = vmatpush2.bf16.msra.mxu0 0
        %2530 = vmatprep.subr.bf16.mxu0 0
        %2531 = vmatpush2.bf16.msra.mxu0 0
        %2532 = vmatprep.mubr.bf16.mxu0 0
        %2533 = vmatmul.mubr.bf16.gmra.mxu0 %v1965
        %v2534 = vpop.f32.mrf.mxu0
        %v2535 = vadd.f32 %v2484, %v2534
        %v2536 = vpop.f32.mrf.mxu0
        %v2537 = vadd.f32 %v2486, %v2536
        %v2538 = vpop.f32.mrf.mxu0
        %v2539 = vadd.f32 %v2488, %v2538
        %v2540 = vpop.f32.mrf.mxu0
        %v2541 = vadd.f32 %v2490, %v2540
        %2542 = vmatprep.mubr.bf16.mxu0 0
        %2543 = vmatmul.mubr.bf16.gmra.mxu0 %v1968
        %v2544 = vpop.f32.mrf.mxu0
        %v2545 = vadd.f32 %v2494, %v2544
        %v2546 = vpop.f32.mrf.mxu0
        %v2547 = vadd.f32 %v2496, %v2546
        %v2548 = vpop.f32.mrf.mxu0
        %v2549 = vpop.f32.mrf.mxu0
        %2550 = vdwg.mxu0
        %2551 = vmatprep.subr.bf16.mxu0 0
        %2552 = vmatpush1.bf16.msra.mxu0 %v2328
        %2553 = vmatprep.subr.bf16.mxu0 0
        %2554 = vmatpush1.bf16.msra.mxu0 %v2325
        %2555 = vmatprep.subr.bf16.mxu0 0
        %2556 = vmatpush1.bf16.msra.mxu0 %v2322
        %2557 = vmatprep.subr.bf16.mxu0 0
        %2558 = vmatpush1.bf16.msra.mxu0 %v2319
        %2559 = vmatprep.subr.bf16.mxu0 0
        %2560 = vmatpush1.bf16.msra.mxu0 %v2316
        %2561 = vmatprep.subr.bf16.mxu0 0
        %2562 = vmatpush1.bf16.msra.mxu0 %v2313
        %2563 = vmatprep.subr.bf16.mxu0 0
        %2564 = vmatpush1.bf16.msra.mxu0 %v2310
        %2565 = vmatprep.subr.bf16.mxu0 0
        %2566 = vmatpush1.bf16.msra.mxu0 %v2307
        %2567 = vmatprep.subr.bf16.mxu0 0
        %2568 = vmatpush2.bf16.msra.mxu0 %v2352
        %2569 = vmatprep.subr.bf16.mxu0 0
        %2570 = vmatpush2.bf16.msra.mxu0 %v2349
        %2571 = vmatprep.subr.bf16.mxu0 0
        %2572 = vmatpush2.bf16.msra.mxu0 %v2346
        %2573 = vmatprep.subr.bf16.mxu0 0
        %2574 = vmatpush2.bf16.msra.mxu0 %v2343
        %2575 = vmatprep.subr.bf16.mxu0 0
        %2576 = vmatpush2.bf16.msra.mxu0 %v2340
        %2577 = vmatprep.subr.bf16.mxu0 0
        %2578 = vmatpush2.bf16.msra.mxu0 %v2337
        %2579 = vmatprep.subr.bf16.mxu0 0
        %2580 = vmatpush2.bf16.msra.mxu0 %v2334
        %2581 = vmatprep.subr.bf16.mxu0 0
        %2582 = vmatpush2.bf16.msra.mxu0 %v2331
        %2583 = vmatprep.mubr.bf16.mxu0 %v1964
        %2584 = vmatmul.mubr.bf16.gmra.mxu0 %v1963
        %v2585 = vpop.f32.mrf.mxu0
        %v2586 = vadd.f32 1e-06, %v2585
        %v2587 = vpop.f32.mrf.mxu0
        %v2588 = vpop.f32.mrf.mxu0
        %v2589 = vadd.f32 1e-06, %v2588
        %v2590 = vpop.f32.mrf.mxu0
        %2591 = vmatprep.mubr.bf16.mxu0 %v1967
        %2592 = vmatmul.mubr.bf16.gmra.mxu0 %v1966
        %v2593 = vpop.f32.mrf.mxu0
        %v2594 = vadd.f32 1e-06, %v2593
        %v2595 = vpop.f32.mrf.mxu0
        %v2596 = vpop.f32.mrf.mxu0
        %v2597 = vpop.f32.mrf.mxu0
        %2598 = vdwg.mxu0
        %2599 = vmatprep.subr.bf16.mxu0 0
        %2600 = vmatpush1.bf16.msra.mxu0 %v2376
        %2601 = vmatprep.subr.bf16.mxu0 0
        %2602 = vmatpush1.bf16.msra.mxu0 %v2373
        %2603 = vmatprep.subr.bf16.mxu0 0
        %2604 = vmatpush1.bf16.msra.mxu0 %v2370
        %2605 = vmatprep.subr.bf16.mxu0 0
        %2606 = vmatpush1.bf16.msra.mxu0 %v2367
        %2607 = vmatprep.subr.bf16.mxu0 0
        %2608 = vmatpush1.bf16.msra.mxu0 %v2364
        %2609 = vmatprep.subr.bf16.mxu0 0
        %2610 = vmatpush1.bf16.msra.mxu0 %v2361
        %2611 = vmatprep.subr.bf16.mxu0 0
        %2612 = vmatpush1.bf16.msra.mxu0 %v2358
        %2613 = vmatprep.subr.bf16.mxu0 0
        %2614 = vmatpush1.bf16.msra.mxu0 %v2355
        %2615 = vmatprep.subr.bf16.mxu0 0
        %2616 = vmatpush2.bf16.msra.mxu0 0
        %2617 = vmatprep.subr.bf16.mxu0 0
        %2618 = vmatpush2.bf16.msra.mxu0 0
        %2619 = vmatprep.subr.bf16.mxu0 0
        %2620 = vmatpush2.bf16.msra.mxu0 0
        %2621 = vmatprep.subr.bf16.mxu0 0
        %2622 = vmatpush2.bf16.msra.mxu0 0
        %2623 = vmatprep.subr.bf16.mxu0 0
        %2624 = vmatpush2.bf16.msra.mxu0 0
        %2625 = vmatprep.subr.bf16.mxu0 0
        %2626 = vmatpush2.bf16.msra.mxu0 0
        %2627 = vmatprep.subr.bf16.mxu0 0
        %2628 = vmatpush2.bf16.msra.mxu0 0
        %2629 = vmatprep.subr.bf16.mxu0 0
        %2630 = vmatpush2.bf16.msra.mxu0 0
        %2631 = vmatprep.mubr.bf16.mxu0 0
        %2632 = vmatmul.mubr.bf16.gmra.mxu0 %v1965
        %v2633 = vpop.f32.mrf.mxu0
        %v2634 = vadd.f32 %v2586, %v2633
        %v2635 = vpop.f32.mrf.mxu0
        %v2636 = vpop.f32.mrf.mxu0
        %v2637 = vadd.f32 %v2589, %v2636
        %v2638 = vpop.f32.mrf.mxu0
        %2639 = vmatprep.mubr.bf16.mxu0 0
        %2640 = vmatmul.mubr.bf16.gmra.mxu0 %v1968
        %v2641 = vpop.f32.mrf.mxu0
        %v2642 = vadd.f32 %v2594, %v2641
        %v2643 = vpop.f32.mrf.mxu0
        %v2644 = vpop.f32.mrf.mxu0
        %v2645 = vpop.f32.mrf.mxu0
        %2646 = vdwg.mxu0
        %v2647 = vlog2.pop %v2535
        %v2648 = vmul.f32 %v2647, 0.6931472
        %v2649 = vlog2.pop %v2537
        %v2650 = vmul.f32 %v2649, 0.6931472
        %v2651 = vlog2.pop %v2634
        %v2652 = vmul.f32 %v2651, 0.6931472
        %v2653 = vlog2.pop %v2539
        %v2654 = vmul.f32 %v2653, 0.6931472
        %v2655 = vlog2.pop %v2541
        %v2656 = vmul.f32 %v2655, 0.6931472
        %v2657 = vlog2.pop %v2637
        %v2658 = vmul.f32 %v2657, 0.6931472
        %v2659 = vlog2.pop %v2545
        %v2660 = vmul.f32 %v2659, 0.6931472
        %v2661 = vlog2.pop %v2547
        %v2662 = vmul.f32 %v2661, 0.6931472
        %v2663 = vlog2.pop %v2642
        %v2664 = vmul.f32 %v2663, 0.6931472
        %v2665 = vmul.f32 %v2648, -0.6
        %v2666 = vmul.f32 %v2650, -0.6
        %v2667 = vmul.f32 %v2652, -0.6
        %v2668 = vmul.f32 %v2654, -0.6
        %v2669 = vmul.f32 %v2656, -0.6
        %v2670 = vmul.f32 %v2658, -0.6
        %v2671 = vmul.f32 %v2660, -0.6
        %v2672 = vmul.f32 %v2662, -0.6
        %v2673 = vmul.f32 %v2664, -0.6
        %v2674 = vmul.f32 %v2665, 1.442695
        %v2675 = vpow.pop %v2674
        %v2676 = vmul.f32 %v2666, 1.442695
        %v2677 = vpow.pop %v2676
        %v2678 = vmul.f32 %v2667, 1.442695
        %v2679 = vpow.pop %v2678
        %v2680 = vmul.f32 %v2668, 1.442695
        %v2681 = vpow.pop %v2680
        %v2682 = vmul.f32 %v2669, 1.442695
        %v2683 = vpow.pop %v2682
        %v2684 = vmul.f32 %v2670, 1.442695
        %v2685 = vpow.pop %v2684
        %v2686 = vmul.f32 %v2671, 1.442695
        %v2687 = vpow.pop %v2686
        %v2688 = vmul.f32 %v2672, 1.442695
        %v2689 = vpow.pop %v2688
        %v2690 = vmul.f32 %v2673, 1.442695
        %v2691 = vpow.pop %v2690
        %v2692 = vmul.f32 %v1906, %v2675
        %v2693 = vmul.f32 %v1913, %v2677
        %v2694 = vmul.f32 %v1920, %v2679
        %v2695 = vmul.f32 %v1927, %v2681
        %v2696 = vmul.f32 %v1934, %v2683
        %v2697 = vmul.f32 %v1941, %v2685
        %v2698 = vmul.f32 %v1948, %v2687
        %v2699 = vmul.f32 %v1955, %v2689
        %v2700 = vmul.f32 %v1962, %v2691
        %v2701 = vadd.f32 %v2692, 0.1
        %v2702 = vadd.f32 %v2693, 0.1
        %v2703 = vadd.f32 %v2694, 0.1
        %v2704 = vadd.f32 %v2695, 0.1
        %v2705 = vadd.f32 %v2696, 0.1
        %v2706 = vadd.f32 %v2697, 0.1
        %v2707 = vadd.f32 %v2698, 0.1
        %v2708 = vadd.f32 %v2699, 0.1
        %v2709 = vadd.f32 %v2700, 0.1
        %v2710 = vlog2.pop %v2701
        %v2711 = vmul.f32 %v2710, 0.6931472
        %v2712 = vlog2.pop %v2702
        %v2713 = vmul.f32 %v2712, 0.6931472
        %v2714 = vlog2.pop %v2703
        %v2715 = vmul.f32 %v2714, 0.6931472
        %v2716 = vlog2.pop %v2704
        %v2717 = vmul.f32 %v2716, 0.6931472
        %v2718 = vlog2.pop %v2705
        %v2719 = vmul.f32 %v2718, 0.6931472
        %v2720 = vlog2.pop %v2706
        %v2721 = vmul.f32 %v2720, 0.6931472
        %v2722 = vlog2.pop %v2707
        %v2723 = vmul.f32 %v2722, 0.6931472
        %v2724 = vlog2.pop %v2708
        %v2725 = vmul.f32 %v2724, 0.6931472
        %v2726 = vlog2.pop %v2709
        %v2727 = vmul.f32 %v2726, 0.6931472
        %v2728 = vmul.f32 %v2711, 0.2
        %v2729 = vmul.f32 %v2713, 0.2
        %v2730 = vmul.f32 %v2715, 0.2
        %v2731 = vmul.f32 %v2717, 0.2
        %v2732 = vmul.f32 %v2719, 0.2
        %v2733 = vmul.f32 %v2721, 0.2
        %v2734 = vmul.f32 %v2723, 0.2
        %v2735 = vmul.f32 %v2725, 0.2
        %v2736 = vmul.f32 %v2727, 0.2
        %v2737 = vmul.f32 %v2728, 1.442695
        %v2738 = vpow.pop %v2737
        %v2739 = vmul.f32 %v2729, 1.442695
        %v2740 = vpow.pop %v2739
        %v2741 = vmul.f32 %v2730, 1.442695
        %v2742 = vpow.pop %v2741
        %v2743 = vmul.f32 %v2731, 1.442695
        %v2744 = vpow.pop %v2743
        %v2745 = vmul.f32 %v2732, 1.442695
        %v2746 = vpow.pop %v2745
        %v2747 = vmul.f32 %v2733, 1.442695
        %v2748 = vpow.pop %v2747
        %v2749 = vmul.f32 %v2734, 1.442695
        %v2750 = vpow.pop %v2749
        %v2751 = vmul.f32 %v2735, 1.442695
        %v2752 = vpow.pop %v2751
        %v2753 = vmul.f32 %v2736, 1.442695
        %v2754 = vpow.pop %v2753
        %v2755 = vsub.f32 %v2738, 0.63095737
        %v2756 = vsub.f32 %v2740, 0.63095737
        %v2757 = vsub.f32 %v2742, 0.63095737
        %v2758 = vsub.f32 %v2744, 0.63095737
        %v2759 = vsub.f32 %v2746, 0.63095737
        %v2760 = vsub.f32 %v2748, 0.63095737
        %v2761 = vsub.f32 %v2750, 0.63095737
        %v2762 = vsub.f32 %v2752, 0.63095737
        %v2763 = vsub.f32 %v2754, 0.63095737
        %v2764 = vlaneseq
        %v2765 = vand.u32 %v2764, 127
        %v2766 = vadd.s32 %v2765, 128
        %v2767 = vadd.s32 %v2765, 256
        %vm2768 = vcmp.lt.s32.totalorder %v2765, 257
        %vm2769 = vcmp.lt.s32.totalorder %v2766, 257
        %vm2770 = vcmp.lt.s32.totalorder %v2767, 257
        %v2771 = vsel %vm2768, %v2755, -inf
        %v2772 = vsel %vm2769, %v2756, -inf
        %v2773 = vsel %vm2770, %v2757, -inf
        %v2774 = vsel %vm2768, %v2758, -inf
        %v2775 = vsel %vm2769, %v2759, -inf
        %v2776 = vsel %vm2770, %v2760, -inf
        %v2777 = vsel %vm2768, %v2761, -inf
        %v2778 = vsel %vm2769, %v2762, -inf
        %v2779 = vsel %vm2770, %v2763, -inf
        %v2780 = vmax.f32 %v2771, %v2773
        %v2781 = vmax.f32 %v2780, %v2772
        %2782 = vmax.xlane.f32.xlu0 %v2781
        %v2783 = vpop.xlane.xlu0 %2782
        %v2784 = vmax.f32 %v2774, %v2776
        %v2785 = vmax.f32 %v2784, %v2775
        %2786 = vmax.xlane.f32.xlu0 %v2785
        %v2787 = vpop.xlane.xlu0 %2786
        %vm2788 = vcmask 1040384
        %v2789 = vsel %vm2788, %v2777, -inf
        %v2790 = vsel %vm2788, %v2778, -inf
        %v2791 = vsel %vm2788, %v2779, -inf
        %v2792 = vmax.f32 %v2789, %v2791
        %v2793 = vmax.f32 %v2792, %v2790
        %2794 = vmax.xlane.f32.xlu0 %v2793
        %v2795 = vpop.xlane.xlu0 %2794
        %v2796 = vsel %vm2768, %v2755, inf
        %v2797 = vsel %vm2769, %v2756, inf
        %v2798 = vsel %vm2770, %v2757, inf
        %v2799 = vsel %vm2768, %v2758, inf
        %v2800 = vsel %vm2769, %v2759, inf
        %v2801 = vsel %vm2770, %v2760, inf
        %v2802 = vsel %vm2768, %v2761, inf
        %v2803 = vsel %vm2769, %v2762, inf
        %v2804 = vsel %vm2770, %v2763, inf
        %v2805 = vmin.f32 %v2796, %v2798
        %v2806 = vmin.f32 %v2805, %v2797
        %2807 = vmin.xlane.f32.xlu0 %v2806
        %v2808 = vpop.xlane.xlu0 %2807
        %v2809 = vmin.f32 %v2799, %v2801
        %v2810 = vmin.f32 %v2809, %v2800
        %2811 = vmin.xlane.f32.xlu0 %v2810
        %v2812 = vpop.xlane.xlu0 %2811
        %v2813 = vsel %vm2788, %v2802, inf
        %v2814 = vsel %vm2788, %v2803, inf
        %v2815 = vsel %vm2788, %v2804, inf
        %v2816 = vmin.f32 %v2813, %v2815
        %v2817 = vmin.f32 %v2816, %v2814
        %2818 = vmin.xlane.f32.xlu0 %v2817
        %v2819 = vpop.xlane.xlu0 %2818
        %v2820 = vsub.f32 %v2783, %v2808
        %v2821 = vsub.f32 %v2787, %v2812
        %v2822 = vsub.f32 %v2795, %v2819
        %vm2823 = vcmp.gt.f32.partialorder %v2820, 0.0
        %vm2824 = vcmp.gt.f32.partialorder %v2821, 0.0
        %vm2825 = vcmp.gt.f32.partialorder %v2822, 0.0
        %v2826 = vsel %vm2823, %v2820, 1.0
        %v2827 = vsel %vm2824, %v2821, 1.0
        %v2828 = vsel %vm2825, %v2822, 1.0
        %v2829 = vsel %vm2823, 1, 0
        %v2830 = vsel %vm2824, 1, 0
        %v2831 = vsel %vm2825, 1, 0
        %vm2832 = vcmp.eq.s32.totalorder %v2829, 1
        %vm2833 = vcmp.eq.s32.totalorder %v2830, 1
        %vm2834 = vcmp.eq.s32.totalorder %v2831, 1
        %vm2835 = vmand %vm2768, %vm2832
        %vm2836 = vmand %vm2769, %vm2832
        %vm2837 = vmand %vm2770, %vm2832
        %vm2838 = vmand %vm2768, %vm2833
        %vm2839 = vmand %vm2769, %vm2833
        %vm2840 = vmand %vm2770, %vm2833
        %vm2841 = vmand %vm2768, %vm2834
        %vm2842 = vmand %vm2769, %vm2834
        %vm2843 = vmand %vm2770, %vm2834
        %v2844 = vsub.f32 %v2755, %v2808
        %v2845 = vsub.f32 %v2756, %v2808
        %v2846 = vsub.f32 %v2757, %v2808
        %v2847 = vsub.f32 %v2758, %v2812
        %v2848 = vsub.f32 %v2759, %v2812
        %v2849 = vsub.f32 %v2760, %v2812
        %v2850 = vsub.f32 %v2761, %v2819
        %v2851 = vsub.f32 %v2762, %v2819
        %v2852 = vsub.f32 %v2763, %v2819
        %v2853 = vrcp.pop %v2826
        %v2854 = vmul.f32 %v2844, %v2853
        %v2855 = vmul.f32 %v2845, %v2853
        %v2856 = vmul.f32 %v2846, %v2853
        %v2857 = vrcp.pop %v2827
        %v2858 = vmul.f32 %v2847, %v2857
        %v2859 = vmul.f32 %v2848, %v2857
        %v2860 = vmul.f32 %v2849, %v2857
        %v2861 = vrcp.pop %v2828
        %v2862 = vmul.f32 %v2850, %v2861
        %v2863 = vmul.f32 %v2851, %v2861
        %v2864 = vmul.f32 %v2852, %v2861
        %v2865 = vsel %vm2835, %v2854, 0.0
        %v2866 = vsel %vm2836, %v2855, 0.0
        %v2867 = vsel %vm2837, %v2856, 0.0
        %v2868 = vsel %vm2838, %v2858, 0.0
        %v2869 = vsel %vm2839, %v2859, 0.0
        %v2870 = vsel %vm2840, %v2860, 0.0
        %v2871 = vsel %vm2841, %v2862, 0.0
        %v2872 = vsel %vm2842, %v2863, 0.0
        %v2873 = vsel %vm2843, %v2864, 0.0
        %v2874 = vpack.c.bf16 %v2868, %v2865
        %v2875 = vpack.c.bf16 %v2869, %v2866
        %v2876 = vpack.c.bf16 %v2870, %v2867
        %v2877 = vpack.c.bf16 %v2871, %v2871
        %v2878 = vpack.c.bf16 %v2872, %v2872
        %v2879 = vpack.c.bf16 %v2873, %v2873
        %v2880 = vld [vmem:[%s3] sm:$0xf]
        %v2881 = vld [vmem:[%s3 + $0x4] sm:$0xf]
        %v2882 = vld [vmem:[%s3 + $0x8] sm:$0xf]
        %v2883 = vld [vmem:[%s3 + $0xc] sm:$0xf]
        %v2884 = vld [vmem:[%s3 + $0x10] sm:$0xf]
        %v2885 = vld [vmem:[%s3 + $0x14] sm:$0xf]
        %v2886 = vld [vmem:[%s3 + $0x18] sm:$0xf]
        %v2887 = vld [vmem:[%s3 + $0x1c] sm:$0xf]
        %v2888 = vld [vmem:[%s3 + $0x20] sm:$0xf]
        %v2889 = vld [vmem:[%s3 + $0x24] sm:$0xf]
        %v2890 = vld [vmem:[%s3 + $0x28] sm:$0xf]
        %v2891 = vld [vmem:[%s3 + $0x2c] sm:$0xf]
        %v2892 = vld [vmem:[%s3 + $0x30] sm:$0xf]
        %v2893 = vld [vmem:[%s3 + $0x34] sm:$0xf]
        %v2894 = vld [vmem:[%s3 + $0x38] sm:$0xf]
        %v2895 = vld [vmem:[%s3 + $0x3c] sm:$0xf]
        %v2896 = vld [vmem:[%s3 + $0x40] sm:$0xf]
        %v2897 = vld [vmem:[%s3 + $0x44] sm:$0xf]
        %v2898 = vld [vmem:[%s3 + $0x48] sm:$0xf]
        %v2899 = vld [vmem:[%s3 + $0x4c] sm:$0xf]
        %v2900 = vld [vmem:[%s3 + $0x50] sm:$0xf]
        %v2901 = vld [vmem:[%s3 + $0x54] sm:$0xf]
        %v2902 = vld [vmem:[%s3 + $0x58] sm:$0xf]
        %v2903 = vld [vmem:[%s3 + $0x5c] sm:$0xf]
        %v2904 = vld [vmem:[%s3 + $0x60] sm:$0xf]
        %v2905 = vld [vmem:[%s3 + $0x64] sm:$0xf]
        %v2906 = vld [vmem:[%s3 + $0x68] sm:$0xf]
        %v2907 = vld [vmem:[%s3 + $0x6c] sm:$0xf]
        %v2908 = vld [vmem:[%s3 + $0x70] sm:$0xf]
        %v2909 = vld [vmem:[%s3 + $0x74] sm:$0xf]
        %v2910 = vld [vmem:[%s3 + $0x78] sm:$0xf]
        %v2911 = vld [vmem:[%s3 + $0x7c] sm:$0xf]
        %v2912 = vld [vmem:[%s3 + $0x80] sm:$0xf]
        %v2913 = vld [vmem:[%s3 + $0x84] sm:$0xf]
        %v2914 = vld [vmem:[%s3 + $0x88] sm:$0xf]
        %v2915 = vld [vmem:[%s3 + $0x8c] sm:$0xf]
        %v2916 = vld [vmem:[%s3 + $0x90] sm:$0xf]
        %v2917 = vld [vmem:[%s3 + $0x94] sm:$0xf]
        %v2918 = vld [vmem:[%s3 + $0x98] sm:$0xf]
        %v2919 = vld [vmem:[%s3 + $0x9c] sm:$0xf]
        %v2920 = vld [vmem:[%s3 + $0xa0] sm:$0xf]
        %v2921 = vld [vmem:[%s3 + $0xa4] sm:$0xf]
        %v2922 = vld [vmem:[%s3 + $0xa8] sm:$0xf]
        %v2923 = vld [vmem:[%s3 + $0xac] sm:$0xf]
        %v2924 = vld [vmem:[%s3 + $0xb0] sm:$0xf]
        %v2925 = vld [vmem:[%s3 + $0xb4] sm:$0xf]
        %v2926 = vld [vmem:[%s3 + $0xb8] sm:$0xf]
        %v2927 = vld [vmem:[%s3 + $0xbc] sm:$0xf]
        %v2976 = vunpack.c.l.b16 %v2880
        %v2977 = vunpack.c.l.b16 %v2881
        %v2978 = vunpack.c.l.b16 %v2882
        %v2979 = vunpack.c.l.b16 %v2883
        %v2980 = vunpack.c.l.b16 %v2884
        %v2981 = vunpack.c.l.b16 %v2885
        %v2982 = vunpack.c.l.b16 %v2886
        %v2983 = vunpack.c.l.b16 %v2887
        %v2984 = vunpack.c.l.b16 %v2888
        %v2985 = vunpack.c.l.b16 %v2889
        %v2986 = vunpack.c.l.b16 %v2890
        %v2987 = vunpack.c.l.b16 %v2891
        %v2988 = vunpack.c.l.b16 %v2892
        %v2989 = vunpack.c.l.b16 %v2893
        %v2990 = vunpack.c.l.b16 %v2894
        %v2991 = vunpack.c.l.b16 %v2895
        %v2992 = vunpack.c.l.b16 %v2896
        %v2993 = vunpack.c.l.b16 %v2897
        %v2994 = vunpack.c.l.b16 %v2898
        %v2995 = vunpack.c.l.b16 %v2899
        %v2996 = vunpack.c.l.b16 %v2900
        %v2997 = vunpack.c.l.b16 %v2901
        %v2998 = vunpack.c.l.b16 %v2902
        %v2999 = vunpack.c.l.b16 %v2903
        %v3000 = vunpack.c.l.b16 %v2904
        %v3001 = vunpack.c.l.b16 %v2905
        %v3002 = vunpack.c.l.b16 %v2906
        %v3003 = vunpack.c.l.b16 %v2907
        %v3004 = vunpack.c.l.b16 %v2908
        %v3005 = vunpack.c.l.b16 %v2909
        %v3006 = vunpack.c.l.b16 %v2910
        %v3007 = vunpack.c.l.b16 %v2911
        %v3008 = vunpack.c.l.b16 %v2912
        %v3009 = vunpack.c.l.b16 %v2913
        %v3010 = vunpack.c.l.b16 %v2914
        %v3011 = vunpack.c.l.b16 %v2915
        %v3012 = vunpack.c.l.b16 %v2916
        %v3013 = vunpack.c.l.b16 %v2917
        %v3014 = vunpack.c.l.b16 %v2918
        %v3015 = vunpack.c.l.b16 %v2919
        %v3016 = vunpack.c.l.b16 %v2920
        %v3017 = vunpack.c.l.b16 %v2921
        %v3018 = vunpack.c.l.b16 %v2922
        %v3019 = vunpack.c.l.b16 %v2923
        %v3020 = vunpack.c.l.b16 %v2924
        %v3021 = vunpack.c.l.b16 %v2925
        %v3022 = vunpack.c.l.b16 %v2926
        %v3023 = vunpack.c.l.b16 %v2927
        %v3024 = vpack.c.b16 %v2977, %v2976
        %v3025 = vpack.c.b16 %v2979, %v2978
        %v3026 = vpack.c.b16 %v2981, %v2980
        %v3027 = vpack.c.b16 %v2983, %v2982
        %v3028 = vpack.c.b16 %v2985, %v2984
        %v3029 = vpack.c.b16 %v2987, %v2986
        %v3030 = vpack.c.b16 %v2989, %v2988
        %v3031 = vpack.c.b16 %v2991, %v2990
        %v3032 = vpack.c.b16 %v2993, %v2992
        %v3033 = vpack.c.b16 %v2995, %v2994
        %v3034 = vpack.c.b16 %v2997, %v2996
        %v3035 = vpack.c.b16 %v2999, %v2998
        %v3036 = vpack.c.b16 %v3001, %v3000
        %v3037 = vpack.c.b16 %v3003, %v3002
        %v3038 = vpack.c.b16 %v3005, %v3004
        %v3039 = vpack.c.b16 %v3007, %v3006
        %v3040 = vpack.c.b16 %v3009, %v3008
        %v3041 = vpack.c.b16 %v3011, %v3010
        %v3042 = vpack.c.b16 %v3013, %v3012
        %v3043 = vpack.c.b16 %v3015, %v3014
        %v3044 = vpack.c.b16 %v3017, %v3016
        %v3045 = vpack.c.b16 %v3019, %v3018
        %v3046 = vpack.c.b16 %v3021, %v3020
        %v3047 = vpack.c.b16 %v3023, %v3022
        %3072 = vmatprep.subr.bf16.mxu0 0
        %3073 = vmatpush1.bf16.msra.mxu0 %v3031
        %3074 = vmatprep.subr.bf16.mxu0 0
        %3075 = vmatpush1.bf16.msra.mxu0 %v3030
        %3076 = vmatprep.subr.bf16.mxu0 0
        %3077 = vmatpush1.bf16.msra.mxu0 %v3029
        %3078 = vmatprep.subr.bf16.mxu0 0
        %3079 = vmatpush1.bf16.msra.mxu0 %v3028
        %3080 = vmatprep.subr.bf16.mxu0 0
        %3081 = vmatpush1.bf16.msra.mxu0 %v3027
        %3082 = vmatprep.subr.bf16.mxu0 0
        %3083 = vmatpush1.bf16.msra.mxu0 %v3026
        %3084 = vmatprep.subr.bf16.mxu0 0
        %3085 = vmatpush1.bf16.msra.mxu0 %v3025
        %3086 = vmatprep.subr.bf16.mxu0 0
        %3087 = vmatpush1.bf16.msra.mxu0 %v3024
        %3088 = vmatprep.subr.bf16.mxu0 0
        %3089 = vmatpush2.bf16.msra.mxu0 %v3039
        %3090 = vmatprep.subr.bf16.mxu0 0
        %3091 = vmatpush2.bf16.msra.mxu0 %v3038
        %3092 = vmatprep.subr.bf16.mxu0 0
        %3093 = vmatpush2.bf16.msra.mxu0 %v3037
        %3094 = vmatprep.subr.bf16.mxu0 0
        %3095 = vmatpush2.bf16.msra.mxu0 %v3036
        %3096 = vmatprep.subr.bf16.mxu0 0
        %3097 = vmatpush2.bf16.msra.mxu0 %v3035
        %3098 = vmatprep.subr.bf16.mxu0 0
        %3099 = vmatpush2.bf16.msra.mxu0 %v3034
        %3100 = vmatprep.subr.bf16.mxu0 0
        %3101 = vmatpush2.bf16.msra.mxu0 %v3033
        %3102 = vmatprep.subr.bf16.mxu0 0
        %3103 = vmatpush2.bf16.msra.mxu0 %v3032
        %3104 = vmatprep.mubr.bf16.mxu0 %v2875
        %3105 = vmatmul.mubr.bf16.gmra.mxu0 %v2874
        %v3106 = vpop.f32.mrf.mxu0
        %v3107 = vadd.f32 0.0, %v3106
        %v3108 = vpop.f32.mrf.mxu0
        %v3109 = vpop.f32.mrf.mxu0
        %v3110 = vadd.f32 0.0, %v3109
        %v3111 = vpop.f32.mrf.mxu0
        %3112 = vmatprep.mubr.bf16.mxu0 %v2878
        %3113 = vmatmul.mubr.bf16.gmra.mxu0 %v2877
        %v3114 = vpop.f32.mrf.mxu0
        %v3115 = vadd.f32 0.0, %v3114
        %v3116 = vpop.f32.mrf.mxu0
        %v3117 = vpop.f32.mrf.mxu0
        %v3118 = vpop.f32.mrf.mxu0
        %3119 = vdwg.mxu0
        %3120 = vmatprep.subr.bf16.mxu0 0
        %3121 = vmatpush1.bf16.msra.mxu0 %v3047
        %3122 = vmatprep.subr.bf16.mxu0 0
        %3123 = vmatpush1.bf16.msra.mxu0 %v3046
        %3124 = vmatprep.subr.bf16.mxu0 0
        %3125 = vmatpush1.bf16.msra.mxu0 %v3045
        %3126 = vmatprep.subr.bf16.mxu0 0
        %3127 = vmatpush1.bf16.msra.mxu0 %v3044
        %3128 = vmatprep.subr.bf16.mxu0 0
        %3129 = vmatpush1.bf16.msra.mxu0 %v3043
        %3130 = vmatprep.subr.bf16.mxu0 0
        %3131 = vmatpush1.bf16.msra.mxu0 %v3042
        %3132 = vmatprep.subr.bf16.mxu0 0
        %3133 = vmatpush1.bf16.msra.mxu0 %v3041
        %3134 = vmatprep.subr.bf16.mxu0 0
        %3135 = vmatpush1.bf16.msra.mxu0 %v3040
        %3136 = vmatprep.subr.bf16.mxu0 0
        %3137 = vmatpush2.bf16.msra.mxu0 0
        %3138 = vmatprep.subr.bf16.mxu0 0
        %3139 = vmatpush2.bf16.msra.mxu0 0
        %3140 = vmatprep.subr.bf16.mxu0 0
        %3141 = vmatpush2.bf16.msra.mxu0 0
        %3142 = vmatprep.subr.bf16.mxu0 0
        %3143 = vmatpush2.bf16.msra.mxu0 0
        %3144 = vmatprep.subr.bf16.mxu0 0
        %3145 = vmatpush2.bf16.msra.mxu0 0
        %3146 = vmatprep.subr.bf16.mxu0 0
        %3147 = vmatpush2.bf16.msra.mxu0 0
        %3148 = vmatprep.subr.bf16.mxu0 0
        %3149 = vmatpush2.bf16.msra.mxu0 0
        %3150 = vmatprep.subr.bf16.mxu0 0
        %3151 = vmatpush2.bf16.msra.mxu0 0
        %3152 = vmatprep.mubr.bf16.mxu0 0
        %3153 = vmatmul.mubr.bf16.gmra.mxu0 %v2876
        %v3154 = vpop.f32.mrf.mxu0
        %v3155 = vadd.f32 %v3107, %v3154
        %v3156 = vpop.f32.mrf.mxu0
        %v3157 = vpop.f32.mrf.mxu0
        %v3158 = vadd.f32 %v3110, %v3157
        %v3159 = vpop.f32.mrf.mxu0
        %3160 = vmatprep.mubr.bf16.mxu0 0
        %3161 = vmatmul.mubr.bf16.gmra.mxu0 %v2879
        %v3162 = vpop.f32.mrf.mxu0
        %v3163 = vadd.f32 %v3115, %v3162
        %v3164 = vpop.f32.mrf.mxu0
        %v3165 = vpop.f32.mrf.mxu0
        %v3166 = vpop.f32.mrf.mxu0
        %3167 = vdwg.mxu0
        %v3168 = vld [vmem:[%s4] sm:$0xf]
        %v3169 = vld [vmem:[%s4 + $0x4] sm:$0xf]
        %v3170 = vld [vmem:[%s4 + $0x8] sm:$0xf]
        %v3171 = vld [vmem:[%s4 + $0xc] sm:$0xf]
        %v3172 = vld [vmem:[%s4 + $0x10] sm:$0xf]
        %v3173 = vld [vmem:[%s4 + $0x14] sm:$0xf]
        %v3174 = vld [vmem:[%s4 + $0x18] sm:$0xf]
        %v3175 = vld [vmem:[%s4 + $0x1c] sm:$0xf]
        %v3176 = vpack.c.bf16 %v3158, %v3155
        %v3177 = vpack.c.bf16 %v3163, %v3163
        %v3186 = vunpack.c.l.b16 %v3168
        %v3187 = vunpack.c.l.b16 %v3169
        %v3188 = vunpack.c.l.b16 %v3170
        %v3189 = vunpack.c.l.b16 %v3171
        %v3190 = vunpack.c.l.b16 %v3172
        %v3191 = vunpack.c.l.b16 %v3173
        %v3192 = vunpack.c.l.b16 %v3174
        %v3193 = vunpack.c.l.b16 %v3175
        %v3194 = vpack.c.b16 %v3187, %v3186
        %v3195 = vpack.c.b16 %v3189, %v3188
        %v3196 = vpack.c.b16 %v3191, %v3190
        %v3197 = vpack.c.b16 %v3193, %v3192
        %vm3198 = vcmask 138240
        %v3200 = vsel %vm3198, %v3194, 0
        %v3203 = vsel %vm3198, %v3195, 0
        %v3206 = vsel %vm3198, %v3196, 0
        %v3209 = vsel %vm3198, %v3197, 0
        %v3211 = vsel 0, 4294967295, 65535
        %v3212 = vsel %vm2788, %v3211, 0
        %v3214 = vand.u32 %v3177, %v3212
        %3216 = vmatprep.subr.bf16.mxu0 0
        %3217 = vmatpush1.bf16.msra.mxu0 0
        %3218 = vmatprep.subr.bf16.mxu0 0
        %3219 = vmatpush1.bf16.msra.mxu0 0
        %3220 = vmatprep.subr.bf16.mxu0 0
        %3221 = vmatpush1.bf16.msra.mxu0 0
        %3222 = vmatprep.subr.bf16.mxu0 0
        %3223 = vmatpush1.bf16.msra.mxu0 0
        %3224 = vmatprep.subr.bf16.mxu0 0
        %3225 = vmatpush1.bf16.msra.mxu0 0
        %3226 = vmatprep.subr.bf16.mxu0 0
        %3227 = vmatpush1.bf16.msra.mxu0 0
        %3228 = vmatprep.subr.bf16.mxu0 0
        %3229 = vmatpush1.bf16.msra.mxu0 %v3214
        %3230 = vmatprep.subr.bf16.mxu0 0
        %3231 = vmatpush1.bf16.msra.mxu0 %v3176
        %3232 = vmatprep.subr.bf16.mxu0 0
        %3233 = vmatpush2.bf16.msra.mxu0 0
        %3234 = vmatprep.subr.bf16.mxu0 0
        %3235 = vmatpush2.bf16.msra.mxu0 0
        %3236 = vmatprep.subr.bf16.mxu0 0
        %3237 = vmatpush2.bf16.msra.mxu0 0
        %3238 = vmatprep.subr.bf16.mxu0 0
        %3239 = vmatpush2.bf16.msra.mxu0 0
        %3240 = vmatprep.subr.bf16.mxu0 0
        %3241 = vmatpush2.bf16.msra.mxu0 0
        %3242 = vmatprep.subr.bf16.mxu0 0
        %3243 = vmatpush2.bf16.msra.mxu0 0
        %3244 = vmatprep.subr.bf16.mxu0 0
        %3245 = vmatpush2.bf16.msra.mxu0 0
        %3246 = vmatprep.subr.bf16.mxu0 0
        %3247 = vmatpush2.bf16.msra.mxu0 0
        %3248 = vmatprep.mubr.bf16.mxu0 0
        %3249 = vmatmul.mubr.bf16.gmra.mxu0 %v3200
        %v3250 = vpop.f32.mrf.mxu0
        %v3251 = vadd.f32 0.0, %v3250
        %v3252 = vpop.f32.mrf.mxu0
        %v3253 = vpop.f32.mrf.mxu0
        %v3254 = vadd.f32 0.0, %v3253
        %v3255 = vpop.f32.mrf.mxu0
        %3256 = vmatprep.mubr.bf16.mxu0 0
        %3257 = vmatmul.mubr.bf16.gmra.mxu0 %v3203
        %v3258 = vpop.f32.mrf.mxu0
        %v3259 = vadd.f32 0.0, %v3258
        %v3260 = vpop.f32.mrf.mxu0
        %v3261 = vpop.f32.mrf.mxu0
        %v3262 = vadd.f32 0.0, %v3261
        %v3263 = vpop.f32.mrf.mxu0
        %3264 = vmatprep.mubr.bf16.mxu0 0
        %3265 = vmatmul.mubr.bf16.gmra.mxu0 %v3206
        %v3266 = vpop.f32.mrf.mxu0
        %v3267 = vadd.f32 0.0, %v3266
        %v3268 = vpop.f32.mrf.mxu0
        %v3269 = vpop.f32.mrf.mxu0
        %v3270 = vadd.f32 0.0, %v3269
        %v3271 = vpop.f32.mrf.mxu0
        %3272 = vmatprep.mubr.bf16.mxu0 0
        %3273 = vmatmul.mubr.bf16.gmra.mxu0 %v3209
        %v3274 = vpop.f32.mrf.mxu0
        %v3275 = vadd.f32 0.0, %v3274
        %v3276 = vpop.f32.mrf.mxu0
        %v3277 = vpop.f32.mrf.mxu0
        %v3278 = vadd.f32 0.0, %v3277
        %v3279 = vpop.f32.mrf.mxu0
        %3280 = vdwg.mxu0
        %vm3281 = vcmask 523264
        %3282 = vst.msk [vmem:[%s384] sm:$0xff] %vm3281, %v3251
        %3283 = vst.msk [vmem:[%s384 + $0x8] sm:$0xff] %vm3281, %v3254
        %3284 = vst.msk [vmem:[%s384 + $0x10] sm:$0xff] %vm3281, %v3259
        %3285 = vst.msk [vmem:[%s384 + $0x18] sm:$0xff] %vm3281, %v3262
        %3286 = vst.msk [vmem:[%s384 + $0x20] sm:$0xff] %vm3281, %v3267
        %3287 = vst.msk [vmem:[%s384 + $0x28] sm:$0xff] %vm3281, %v3270
        %3288 = vst.msk [vmem:[%s384 + $0x30] sm:$0xff] %vm3281, %v3275
        %3289 = vst.msk [vmem:[%s384 + $0x38] sm:$0xff] %vm3281, %v3278
        %v3290 = vpack.c.bf16 %v3254, %v3251
        %v3291 = vpack.c.bf16 %v3262, %v3259
        %v3292 = vpack.c.bf16 %v3270, %v3267
        %v3293 = vpack.c.bf16 %v3278, %v3275
        %v3294 = vld [vmem:[%s5] sm:$0xf]
        %v3295 = vld [vmem:[%s5 + $0x4] sm:$0xf]
        %v3296 = vld [vmem:[%s5 + $0x8] sm:$0xf]
        %v3297 = vld [vmem:[%s5 + $0xc] sm:$0xf]
        %v3298 = vld [vmem:[%s5 + $0x10] sm:$0xf]
        %v3299 = vld [vmem:[%s5 + $0x14] sm:$0xf]
        %v3300 = vld [vmem:[%s5 + $0x18] sm:$0xf]
        %v3301 = vld [vmem:[%s5 + $0x1c] sm:$0xf]
        %v3302 = vld [vmem:[%s6] sm:$0x1]
        %v3304 = vlaneseq
        %v3305 = vshrl.u32 %v3304, 7
        %v3306 = vsub.s32 0, %v3305
        %v3307 = vrot.slane %v3302, %v3306
        %v3317 = vunpack.c.l.b16 %v3294
        %v3318 = vunpack.c.l.b16 %v3295
        %v3319 = vunpack.c.l.b16 %v3296
        %v3320 = vunpack.c.l.b16 %v3297
        %v3321 = vunpack.c.l.b16 %v3298
        %v3322 = vunpack.c.l.b16 %v3299
        %v3323 = vunpack.c.l.b16 %v3300
        %v3324 = vunpack.c.l.b16 %v3301
        %v3325 = vpack.c.b16 %v3318, %v3317
        %v3326 = vpack.c.b16 %v3320, %v3319
        %v3327 = vpack.c.b16 %v3322, %v3321
        %v3328 = vpack.c.b16 %v3324, %v3323
        %v3334 = vsel %vm3281, %v3290, 0
        %v3337 = vsel %vm3281, %v3291, 0
        %v3340 = vsel %vm3281, %v3292, 0
        %v3343 = vsel %vm3281, %v3293, 0
        %3345 = vmatprep.subr.bf16.mxu0 0
        %3346 = vmatpush1.bf16.msra.mxu0 0
        %3347 = vmatprep.subr.bf16.mxu0 0
        %3348 = vmatpush1.bf16.msra.mxu0 0
        %3349 = vmatprep.subr.bf16.mxu0 0
        %3350 = vmatpush1.bf16.msra.mxu0 0
        %3351 = vmatprep.subr.bf16.mxu0 0
        %3352 = vmatpush1.bf16.msra.mxu0 0
        %3353 = vmatprep.subr.bf16.mxu0 0
        %3354 = vmatpush1.bf16.msra.mxu0 %v3328
        %3355 = vmatprep.subr.bf16.mxu0 0
        %3356 = vmatpush1.bf16.msra.mxu0 %v3327
        %3357 = vmatprep.subr.bf16.mxu0 0
        %3358 = vmatpush1.bf16.msra.mxu0 %v3326
        %3359 = vmatprep.subr.bf16.mxu0 0
        %3360 = vmatpush1.bf16.msra.mxu0 %v3325
        %3361 = vmatprep.subr.bf16.mxu0 0
        %3362 = vmatpush2.bf16.msra.mxu0 0
        %3363 = vmatprep.subr.bf16.mxu0 0
        %3364 = vmatpush2.bf16.msra.mxu0 0
        %3365 = vmatprep.subr.bf16.mxu0 0
        %3366 = vmatpush2.bf16.msra.mxu0 0
        %3367 = vmatprep.subr.bf16.mxu0 0
        %3368 = vmatpush2.bf16.msra.mxu0 0
        %3369 = vmatprep.subr.bf16.mxu0 0
        %3370 = vmatpush2.bf16.msra.mxu0 0
        %3371 = vmatprep.subr.bf16.mxu0 0
        %3372 = vmatpush2.bf16.msra.mxu0 0
        %3373 = vmatprep.subr.bf16.mxu0 0
        %3374 = vmatpush2.bf16.msra.mxu0 0
        %3375 = vmatprep.subr.bf16.mxu0 0
        %3376 = vmatpush2.bf16.msra.mxu0 0
        %3377 = vmatprep.mubr.bf16.mxu0 0
        %3378 = vmatmul.mubr.bf16.gmra.mxu0 %v3334
        %v3379 = vpop.f32.mrf.mxu0
        %v3380 = vadd.f32 %v3307, %v3379
        %v3381 = vpop.f32.mrf.mxu0
        %v3382 = vpop.f32.mrf.mxu0
        %v3383 = vadd.f32 %v3307, %v3382
        %v3384 = vpop.f32.mrf.mxu0
        %3385 = vmatprep.mubr.bf16.mxu0 0
        %3386 = vmatmul.mubr.bf16.gmra.mxu0 %v3337
        %v3387 = vpop.f32.mrf.mxu0
        %v3388 = vadd.f32 %v3307, %v3387
        %v3389 = vpop.f32.mrf.mxu0
        %v3390 = vpop.f32.mrf.mxu0
        %v3391 = vadd.f32 %v3307, %v3390
        %v3392 = vpop.f32.mrf.mxu0
        %3393 = vmatprep.mubr.bf16.mxu0 0
        %3394 = vmatmul.mubr.bf16.gmra.mxu0 %v3340
        %v3395 = vpop.f32.mrf.mxu0
        %v3396 = vadd.f32 %v3307, %v3395
        %v3397 = vpop.f32.mrf.mxu0
        %v3398 = vpop.f32.mrf.mxu0
        %v3399 = vadd.f32 %v3307, %v3398
        %v3400 = vpop.f32.mrf.mxu0
        %3401 = vmatprep.mubr.bf16.mxu0 0
        %3402 = vmatmul.mubr.bf16.gmra.mxu0 %v3343
        %v3403 = vpop.f32.mrf.mxu0
        %v3404 = vadd.f32 %v3307, %v3403
        %v3405 = vpop.f32.mrf.mxu0
        %v3406 = vpop.f32.mrf.mxu0
        %v3407 = vadd.f32 %v3307, %v3406
        %v3408 = vpop.f32.mrf.mxu0
        %3409 = vdwg.mxu0
        %v3410 = vmax.f32 %v3380, 0.0
        %v3411 = vmax.f32 %v3383, 0.0
        %v3412 = vmax.f32 %v3388, 0.0
        %v3413 = vmax.f32 %v3391, 0.0
        %v3414 = vmax.f32 %v3396, 0.0
        %v3415 = vmax.f32 %v3399, 0.0
        %v3416 = vmax.f32 %v3404, 0.0
        %v3417 = vmax.f32 %v3407, 0.0
        %v3418 = vsel %vm3281, %v3410, 0.0
        %v3419 = vsel %vm3281, %v3411, 0.0
        %v3420 = vadd.f32 %v3418, %v3419
        %v3421 = vsel %vm3281, %v3412, 0.0
        %v3422 = vadd.f32 %v3420, %v3421
        %v3423 = vsel %vm3281, %v3413, 0.0
        %v3424 = vadd.f32 %v3422, %v3423
        %v3425 = vsel %vm3281, %v3414, 0.0
        %v3426 = vadd.f32 %v3424, %v3425
        %v3427 = vsel %vm3281, %v3415, 0.0
        %v3428 = vadd.f32 %v3426, %v3427
        %v3429 = vsel %vm3281, %v3416, 0.0
        %v3430 = vadd.f32 %v3428, %v3429
        %v3431 = vsel %vm3281, %v3417, 0.0
        %v3432 = vadd.f32 %v3430, %v3431
        %v3433 = vrot.slane %v3432, 4
        %v3434 = vadd.f32 %v3432, %v3433
        %v3435 = vrot.slane %v3434, 2
        %v3436 = vadd.f32 %v3434, %v3435
        %v3437 = vrot.slane %v3436, 1
        %v3438 = vadd.f32 %v3436, %v3437
        %v3439 = vrcp.pop 64.0
        %v3440 = vmul.f32 %v3438, %v3439
        %v3441 = vpack.c.bf16 %v3440, %v3440
        %v3442 = vld [vmem:[%s7] sm:$0xf]
        %v3443 = vld [vmem:[%s7 + $0x4] sm:$0xf]
        %v3444 = vld [vmem:[%s7 + $0x8] sm:$0xf]
        %v3445 = vld [vmem:[%s7 + $0xc] sm:$0xf]
        %v3446 = vld [vmem:[%s7 + $0x10] sm:$0xf]
        %v3447 = vld [vmem:[%s7 + $0x14] sm:$0xf]
        %v3448 = vld [vmem:[%s7 + $0x18] sm:$0xf]
        %v3449 = vld [vmem:[%s7 + $0x1c] sm:$0xf]
        %v3450 = vld [vmem:[%s8] sm:$0x1]
        %v3459 = vunpack.c.l.b16 %v3442
        %v3460 = vunpack.c.l.b16 %v3443
        %v3461 = vunpack.c.l.b16 %v3444
        %v3462 = vunpack.c.l.b16 %v3445
        %v3463 = vunpack.c.l.b16 %v3446
        %v3464 = vunpack.c.l.b16 %v3447
        %v3465 = vunpack.c.l.b16 %v3448
        %v3466 = vunpack.c.l.b16 %v3449
        %v3467 = vpack.c.b16 %v3460, %v3459
        %v3468 = vpack.c.b16 %v3462, %v3461
        %v3469 = vpack.c.b16 %v3464, %v3463
        %v3470 = vpack.c.b16 %v3466, %v3465
        %v3476 = vsel %vm3281, %v3441, 0
        %3478 = vmatprep.subr.bf16.mxu0 0
        %3479 = vmatpush1.bf16.msra.mxu0 0
        %3480 = vmatprep.subr.bf16.mxu0 0
        %3481 = vmatpush1.bf16.msra.mxu0 0
        %3482 = vmatprep.subr.bf16.mxu0 0
        %3483 = vmatpush1.bf16.msra.mxu0 0
        %3484 = vmatprep.subr.bf16.mxu0 0
        %3485 = vmatpush1.bf16.msra.mxu0 0
        %3486 = vmatprep.subr.bf16.mxu0 0
        %3487 = vmatpush1.bf16.msra.mxu0 %v3470
        %3488 = vmatprep.subr.bf16.mxu0 0
        %3489 = vmatpush1.bf16.msra.mxu0 %v3469
        %3490 = vmatprep.subr.bf16.mxu0 0
        %3491 = vmatpush1.bf16.msra.mxu0 %v3468
        %3492 = vmatprep.subr.bf16.mxu0 0
        %3493 = vmatpush1.bf16.msra.mxu0 %v3467
        %3494 = vmatprep.subr.bf16.mxu0 0
        %3495 = vmatpush2.bf16.msra.mxu0 0
        %3496 = vmatprep.subr.bf16.mxu0 0
        %3497 = vmatpush2.bf16.msra.mxu0 0
        %3498 = vmatprep.subr.bf16.mxu0 0
        %3499 = vmatpush2.bf16.msra.mxu0 0
        %3500 = vmatprep.subr.bf16.mxu0 0
        %3501 = vmatpush2.bf16.msra.mxu0 0
        %3502 = vmatprep.subr.bf16.mxu0 0
        %3503 = vmatpush2.bf16.msra.mxu0 0
        %3504 = vmatprep.subr.bf16.mxu0 0
        %3505 = vmatpush2.bf16.msra.mxu0 0
        %3506 = vmatprep.subr.bf16.mxu0 0
        %3507 = vmatpush2.bf16.msra.mxu0 0
        %3508 = vmatprep.subr.bf16.mxu0 0
        %3509 = vmatpush2.bf16.msra.mxu0 0
        %3510 = vmatprep.mubr.bf16.mxu0 0
        %3511 = vmatmul.mubr.bf16.gmra.mxu0 %v3476
        %v3512 = vpop.f32.mrf.mxu0
        %v3513 = vadd.f32 %v3450, %v3512
        %v3514 = vpop.f32.mrf.mxu0
        %v3515 = vpop.f32.mrf.mxu0
        %v3516 = vpop.f32.mrf.mxu0
        %3517 = vdwg.mxu0
        %vm3518 = vcmask 8192
        %3519 = vst.msk [vmem:[%s374] sm:$0x1] %vm3518, %v3513
        %p3520 = scmp.lt.s32.totalorder %s26, 1
        %s3521 = scalar_select %p3520, %s26, 1
        %s3522 = smul.addr %s3521, 8
        %s3523 = smul.addr %s3522, 8
        %s3524 = scalar_lea.vmem %s9, %s3523
        %s3525 = sand.u32 %s254, 1
        %s3526 = scalar_lea.sflag [#allocation4], %s3525
        %s3527 = sand.u32 %s254, 1
        %s3528 = scalar_lea.vmem [#allocation5], %s3527
        // Predicated region
        $region61: #{model4_forward.1} parent=55 // pred_check
          %p3529 = pneg %p238
        $region62: #{model4_forward.1} parent=55 // pred_check_branch
          %3531 = sbr.rel (%p3529) target = $region64
        $region63: #{model4_forward.1} parent=55 // pred_region
          _
        $region64: #{model4_forward.1} parent=55 // pred_fallthru
          _
        // Predicated region
        $region65: #{model4_forward.1} parent=55 // pred_check
          %p3532 = pneg %p264
        $region66: #{model4_forward.1} parent=55 // pred_check_branch
          %3534 = sbr.rel (%p3532) target = $region68
        $region67: #{model4_forward.1} parent=55 // pred_region
          %s3536 = ssub.s32 16, 16
          %3537 = vsyncadd %s3526, %s3536
          %s3538 = smul.addr %s26, 16
          %s3539 = scalar_lea.hbm %s10, %s3538
          %s3541 = sshll.u32 %s3528, 4
          %s3542 = int_to_ptr.vmem [resolvable:$true] %s3541
          %3544 = dma.vmem_to_hbm [thread:$0]  %s3542, 16, %s3539, %s3526
        $region68: #{model4_forward.1} parent=55 // pred_fallthru
          _
      $region56: #{model4_forward.1} parent=5 // pred_fallthru
        _
      %p3545 = scmp.le.s32.totalorder 2, %s21
      // Predicated region
      $region69: #{model4_forward.1} parent=5 // pred_check
        %p3546 = pneg %p3545
      $region70: #{model4_forward.1} parent=5 // pred_check_branch
        %3548 = sbr.rel (%p3546) target = $region72
      $region71: #{model4_forward.1} parent=5 // pred_region
        %s3549 = ssub.s32 %s21, 2
        // Predicated region
        $region73: #{model4_forward.1} parent=71 // pred_check
          %p3550 = pneg %p244
        $region74: #{model4_forward.1} parent=71 // pred_check_branch
          %3552 = sbr.rel (%p3550) target = $region76
        $region75: #{model4_forward.1} parent=71 // pred_region
          %p3553 = scmp.lt.s32.totalorder %s27, 1
          %s3554 = scalar_select %p3553, %s27, 1
          %s3555 = smul.addr %s3554, 8
          %s3556 = smul.addr %s3555, 8
          %s3557 = scalar_lea.vmem %s9, %s3556
        $region76: #{model4_forward.1} parent=71 // pred_fallthru
          _
        // Predicated region
        $region77: #{model4_forward.1} parent=71 // pred_check
          %p3558 = pneg %p270
        $region78: #{model4_forward.1} parent=71 // pred_check_branch
          %3560 = sbr.rel (%p3558) target = $region80
        $region79: #{model4_forward.1} parent=71 // pred_region
          %s3561 = sand.u32 %s255, 1
          %s3562 = scalar_lea.sflag [#allocation4], %s3561
          %s3563 = sand.u32 %s255, 1
          %s3564 = scalar_lea.vmem [#allocation5], %s3563
          %3565 = dma.done %s3562, 16
        $region80: #{model4_forward.1} parent=71 // pred_fallthru
          _
      $region72: #{model4_forward.1} parent=5 // pred_fallthru
        _
    $region6: #{model4_forward.1} parent=1 // loop_footer
      %s25 = sadd.s32 1, %s21
    $region7: #{model4_forward.1} parent=1 // loop_footer_branch
      %20 = sbr.rel target = $region3
    $region8: #{model4_forward.1} parent=1 // loop_exit
      _
    %3566 = vsyncpa [#allocation3], 1
    %s3567 = scalar_lea.sflag [#allocation3], 1
    %3568 = vsyncpa %s3567, 1
    %3569 = vsyncpa [#allocation4], 1
    %s3570 = scalar_lea.sflag [#allocation4], 1
    %3571 = vsyncpa %s3570, 1

</llo_original>
